<compile_context>
chip_gen: v5e
topology: v5e:2x2
jax: 0.10.0
libtpu: 0.0.40
codegen_flags: <defaults>
</compile_context>

<pallas_src>
import jax
import jax.numpy as jnp
from jax.experimental import pallas as pl
from jax.experimental.pallas import tpu as pltpu

CHANNELS = (32, 64, 64)
KERNELS = (8, 4, 3)
STRIDES = (4, 2, 1)

LANE = 128   # TPU lane width: Cout / intermediate channels zero-padded to this


def _conv_out(n, k, s):
    return (n - k) // s + 1


# ---------------------------------------------------------------------------
# One-time parameter prep (hoisted out of the jitted forward).
#   conv{i}_w (Cout, Cin, k, k) -> w{i} (k*k*Cin_pad, 128) bf16, K row order
#   (i, j, c); conv{i}_b (Cout,) -> b{i} (1, 128) f32.  Cin is zero-padded to
#   128 for layers 2/3 (their inputs live lane-padded in VMEM); Cout is always
#   padded to 128 so every in-kernel store is lane-dense.
# ---------------------------------------------------------------------------
def prepare_atari_params(params):
    prep = {}
    for idx, k in enumerate(KERNELS, start=1):
        w = params[f"conv{idx}_w"]             # (Cout, Cin, k, k)
        b = params[f"conv{idx}_b"]             # (Cout,)
        cout, cin = int(w.shape[0]), int(w.shape[1])
        assert cout <= LANE, "AtariBase fused kernel assumes Cout <= 128"
        wt = jnp.transpose(w, (2, 3, 1, 0))    # (k, k, Cin, Cout)
        if idx > 1:                            # layer-2/3 inputs are lane-padded
            assert cin <= LANE
            wt = jnp.pad(wt, ((0, 0), (0, 0), (0, LANE - cin), (0, 0)))
            cin = LANE
        wmat = wt.reshape(k * k * cin, cout)
        wmat = jnp.pad(wmat, ((0, 0), (0, LANE - cout))).astype(jnp.bfloat16)
        bias = jnp.pad(b, (0, LANE - cout)).reshape(1, LANE).astype(jnp.float32)
        prep[f"w{idx}"] = wmat
        prep[f"b{idx}"] = bias
    return prep


# ---------------------------------------------------------------------------
# Wrapper-side layer-1 im2col (XLA), with rows ordered by conv2's residue
# classes so the in-kernel conv2 im2col only needs contiguous row slices.
#   row index = ((rh*s2 + rw)*qh1 + qh)*qw1 + qw for conv1 output position
#   (h1, w1) = (qh*s2 + rh, qw*s2 + rw);  feature order (i, j, c).
# ---------------------------------------------------------------------------
def _layer1_patches_residue_ordered(x_nhwc):
    k1, s1, s2 = KERNELS[0], STRIDES[0], STRIDES[1]
    B, H, W, C = x_nhwc.shape
    Ho1, Wo1 = _conv_out(H, k1, s1), _conv_out(W, k1, s1)
    assert Ho1 > 0 and Wo1 > 0, "input too small for the AtariBase conv stack"
    assert Ho1 % s2 == 0 and Wo1 % s2 == 0, (
        "conv1 output must be divisible by conv2's stride for the fused kernel")
    taps = []
    for i in range(k1):
        for j in range(k1):
            taps.append(x_nhwc[:, i:i + s1 * Ho1:s1, j:j + s1 * Wo1:s1, :])
    p = jnp.concatenate(taps, axis=-1)                     # (B, Ho1, Wo1, K1)
    qh1, qw1 = Ho1 // s2, Wo1 // s2
    p = p.reshape(B, qh1, s2, qw1, s2, k1 * k1 * C)        # (B, qh, rh, qw, rw, K1)
    p = jnp.transpose(p, (0, 2, 4, 1, 3, 5))               # (B, rh, rw, qh, qw, K1)
    return p.reshape(B, Ho1 * Wo1, k1 * k1 * C), Ho1, Wo1


# ---------------------------------------------------------------------------
# The fused kernel: conv1 -> relu -> conv2 -> relu -> conv3 -> relu, one image
# per grid step.  act1/act2 are bf16 VMEM scratch; all K-tap slices are static
# contiguous row slices; all matmuls hit the MXU with f32 accumulation.
# ---------------------------------------------------------------------------
def _make_fused_kernel(*, qh1, qw1, Ho2, Wo2, Ho3, Wo3):
    k2, s2, k3 = KERNELS[1], STRIDES[1], KERNELS[2]
    R = qh1 * qw1                      # rows per conv2-residue block of act1

    def kernel(p1_ref, w1_ref, b1_ref, w2_ref, b2_ref, w3_ref, b3_ref,
               o_ref, act1_ref, act2_ref):
        # ---- conv1 + ReLU: one matmul per residue block (rows pre-ordered by
        #      the wrapper), stored to act1[rp] as a whole slice.
        for rp in range(s2 * s2):
            a = jnp.dot(p1_ref[rp * R:(rp + 1) * R, :], w1_ref[...],
                        preferred_element_type=jnp.float32)
            act1_ref[rp] = jnp.maximum(a + b1_ref[...], 0.0).astype(act1_ref.dtype)

        # ---- conv2 + ReLU (stride s2): per output row, gather the k2*k2 taps
        #      as contiguous slices of the residue-ordered act1 scratch.
        for h2 in range(Ho2):
            taps = []
            for i in range(k2):
                qi, ri = divmod(i, s2)
                for j in range(k2):
                    qj, rj = divmod(j, s2)
                    base = (h2 + qi) * qw1 + qj
                    taps.append(act1_ref[ri * s2 + rj, base:base + Wo2, :])
            prow = jnp.concatenate(taps, axis=-1)          # (Wo2, k2*k2*128)
            a = jnp.dot(prow, w2_ref[...], preferred_element_type=jnp.float32)
            act2_ref[h2] = jnp.maximum(a + b2_ref[...], 0.0).astype(act2_ref.dtype)

        # ---- conv3 + ReLU (stride 1): contiguous taps from act2, f32 output.
        for h3 in range(Ho3):
            taps = []
            for i in range(k3):
                for j in range(k3):
                    taps.append(act2_ref[h3 + i, j:j + Wo3, :])
            prow = jnp.concatenate(taps, axis=-1)          # (Wo3, k3*k3*128)
            a = jnp.dot(prow, w3_ref[...], preferred_element_type=jnp.float32)
            o_ref[h3] = jnp.maximum(a + b3_ref[...], 0.0)

    return kernel


# ---------------------------------------------------------------------------
# Deterministic parameter init (shapes from AtariBase.__init__).
# ---------------------------------------------------------------------------
def init_atari_base_params(key, input_dims, channels=CHANNELS, kernels=KERNELS):
    params = {}
    cin = input_dims[0]
    for idx, (cout, k) in enumerate(zip(channels, kernels), start=1):
        kw_, kb_ = jax.random.split(jax.random.fold_in(key, idx))
        fan_in = cin * k * k
        bound = 1.0 / float(jnp.sqrt(fan_in))
        params[f"conv{idx}_w"] = jax.random.uniform(
            kw_, (cout, cin, k, k), jnp.float32, -bound, bound)
        params[f"conv{idx}_b"] = jax.random.uniform(
            kb_, (cout,), jnp.float32, -bound, bound)
        cin = cout
    return params


@jax.jit
def atari_base_forward(prepped, state):
    """forward(state): relu(conv1) -> relu(conv2) -> relu(conv3) -> Flatten.

    `state` is NCHW (PyTorch layout).  `prepped` is prepare_atari_params(...).
    """
    B, Cin, H, W = state.shape
    k1, k2, k3 = KERNELS
    s1, s2, s3 = STRIDES
    assert s3 == 1, "fused kernel assumes conv3 stride 1 (AtariBase default)"

    x = jnp.transpose(state, (0, 2, 3, 1)).astype(jnp.bfloat16)  # NCHW -> NHWC
    patches1, Ho1, Wo1 = _layer1_patches_residue_ordered(x)

    Ho2, Wo2 = _conv_out(Ho1, k2, s2), _conv_out(Wo1, k2, s2)
    Ho3, Wo3 = _conv_out(Ho2, k3, s3), _conv_out(Wo2, k3, s3)
    assert Ho2 > 0 and Wo2 > 0 and Ho3 > 0 and Wo3 > 0
    qh1, qw1 = Ho1 // s2, Wo1 // s2
    # residue-window bound (holds for the default k2 = 2*s2 geometry)
    assert (k2 - 1) // s2 + Ho2 <= qh1 and (k2 - 1) // s2 + Wo2 <= qw1

    M1 = Ho1 * Wo1
    K1 = k1 * k1 * Cin
    K2p, K3p = k2 * k2 * LANE, k3 * k3 * LANE

    kernel = _make_fused_kernel(qh1=qh1, qw1=qw1, Ho2=Ho2, Wo2=Wo2,
                                Ho3=Ho3, Wo3=Wo3)

    out = pl.pallas_call(
        kernel,
        out_shape=jax.ShapeDtypeStruct((B, Ho3, Wo3, LANE), jnp.float32),
        grid=(B,),
        in_specs=[
            pl.BlockSpec((None, M1, K1), lambda b: (b, 0, 0)),     # patches1
            pl.BlockSpec((K1, LANE), lambda b: (0, 0)),            # w1 (resident)
            pl.BlockSpec((1, LANE), lambda b: (0, 0)),             # b1
            pl.BlockSpec((K2p, LANE), lambda b: (0, 0)),           # w2 (resident)
            pl.BlockSpec((1, LANE), lambda b: (0, 0)),             # b2
            pl.BlockSpec((K3p, LANE), lambda b: (0, 0)),           # w3 (resident)
            pl.BlockSpec((1, LANE), lambda b: (0, 0)),             # b3
        ],
        out_specs=pl.BlockSpec((None, Ho3, Wo3, LANE), lambda b: (b, 0, 0, 0)),
        scratch_shapes=[
            pltpu.VMEM((s2 * s2, qh1 * qw1, LANE), jnp.bfloat16),  # act1
            pltpu.VMEM((Ho2, Wo2, LANE), jnp.bfloat16),            # act2
        ],
        compiler_params=pltpu.CompilerParams(
            dimension_semantics=("parallel",),    # batch split across v7x cores
        ),
    )(patches1, prepped["w1"], prepped["b1"], prepped["w2"], prepped["b2"],
      prepped["w3"], prepped["b3"])

    conv3 = out[..., :CHANNELS[2]]                          # drop lane padding
    conv3 = jnp.transpose(conv3, (0, 3, 1, 2))              # NHWC -> NCHW
    return conv3.reshape(B, -1)                             # nn.Flatten order


# ---------------------------------------------------------------------------
# Pure-JAX references (lax.conv) for correctness checking.
# ---------------------------------------------------------------------------
def _ref_forward(params, x, *, bf16_operands=False):
    for i, s in enumerate(STRIDES, start=1):
        w, b = params[f"conv{i}_w"], params[f"conv{i}_b"]
        if bf16_operands:   # mirror the kernel's bf16 operand/activation rounding
            x = x.astype(jnp.bfloat16).astype(jnp.float32)
            w = w.astype(jnp.bfloat16).astype(jnp.float32)
        x = jax.lax.conv_general_dilated(
            x, w, (s, s), "VALID", dimension_numbers=("NCHW", "OIHW", "NCHW"))
        x = jax.nn.relu(x + b[None, :, None, None])
    return x.reshape(x.shape[0], -1)


if __name__ == "__main__":
    key = jax.random.PRNGKey(0)
    # Small Atari-like input: batch=2, 4 stacked frames, 36x36 spatial
    # (36 is the smallest spatial size that survives kernels (8,4,3) / strides
    # (4,2,1); 16 would not).
    B, C, H, W = 2, 4, 36, 36
    input_dims = (C, H, W)

    pkey, xkey = jax.random.split(key)
    params = init_atari_base_params(pkey, input_dims)
    prepped = prepare_atari_params(params)          # one-time weight re-layout
    x = jax.random.normal(xkey, (B, C, H, W), jnp.float32)

    out = jax.block_until_ready(atari_base_forward(prepped, x))

    # bf16-operand reference: same math as the kernel path -> tight tolerance
    # validates layout / indexing.  f32 reference: semantics within bf16 error.
    ref_bf16 = jax.block_until_ready(_ref_forward(params, x, bf16_operands=True))
    ref_f32 = jax.block_until_ready(_ref_forward(params, x, bf16_operands=False))

    assert out.shape == ref_f32.shape, (out.shape, ref_f32.shape)
    assert jnp.allclose(out, ref_bf16, atol=2e-3, rtol=2e-3), \
        "mismatch vs bf16-matched reference"
    assert jnp.allclose(out, ref_f32, atol=5e-2, rtol=5e-2), \
        "mismatch vs f32 reference"

    print("KERNEL_OK")
</pallas_src>

<mosaic_0001>
module attributes {stable_mosaic.version = 11 : i64} {
  func.func @kernel(%arg0: i32, %arg1: memref<1x64x256xbf16, #tpu.memory_space<vmem>>, %arg2: memref<256x128xbf16, #tpu.memory_space<vmem>>, %arg3: memref<1x128xf32, #tpu.memory_space<vmem>>, %arg4: memref<2048x128xbf16, #tpu.memory_space<vmem>>, %arg5: memref<1x128xf32, #tpu.memory_space<vmem>>, %arg6: memref<1152x128xbf16, #tpu.memory_space<vmem>>, %arg7: memref<1x128xf32, #tpu.memory_space<vmem>>, %arg8: memref<1x1x1x128xf32, #tpu.memory_space<vmem>>, %arg9: memref<4x16x128xbf16, #tpu.memory_space<vmem>>, %arg10: memref<3x3x128xbf16, #tpu.memory_space<vmem>>) attributes {dimension_semantics = [#tpu.dimension_semantics<parallel>], iteration_bounds = array<i64: 2>, scalar_prefetch = 0 : i64, scratch_operands = 2 : i64, tpu.core_type = #tpu.core_type<tc>, window_params = [{transform_indices = @transform_0, window_bounds = array<i64: 1, 64, 256>}, {pipeline_mode = #tpu.pipeline_mode<synchronous>, transform_indices = @transform_1, window_bounds = array<i64: 256, 128>}, {pipeline_mode = #tpu.pipeline_mode<synchronous>, transform_indices = @transform_2, window_bounds = array<i64: 1, 128>}, {pipeline_mode = #tpu.pipeline_mode<synchronous>, transform_indices = @transform_3, window_bounds = array<i64: 2048, 128>}, {pipeline_mode = #tpu.pipeline_mode<synchronous>, transform_indices = @transform_4, window_bounds = array<i64: 1, 128>}, {pipeline_mode = #tpu.pipeline_mode<synchronous>, transform_indices = @transform_5, window_bounds = array<i64: 1152, 128>}, {pipeline_mode = #tpu.pipeline_mode<synchronous>, transform_indices = @transform_6, window_bounds = array<i64: 1, 128>}, {transform_indices = @transform_7, window_bounds = array<i64: 1, 1, 1, 128>}]} {
    %c0 = arith.constant 0 : index
    %c0_0 = arith.constant 0 : index
    %c0_1 = arith.constant 0 : index
    %0 = vector.load %arg1[%c0, %c0_0, %c0_1] : memref<1x64x256xbf16, #tpu.memory_space<vmem>>, vector<1x16x256xbf16>
    %1 = vector.shape_cast %0 : vector<1x16x256xbf16> to vector<16x256xbf16>
    %c0_2 = arith.constant 0 : index
    %c0_3 = arith.constant 0 : index
    %2 = vector.load %arg2[%c0_2, %c0_3] : memref<256x128xbf16, #tpu.memory_space<vmem>>, vector<256x128xbf16>
    %cst = arith.constant dense<0.000000e+00> : vector<16x128xf32>
    %3 = tpu.matmul %1, %2, %cst {dimension_numbers = #tpu.dot_dimension_numbers<[1], [0], [0], [1], [0, 0, 1, 1], [], []>} : vector<16x256xbf16>, vector<256x128xbf16>, vector<16x128xf32> -> vector<16x128xf32>
    %c0_4 = arith.constant 0 : index
    %c0_5 = arith.constant 0 : index
    %4 = vector.load %arg3[%c0_4, %c0_5] : memref<1x128xf32, #tpu.memory_space<vmem>>, vector<1x128xf32>
    %5 = vector.broadcast %4 : vector<1x128xf32> to vector<16x128xf32>
    %6 = arith.addf %3, %5 : vector<16x128xf32>
    %cst_6 = arith.constant 0.000000e+00 : f32
    %7 = vector.broadcast %cst_6 : f32 to vector<16x128xf32>
    %8 = arith.maximumf %6, %7 : vector<16x128xf32>
    %9 = arith.truncf %8 : vector<16x128xf32> to vector<16x128xbf16>
    %c0_7 = arith.constant 0 : index
    %c0_8 = arith.constant 0 : index
    %c0_9 = arith.constant 0 : index
    %10 = vector.load %arg9[%c0_7, %c0_8, %c0_9] : memref<4x16x128xbf16, #tpu.memory_space<vmem>>, vector<1x16x128xbf16>
    %11 = vector.shape_cast %10 : vector<1x16x128xbf16> to vector<16x128xbf16>
    %12 = vector.shape_cast %9 : vector<16x128xbf16> to vector<1x16x128xbf16>
    tpu.vector_store %arg9[%c0_7, %c0_8, %c0_9], %12 {strides = array<i32>} : memref<4x16x128xbf16, #tpu.memory_space<vmem>>, vector<1x16x128xbf16>,
    %c0_10 = arith.constant 0 : index
    %c16 = arith.constant 16 : index
    %c0_11 = arith.constant 0 : index
    %13 = vector.load %arg1[%c0_10, %c16, %c0_11] : memref<1x64x256xbf16, #tpu.memory_space<vmem>>, vector<1x16x256xbf16>
    %14 = vector.shape_cast %13 : vector<1x16x256xbf16> to vector<16x256xbf16>
    %c0_12 = arith.constant 0 : index
    %c0_13 = arith.constant 0 : index
    %15 = vector.load %arg2[%c0_12, %c0_13] : memref<256x128xbf16, #tpu.memory_space<vmem>>, vector<256x128xbf16>
    %cst_14 = arith.constant dense<0.000000e+00> : vector<16x128xf32>
    %16 = tpu.matmul %14, %15, %cst_14 {dimension_numbers = #tpu.dot_dimension_numbers<[1], [0], [0], [1], [0, 0, 1, 1], [], []>} : vector<16x256xbf16>, vector<256x128xbf16>, vector<16x128xf32> -> vector<16x128xf32>
    %c0_15 = arith.constant 0 : index
    %c0_16 = arith.constant 0 : index
    %17 = vector.load %arg3[%c0_15, %c0_16] : memref<1x128xf32, #tpu.memory_space<vmem>>, vector<1x128xf32>
    %18 = vector.broadcast %17 : vector<1x128xf32> to vector<16x128xf32>
    %19 = arith.addf %16, %18 : vector<16x128xf32>
    %cst_17 = arith.constant 0.000000e+00 : f32
    %20 = vector.broadcast %cst_17 : f32 to vector<16x128xf32>
    %21 = arith.maximumf %19, %20 : vector<16x128xf32>
    %22 = arith.truncf %21 : vector<16x128xf32> to vector<16x128xbf16>
    %c1 = arith.constant 1 : index
    %c0_18 = arith.constant 0 : index
    %c0_19 = arith.constant 0 : index
    %23 = vector.load %arg9[%c1, %c0_18, %c0_19] : memref<4x16x128xbf16, #tpu.memory_space<vmem>>, vector<1x16x128xbf16>
    %24 = vector.shape_cast %23 : vector<1x16x128xbf16> to vector<16x128xbf16>
    %25 = vector.shape_cast %22 : vector<16x128xbf16> to vector<1x16x128xbf16>
    tpu.vector_store %arg9[%c1, %c0_18, %c0_19], %25 {strides = array<i32>} : memref<4x16x128xbf16, #tpu.memory_space<vmem>>, vector<1x16x128xbf16>,
    %c0_20 = arith.constant 0 : index
    %c32 = arith.constant 32 : index
    %c0_21 = arith.constant 0 : index
    %26 = vector.load %arg1[%c0_20, %c32, %c0_21] : memref<1x64x256xbf16, #tpu.memory_space<vmem>>, vector<1x16x256xbf16>
    %27 = vector.shape_cast %26 : vector<1x16x256xbf16> to vector<16x256xbf16>
    %c0_22 = arith.constant 0 : index
    %c0_23 = arith.constant 0 : index
    %28 = vector.load %arg2[%c0_22, %c0_23] : memref<256x128xbf16, #tpu.memory_space<vmem>>, vector<256x128xbf16>
    %cst_24 = arith.constant dense<0.000000e+00> : vector<16x128xf32>
    %29 = tpu.matmul %27, %28, %cst_24 {dimension_numbers = #tpu.dot_dimension_numbers<[1], [0], [0], [1], [0, 0, 1, 1], [], []>} : vector<16x256xbf16>, vector<256x128xbf16>, vector<16x128xf32> -> vector<16x128xf32>
    %c0_25 = arith.constant 0 : index
    %c0_26 = arith.constant 0 : index
    %30 = vector.load %arg3[%c0_25, %c0_26] : memref<1x128xf32, #tpu.memory_space<vmem>>, vector<1x128xf32>
    %31 = vector.broadcast %30 : vector<1x128xf32> to vector<16x128xf32>
    %32 = arith.addf %29, %31 : vector<16x128xf32>
    %cst_27 = arith.constant 0.000000e+00 : f32
    %33 = vector.broadcast %cst_27 : f32 to vector<16x128xf32>
    %34 = arith.maximumf %32, %33 : vector<16x128xf32>
    %35 = arith.truncf %34 : vector<16x128xf32> to vector<16x128xbf16>
    %c2 = arith.constant 2 : index
    %c0_28 = arith.constant 0 : index
    %c0_29 = arith.constant 0 : index
    %36 = vector.load %arg9[%c2, %c0_28, %c0_29] : memref<4x16x128xbf16, #tpu.memory_space<vmem>>, vector<1x16x128xbf16>
    %37 = vector.shape_cast %36 : vector<1x16x128xbf16> to vector<16x128xbf16>
    %38 = vector.shape_cast %35 : vector<16x128xbf16> to vector<1x16x128xbf16>
    tpu.vector_store %arg9[%c2, %c0_28, %c0_29], %38 {strides = array<i32>} : memref<4x16x128xbf16, #tpu.memory_space<vmem>>, vector<1x16x128xbf16>,
    %c0_30 = arith.constant 0 : index
    %c48 = arith.constant 48 : index
    %c0_31 = arith.constant 0 : index
    %39 = vector.load %arg1[%c0_30, %c48, %c0_31] : memref<1x64x256xbf16, #tpu.memory_space<vmem>>, vector<1x16x256xbf16>
    %40 = vector.shape_cast %39 : vector<1x16x256xbf16> to vector<16x256xbf16>
    %c0_32 = arith.constant 0 : index
    %c0_33 = arith.constant 0 : index
    %41 = vector.load %arg2[%c0_32, %c0_33] : memref<256x128xbf16, #tpu.memory_space<vmem>>, vector<256x128xbf16>
    %cst_34 = arith.constant dense<0.000000e+00> : vector<16x128xf32>
    %42 = tpu.matmul %40, %41, %cst_34 {dimension_numbers = #tpu.dot_dimension_numbers<[1], [0], [0], [1], [0, 0, 1, 1], [], []>} : vector<16x256xbf16>, vector<256x128xbf16>, vector<16x128xf32> -> vector<16x128xf32>
    %c0_35 = arith.constant 0 : index
    %c0_36 = arith.constant 0 : index
    %43 = vector.load %arg3[%c0_35, %c0_36] : memref<1x128xf32, #tpu.memory_space<vmem>>, vector<1x128xf32>
    %44 = vector.broadcast %43 : vector<1x128xf32> to vector<16x128xf32>
    %45 = arith.addf %42, %44 : vector<16x128xf32>
    %cst_37 = arith.constant 0.000000e+00 : f32
    %46 = vector.broadcast %cst_37 : f32 to vector<16x128xf32>
    %47 = arith.maximumf %45, %46 : vector<16x128xf32>
    %48 = arith.truncf %47 : vector<16x128xf32> to vector<16x128xbf16>
    %c3 = arith.constant 3 : index
    %c0_38 = arith.constant 0 : index
    %c0_39 = arith.constant 0 : index
    %49 = vector.load %arg9[%c3, %c0_38, %c0_39] : memref<4x16x128xbf16, #tpu.memory_space<vmem>>, vector<1x16x128xbf16>
    %50 = vector.shape_cast %49 : vector<1x16x128xbf16> to vector<16x128xbf16>
    %51 = vector.shape_cast %48 : vector<16x128xbf16> to vector<1x16x128xbf16>
    tpu.vector_store %arg9[%c3, %c0_38, %c0_39], %51 {strides = array<i32>} : memref<4x16x128xbf16, #tpu.memory_space<vmem>>, vector<1x16x128xbf16>,
    %c0_40 = arith.constant 0 : index
    %c0_41 = arith.constant 0 : index
    %c0_42 = arith.constant 0 : index
    %52 = vector.load %arg9[%c0_40, %c0_41, %c0_42] : memref<4x16x128xbf16, #tpu.memory_space<vmem>>, vector<1x3x128xbf16>
    %53 = vector.shape_cast %52 : vector<1x3x128xbf16> to vector<3x128xbf16>
    %c1_43 = arith.constant 1 : index
    %c0_44 = arith.constant 0 : index
    %c0_45 = arith.constant 0 : index
    %54 = vector.load %arg9[%c1_43, %c0_44, %c0_45] : memref<4x16x128xbf16, #tpu.memory_space<vmem>>, vector<1x3x128xbf16>
    %55 = vector.shape_cast %54 : vector<1x3x128xbf16> to vector<3x128xbf16>
    %c0_46 = arith.constant 0 : index
    %c1_47 = arith.constant 1 : index
    %c0_48 = arith.constant 0 : index
    %56 = vector.load %arg9[%c0_46, %c1_47, %c0_48] : memref<4x16x128xbf16, #tpu.memory_space<vmem>>, vector<1x3x128xbf16>
    %57 = vector.shape_cast %56 : vector<1x3x128xbf16> to vector<3x128xbf16>
    %c1_49 = arith.constant 1 : index
    %c1_50 = arith.constant 1 : index
    %c0_51 = arith.constant 0 : index
    %58 = vector.load %arg9[%c1_49, %c1_50, %c0_51] : memref<4x16x128xbf16, #tpu.memory_space<vmem>>, vector<1x3x128xbf16>
    %59 = vector.shape_cast %58 : vector<1x3x128xbf16> to vector<3x128xbf16>
    %c2_52 = arith.constant 2 : index
    %c0_53 = arith.constant 0 : index
    %c0_54 = arith.constant 0 : index
    %60 = vector.load %arg9[%c2_52, %c0_53, %c0_54] : memref<4x16x128xbf16, #tpu.memory_space<vmem>>, vector<1x3x128xbf16>
    %61 = vector.shape_cast %60 : vector<1x3x128xbf16> to vector<3x128xbf16>
    %c3_55 = arith.constant 3 : index
    %c0_56 = arith.constant 0 : index
    %c0_57 = arith.constant 0 : index
    %62 = vector.load %arg9[%c3_55, %c0_56, %c0_57] : memref<4x16x128xbf16, #tpu.memory_space<vmem>>, vector<1x3x128xbf16>
    %63 = vector.shape_cast %62 : vector<1x3x128xbf16> to vector<3x128xbf16>
    %c2_58 = arith.constant 2 : index
    %c1_59 = arith.constant 1 : index
    %c0_60 = arith.constant 0 : index
    %64 = vector.load %arg9[%c2_58, %c1_59, %c0_60] : memref<4x16x128xbf16, #tpu.memory_space<vmem>>, vector<1x3x128xbf16>
    %65 = vector.shape_cast %64 : vector<1x3x128xbf16> to vector<3x128xbf16>
    %c3_61 = arith.constant 3 : index
    %c1_62 = arith.constant 1 : index
    %c0_63 = arith.constant 0 : index
    %66 = vector.load %arg9[%c3_61, %c1_62, %c0_63] : memref<4x16x128xbf16, #tpu.memory_space<vmem>>, vector<1x3x128xbf16>
    %67 = vector.shape_cast %66 : vector<1x3x128xbf16> to vector<3x128xbf16>
    %c0_64 = arith.constant 0 : index
    %c4 = arith.constant 4 : index
    %c0_65 = arith.constant 0 : index
    %68 = vector.load %arg9[%c0_64, %c4, %c0_65] : memref<4x16x128xbf16, #tpu.memory_space<vmem>>, vector<1x3x128xbf16>
    %69 = vector.shape_cast %68 : vector<1x3x128xbf16> to vector<3x128xbf16>
    %c1_66 = arith.constant 1 : index
    %c4_67 = arith.constant 4 : index
    %c0_68 = arith.constant 0 : index
    %70 = vector.load %arg9[%c1_66, %c4_67, %c0_68] : memref<4x16x128xbf16, #tpu.memory_space<vmem>>, vector<1x3x128xbf16>
    %71 = vector.shape_cast %70 : vector<1x3x128xbf16> to vector<3x128xbf16>
    %c0_69 = arith.constant 0 : index
    %c5 = arith.constant 5 : index
    %c0_70 = arith.constant 0 : index
    %72 = vector.load %arg9[%c0_69, %c5, %c0_70] : memref<4x16x128xbf16, #tpu.memory_space<vmem>>, vector<1x3x128xbf16>
    %73 = vector.shape_cast %72 : vector<1x3x128xbf16> to vector<3x128xbf16>
    %c1_71 = arith.constant 1 : index
    %c5_72 = arith.constant 5 : index
    %c0_73 = arith.constant 0 : index
    %74 = vector.load %arg9[%c1_71, %c5_72, %c0_73] : memref<4x16x128xbf16, #tpu.memory_space<vmem>>, vector<1x3x128xbf16>
    %75 = vector.shape_cast %74 : vector<1x3x128xbf16> to vector<3x128xbf16>
    %c2_74 = arith.constant 2 : index
    %c4_75 = arith.constant 4 : index
    %c0_76 = arith.constant 0 : index
    %76 = vector.load %arg9[%c2_74, %c4_75, %c0_76] : memref<4x16x128xbf16, #tpu.memory_space<vmem>>, vector<1x3x128xbf16>
    %77 = vector.shape_cast %76 : vector<1x3x128xbf16> to vector<3x128xbf16>
    %c3_77 = arith.constant 3 : index
    %c4_78 = arith.constant 4 : index
    %c0_79 = arith.constant 0 : index
    %78 = vector.load %arg9[%c3_77, %c4_78, %c0_79] : memref<4x16x128xbf16, #tpu.memory_space<vmem>>, vector<1x3x128xbf16>
    %79 = vector.shape_cast %78 : vector<1x3x128xbf16> to vector<3x128xbf16>
    %c2_80 = arith.constant 2 : index
    %c5_81 = arith.constant 5 : index
    %c0_82 = arith.constant 0 : index
    %80 = vector.load %arg9[%c2_80, %c5_81, %c0_82] : memref<4x16x128xbf16, #tpu.memory_space<vmem>>, vector<1x3x128xbf16>
    %81 = vector.shape_cast %80 : vector<1x3x128xbf16> to vector<3x128xbf16>
    %c3_83 = arith.constant 3 : index
    %c5_84 = arith.constant 5 : index
    %c0_85 = arith.constant 0 : index
    %82 = vector.load %arg9[%c3_83, %c5_84, %c0_85] : memref<4x16x128xbf16, #tpu.memory_space<vmem>>, vector<1x3x128xbf16>
    %83 = vector.shape_cast %82 : vector<1x3x128xbf16> to vector<3x128xbf16>
    %84 = tpu.concatenate %53, %55, %57, %59, %61, %63, %65, %67, %69, %71, %73, %75, %77, %79, %81, %83 in 1 : vector<3x128xbf16>, vector<3x128xbf16>, vector<3x128xbf16>, vector<3x128xbf16>, vector<3x128xbf16>, vector<3x128xbf16>, vector<3x128xbf16>, vector<3x128xbf16>, vector<3x128xbf16>, vector<3x128xbf16>, vector<3x128xbf16>, vector<3x128xbf16>, vector<3x128xbf16>, vector<3x128xbf16>, vector<3x128xbf16>, vector<3x128xbf16> -> vector<3x2048xbf16>
    %c0_86 = arith.constant 0 : index
    %c0_87 = arith.constant 0 : index
    %85 = vector.load %arg4[%c0_86, %c0_87] : memref<2048x128xbf16, #tpu.memory_space<vmem>>, vector<2048x128xbf16>
    %cst_88 = arith.constant dense<0.000000e+00> : vector<3x128xf32>
    %86 = tpu.matmul %84, %85, %cst_88 {dimension_numbers = #tpu.dot_dimension_numbers<[1], [0], [0], [1], [0, 0, 1, 1], [], []>} : vector<3x2048xbf16>, vector<2048x128xbf16>, vector<3x128xf32> -> vector<3x128xf32>
    %c0_89 = arith.constant 0 : index
    %c0_90 = arith.constant 0 : index
    %87 = vector.load %arg5[%c0_89, %c0_90] : memref<1x128xf32, #tpu.memory_space<vmem>>, vector<1x128xf32>
    %88 = vector.broadcast %87 : vector<1x128xf32> to vector<3x128xf32>
    %89 = arith.addf %86, %88 : vector<3x128xf32>
    %cst_91 = arith.constant 0.000000e+00 : f32
    %90 = vector.broadcast %cst_91 : f32 to vector<3x128xf32>
    %91 = arith.maximumf %89, %90 : vector<3x128xf32>
    %92 = arith.truncf %91 : vector<3x128xf32> to vector<3x128xbf16>
    %c0_92 = arith.constant 0 : index
    %c0_93 = arith.constant 0 : index
    %c0_94 = arith.constant 0 : index
    %93 = vector.load %arg10[%c0_92, %c0_93, %c0_94] : memref<3x3x128xbf16, #tpu.memory_space<vmem>>, vector<1x3x128xbf16>
    %94 = vector.shape_cast %93 : vector<1x3x128xbf16> to vector<3x128xbf16>
    %95 = vector.shape_cast %92 : vector<3x128xbf16> to vector<1x3x128xbf16>
    tpu.vector_store %arg10[%c0_92, %c0_93, %c0_94], %95 {strides = array<i32>} : memref<3x3x128xbf16, #tpu.memory_space<vmem>>, vector<1x3x128xbf16>,
    %c0_95 = arith.constant 0 : index
    %c4_96 = arith.constant 4 : index
    %c0_97 = arith.constant 0 : index
    %96 = vector.load %arg9[%c0_95, %c4_96, %c0_97] : memref<4x16x128xbf16, #tpu.memory_space<vmem>>, vector<1x3x128xbf16>
    %97 = vector.shape_cast %96 : vector<1x3x128xbf16> to vector<3x128xbf16>
    %c1_98 = arith.constant 1 : index
    %c4_99 = arith.constant 4 : index
    %c0_100 = arith.constant 0 : index
    %98 = vector.load %arg9[%c1_98, %c4_99, %c0_100] : memref<4x16x128xbf16, #tpu.memory_space<vmem>>, vector<1x3x128xbf16>
    %99 = vector.shape_cast %98 : vector<1x3x128xbf16> to vector<3x128xbf16>
    %c0_101 = arith.constant 0 : index
    %c5_102 = arith.constant 5 : index
    %c0_103 = arith.constant 0 : index
    %100 = vector.load %arg9[%c0_101, %c5_102, %c0_103] : memref<4x16x128xbf16, #tpu.memory_space<vmem>>, vector<1x3x128xbf16>
    %101 = vector.shape_cast %100 : vector<1x3x128xbf16> to vector<3x128xbf16>
    %c1_104 = arith.constant 1 : index
    %c5_105 = arith.constant 5 : index
    %c0_106 = arith.constant 0 : index
    %102 = vector.load %arg9[%c1_104, %c5_105, %c0_106] : memref<4x16x128xbf16, #tpu.memory_space<vmem>>, vector<1x3x128xbf16>
    %103 = vector.shape_cast %102 : vector<1x3x128xbf16> to vector<3x128xbf16>
    %c2_107 = arith.constant 2 : index
    %c4_108 = arith.constant 4 : index
    %c0_109 = arith.constant 0 : index
    %104 = vector.load %arg9[%c2_107, %c4_108, %c0_109] : memref<4x16x128xbf16, #tpu.memory_space<vmem>>, vector<1x3x128xbf16>
    %105 = vector.shape_cast %104 : vector<1x3x128xbf16> to vector<3x128xbf16>
    %c3_110 = arith.constant 3 : index
    %c4_111 = arith.constant 4 : index
    %c0_112 = arith.constant 0 : index
    %106 = vector.load %arg9[%c3_110, %c4_111, %c0_112] : memref<4x16x128xbf16, #tpu.memory_space<vmem>>, vector<1x3x128xbf16>
    %107 = vector.shape_cast %106 : vector<1x3x128xbf16> to vector<3x128xbf16>
    %c2_113 = arith.constant 2 : index
    %c5_114 = arith.constant 5 : index
    %c0_115 = arith.constant 0 : index
    %108 = vector.load %arg9[%c2_113, %c5_114, %c0_115] : memref<4x16x128xbf16, #tpu.memory_space<vmem>>, vector<1x3x128xbf16>
    %109 = vector.shape_cast %108 : vector<1x3x128xbf16> to vector<3x128xbf16>
    %c3_116 = arith.constant 3 : index
    %c5_117 = arith.constant 5 : index
    %c0_118 = arith.constant 0 : index
    %110 = vector.load %arg9[%c3_116, %c5_117, %c0_118] : memref<4x16x128xbf16, #tpu.memory_space<vmem>>, vector<1x3x128xbf16>
    %111 = vector.shape_cast %110 : vector<1x3x128xbf16> to vector<3x128xbf16>
    %c0_119 = arith.constant 0 : index
    %c8 = arith.constant 8 : index
    %c0_120 = arith.constant 0 : index
    %112 = vector.load %arg9[%c0_119, %c8, %c0_120] : memref<4x16x128xbf16, #tpu.memory_space<vmem>>, vector<1x3x128xbf16>
    %113 = vector.shape_cast %112 : vector<1x3x128xbf16> to vector<3x128xbf16>
    %c1_121 = arith.constant 1 : index
    %c8_122 = arith.constant 8 : index
    %c0_123 = arith.constant 0 : index
    %114 = vector.load %arg9[%c1_121, %c8_122, %c0_123] : memref<4x16x128xbf16, #tpu.memory_space<vmem>>, vector<1x3x128xbf16>
    %115 = vector.shape_cast %114 : vector<1x3x128xbf16> to vector<3x128xbf16>
    %c0_124 = arith.constant 0 : index
    %c9 = arith.constant 9 : index
    %c0_125 = arith.constant 0 : index
    %116 = vector.load %arg9[%c0_124, %c9, %c0_125] : memref<4x16x128xbf16, #tpu.memory_space<vmem>>, vector<1x3x128xbf16>
    %117 = vector.shape_cast %116 : vector<1x3x128xbf16> to vector<3x128xbf16>
    %c1_126 = arith.constant 1 : index
    %c9_127 = arith.constant 9 : index
    %c0_128 = arith.constant 0 : index
    %118 = vector.load %arg9[%c1_126, %c9_127, %c0_128] : memref<4x16x128xbf16, #tpu.memory_space<vmem>>, vector<1x3x128xbf16>
    %119 = vector.shape_cast %118 : vector<1x3x128xbf16> to vector<3x128xbf16>
    %c2_129 = arith.constant 2 : index
    %c8_130 = arith.constant 8 : index
    %c0_131 = arith.constant 0 : index
    %120 = vector.load %arg9[%c2_129, %c8_130, %c0_131] : memref<4x16x128xbf16, #tpu.memory_space<vmem>>, vector<1x3x128xbf16>
    %121 = vector.shape_cast %120 : vector<1x3x128xbf16> to vector<3x128xbf16>
    %c3_132 = arith.constant 3 : index
    %c8_133 = arith.constant 8 : index
    %c0_134 = arith.constant 0 : index
    %122 = vector.load %arg9[%c3_132, %c8_133, %c0_134] : memref<4x16x128xbf16, #tpu.memory_space<vmem>>, vector<1x3x128xbf16>
    %123 = vector.shape_cast %122 : vector<1x3x128xbf16> to vector<3x128xbf16>
    %c2_135 = arith.constant 2 : index
    %c9_136 = arith.constant 9 : index
    %c0_137 = arith.constant 0 : index
    %124 = vector.load %arg9[%c2_135, %c9_136, %c0_137] : memref<4x16x128xbf16, #tpu.memory_space<vmem>>, vector<1x3x128xbf16>
    %125 = vector.shape_cast %124 : vector<1x3x128xbf16> to vector<3x128xbf16>
    %c3_138 = arith.constant 3 : index
    %c9_139 = arith.constant 9 : index
    %c0_140 = arith.constant 0 : index
    %126 = vector.load %arg9[%c3_138, %c9_139, %c0_140] : memref<4x16x128xbf16, #tpu.memory_space<vmem>>, vector<1x3x128xbf16>
    %127 = vector.shape_cast %126 : vector<1x3x128xbf16> to vector<3x128xbf16>
    %128 = tpu.concatenate %97, %99, %101, %103, %105, %107, %109, %111, %113, %115, %117, %119, %121, %123, %125, %127 in 1 : vector<3x128xbf16>, vector<3x128xbf16>, vector<3x128xbf16>, vector<3x128xbf16>, vector<3x128xbf16>, vector<3x128xbf16>, vector<3x128xbf16>, vector<3x128xbf16>, vector<3x128xbf16>, vector<3x128xbf16>, vector<3x128xbf16>, vector<3x128xbf16>, vector<3x128xbf16>, vector<3x128xbf16>, vector<3x128xbf16>, vector<3x128xbf16> -> vector<3x2048xbf16>
    %c0_141 = arith.constant 0 : index
    %c0_142 = arith.constant 0 : index
    %129 = vector.load %arg4[%c0_141, %c0_142] : memref<2048x128xbf16, #tpu.memory_space<vmem>>, vector<2048x128xbf16>
    %cst_143 = arith.constant dense<0.000000e+00> : vector<3x128xf32>
    %130 = tpu.matmul %128, %129, %cst_143 {dimension_numbers = #tpu.dot_dimension_numbers<[1], [0], [0], [1], [0, 0, 1, 1], [], []>} : vector<3x2048xbf16>, vector<2048x128xbf16>, vector<3x128xf32> -> vector<3x128xf32>
    %c0_144 = arith.constant 0 : index
    %c0_145 = arith.constant 0 : index
    %131 = vector.load %arg5[%c0_144, %c0_145] : memref<1x128xf32, #tpu.memory_space<vmem>>, vector<1x128xf32>
    %132 = vector.broadcast %131 : vector<1x128xf32> to vector<3x128xf32>
    %133 = arith.addf %130, %132 : vector<3x128xf32>
    %cst_146 = arith.constant 0.000000e+00 : f32
    %134 = vector.broadcast %cst_146 : f32 to vector<3x128xf32>
    %135 = arith.maximumf %133, %134 : vector<3x128xf32>
    %136 = arith.truncf %135 : vector<3x128xf32> to vector<3x128xbf16>
    %c1_147 = arith.constant 1 : index
    %c0_148 = arith.constant 0 : index
    %c0_149 = arith.constant 0 : index
    %137 = vector.load %arg10[%c1_147, %c0_148, %c0_149] : memref<3x3x128xbf16, #tpu.memory_space<vmem>>, vector<1x3x128xbf16>
    %138 = vector.shape_cast %137 : vector<1x3x128xbf16> to vector<3x128xbf16>
    %139 = vector.shape_cast %136 : vector<3x128xbf16> to vector<1x3x128xbf16>
    tpu.vector_store %arg10[%c1_147, %c0_148, %c0_149], %139 {strides = array<i32>} : memref<3x3x128xbf16, #tpu.memory_space<vmem>>, vector<1x3x128xbf16>,
    %c0_150 = arith.constant 0 : index
    %c8_151 = arith.constant 8 : index
    %c0_152 = arith.constant 0 : index
    %140 = vector.load %arg9[%c0_150, %c8_151, %c0_152] : memref<4x16x128xbf16, #tpu.memory_space<vmem>>, vector<1x3x128xbf16>
    %141 = vector.shape_cast %140 : vector<1x3x128xbf16> to vector<3x128xbf16>
    %c1_153 = arith.constant 1 : index
    %c8_154 = arith.constant 8 : index
    %c0_155 = arith.constant 0 : index
    %142 = vector.load %arg9[%c1_153, %c8_154, %c0_155] : memref<4x16x128xbf16, #tpu.memory_space<vmem>>, vector<1x3x128xbf16>
    %143 = vector.shape_cast %142 : vector<1x3x128xbf16> to vector<3x128xbf16>
    %c0_156 = arith.constant 0 : index
    %c9_157 = arith.constant 9 : index
    %c0_158 = arith.constant 0 : index
    %144 = vector.load %arg9[%c0_156, %c9_157, %c0_158] : memref<4x16x128xbf16, #tpu.memory_space<vmem>>, vector<1x3x128xbf16>
    %145 = vector.shape_cast %144 : vector<1x3x128xbf16> to vector<3x128xbf16>
    %c1_159 = arith.constant 1 : index
    %c9_160 = arith.constant 9 : index
    %c0_161 = arith.constant 0 : index
    %146 = vector.load %arg9[%c1_159, %c9_160, %c0_161] : memref<4x16x128xbf16, #tpu.memory_space<vmem>>, vector<1x3x128xbf16>
    %147 = vector.shape_cast %146 : vector<1x3x128xbf16> to vector<3x128xbf16>
    %c2_162 = arith.constant 2 : index
    %c8_163 = arith.constant 8 : index
    %c0_164 = arith.constant 0 : index
    %148 = vector.load %arg9[%c2_162, %c8_163, %c0_164] : memref<4x16x128xbf16, #tpu.memory_space<vmem>>, vector<1x3x128xbf16>
    %149 = vector.shape_cast %148 : vector<1x3x128xbf16> to vector<3x128xbf16>
    %c3_165 = arith.constant 3 : index
    %c8_166 = arith.constant 8 : index
    %c0_167 = arith.constant 0 : index
    %150 = vector.load %arg9[%c3_165, %c8_166, %c0_167] : memref<4x16x128xbf16, #tpu.memory_space<vmem>>, vector<1x3x128xbf16>
    %151 = vector.shape_cast %150 : vector<1x3x128xbf16> to vector<3x128xbf16>
    %c2_168 = arith.constant 2 : index
    %c9_169 = arith.constant 9 : index
    %c0_170 = arith.constant 0 : index
    %152 = vector.load %arg9[%c2_168, %c9_169, %c0_170] : memref<4x16x128xbf16, #tpu.memory_space<vmem>>, vector<1x3x128xbf16>
    %153 = vector.shape_cast %152 : vector<1x3x128xbf16> to vector<3x128xbf16>
    %c3_171 = arith.constant 3 : index
    %c9_172 = arith.constant 9 : index
    %c0_173 = arith.constant 0 : index
    %154 = vector.load %arg9[%c3_171, %c9_172, %c0_173] : memref<4x16x128xbf16, #tpu.memory_space<vmem>>, vector<1x3x128xbf16>
    %155 = vector.shape_cast %154 : vector<1x3x128xbf16> to vector<3x128xbf16>
    %c0_174 = arith.constant 0 : index
    %c12 = arith.constant 12 : index
    %c0_175 = arith.constant 0 : index
    %156 = vector.load %arg9[%c0_174, %c12, %c0_175] : memref<4x16x128xbf16, #tpu.memory_space<vmem>>, vector<1x3x128xbf16>
    %157 = vector.shape_cast %156 : vector<1x3x128xbf16> to vector<3x128xbf16>
    %c1_176 = arith.constant 1 : index
    %c12_177 = arith.constant 12 : index
    %c0_178 = arith.constant 0 : index
    %158 = vector.load %arg9[%c1_176, %c12_177, %c0_178] : memref<4x16x128xbf16, #tpu.memory_space<vmem>>, vector<1x3x128xbf16>
    %159 = vector.shape_cast %158 : vector<1x3x128xbf16> to vector<3x128xbf16>
    %c0_179 = arith.constant 0 : index
    %c13 = arith.constant 13 : index
    %c0_180 = arith.constant 0 : index
    %160 = vector.load %arg9[%c0_179, %c13, %c0_180] : memref<4x16x128xbf16, #tpu.memory_space<vmem>>, vector<1x3x128xbf16>
    %161 = vector.shape_cast %160 : vector<1x3x128xbf16> to vector<3x128xbf16>
    %c1_181 = arith.constant 1 : index
    %c13_182 = arith.constant 13 : index
    %c0_183 = arith.constant 0 : index
    %162 = vector.load %arg9[%c1_181, %c13_182, %c0_183] : memref<4x16x128xbf16, #tpu.memory_space<vmem>>, vector<1x3x128xbf16>
    %163 = vector.shape_cast %162 : vector<1x3x128xbf16> to vector<3x128xbf16>
    %c2_184 = arith.constant 2 : index
    %c12_185 = arith.constant 12 : index
    %c0_186 = arith.constant 0 : index
    %164 = vector.load %arg9[%c2_184, %c12_185, %c0_186] : memref<4x16x128xbf16, #tpu.memory_space<vmem>>, vector<1x3x128xbf16>
    %165 = vector.shape_cast %164 : vector<1x3x128xbf16> to vector<3x128xbf16>
    %c3_187 = arith.constant 3 : index
    %c12_188 = arith.constant 12 : index
    %c0_189 = arith.constant 0 : index
    %166 = vector.load %arg9[%c3_187, %c12_188, %c0_189] : memref<4x16x128xbf16, #tpu.memory_space<vmem>>, vector<1x3x128xbf16>
    %167 = vector.shape_cast %166 : vector<1x3x128xbf16> to vector<3x128xbf16>
    %c2_190 = arith.constant 2 : index
    %c13_191 = arith.constant 13 : index
    %c0_192 = arith.constant 0 : index
    %168 = vector.load %arg9[%c2_190, %c13_191, %c0_192] : memref<4x16x128xbf16, #tpu.memory_space<vmem>>, vector<1x3x128xbf16>
    %169 = vector.shape_cast %168 : vector<1x3x128xbf16> to vector<3x128xbf16>
    %c3_193 = arith.constant 3 : index
    %c13_194 = arith.constant 13 : index
    %c0_195 = arith.constant 0 : index
    %170 = vector.load %arg9[%c3_193, %c13_194, %c0_195] : memref<4x16x128xbf16, #tpu.memory_space<vmem>>, vector<1x3x128xbf16>
    %171 = vector.shape_cast %170 : vector<1x3x128xbf16> to vector<3x128xbf16>
    %172 = tpu.concatenate %141, %143, %145, %147, %149, %151, %153, %155, %157, %159, %161, %163, %165, %167, %169, %171 in 1 : vector<3x128xbf16>, vector<3x128xbf16>, vector<3x128xbf16>, vector<3x128xbf16>, vector<3x128xbf16>, vector<3x128xbf16>, vector<3x128xbf16>, vector<3x128xbf16>, vector<3x128xbf16>, vector<3x128xbf16>, vector<3x128xbf16>, vector<3x128xbf16>, vector<3x128xbf16>, vector<3x128xbf16>, vector<3x128xbf16>, vector<3x128xbf16> -> vector<3x2048xbf16>
    %c0_196 = arith.constant 0 : index
    %c0_197 = arith.constant 0 : index
    %173 = vector.load %arg4[%c0_196, %c0_197] : memref<2048x128xbf16, #tpu.memory_space<vmem>>, vector<2048x128xbf16>
    %cst_198 = arith.constant dense<0.000000e+00> : vector<3x128xf32>
    %174 = tpu.matmul %172, %173, %cst_198 {dimension_numbers = #tpu.dot_dimension_numbers<[1], [0], [0], [1], [0, 0, 1, 1], [], []>} : vector<3x2048xbf16>, vector<2048x128xbf16>, vector<3x128xf32> -> vector<3x128xf32>
    %c0_199 = arith.constant 0 : index
    %c0_200 = arith.constant 0 : index
    %175 = vector.load %arg5[%c0_199, %c0_200] : memref<1x128xf32, #tpu.memory_space<vmem>>, vector<1x128xf32>
    %176 = vector.broadcast %175 : vector<1x128xf32> to vector<3x128xf32>
    %177 = arith.addf %174, %176 : vector<3x128xf32>
    %cst_201 = arith.constant 0.000000e+00 : f32
    %178 = vector.broadcast %cst_201 : f32 to vector<3x128xf32>
    %179 = arith.maximumf %177, %178 : vector<3x128xf32>
    %180 = arith.truncf %179 : vector<3x128xf32> to vector<3x128xbf16>
    %c2_202 = arith.constant 2 : index
    %c0_203 = arith.constant 0 : index
    %c0_204 = arith.constant 0 : index
    %181 = vector.load %arg10[%c2_202, %c0_203, %c0_204] : memref<3x3x128xbf16, #tpu.memory_space<vmem>>, vector<1x3x128xbf16>
    %182 = vector.shape_cast %181 : vector<1x3x128xbf16> to vector<3x128xbf16>
    %183 = vector.shape_cast %180 : vector<3x128xbf16> to vector<1x3x128xbf16>
    tpu.vector_store %arg10[%c2_202, %c0_203, %c0_204], %183 {strides = array<i32>} : memref<3x3x128xbf16, #tpu.memory_space<vmem>>, vector<1x3x128xbf16>,
    %c0_205 = arith.constant 0 : index
    %c0_206 = arith.constant 0 : index
    %c0_207 = arith.constant 0 : index
    %184 = vector.load %arg10[%c0_205, %c0_206, %c0_207] : memref<3x3x128xbf16, #tpu.memory_space<vmem>>, vector<1x1x128xbf16>
    %185 = vector.shape_cast %184 : vector<1x1x128xbf16> to vector<1x128xbf16>
    %c0_208 = arith.constant 0 : index
    %c1_209 = arith.constant 1 : index
    %c0_210 = arith.constant 0 : index
    %186 = vector.load %arg10[%c0_208, %c1_209, %c0_210] : memref<3x3x128xbf16, #tpu.memory_space<vmem>>, vector<1x1x128xbf16>
    %187 = vector.shape_cast %186 : vector<1x1x128xbf16> to vector<1x128xbf16>
    %c0_211 = arith.constant 0 : index
    %c2_212 = arith.constant 2 : index
    %c0_213 = arith.constant 0 : index
    %188 = vector.load %arg10[%c0_211, %c2_212, %c0_213] : memref<3x3x128xbf16, #tpu.memory_space<vmem>>, vector<1x1x128xbf16>
    %189 = vector.shape_cast %188 : vector<1x1x128xbf16> to vector<1x128xbf16>
    %c1_214 = arith.constant 1 : index
    %c0_215 = arith.constant 0 : index
    %c0_216 = arith.constant 0 : index
    %190 = vector.load %arg10[%c1_214, %c0_215, %c0_216] : memref<3x3x128xbf16, #tpu.memory_space<vmem>>, vector<1x1x128xbf16>
    %191 = vector.shape_cast %190 : vector<1x1x128xbf16> to vector<1x128xbf16>
    %c1_217 = arith.constant 1 : index
    %c1_218 = arith.constant 1 : index
    %c0_219 = arith.constant 0 : index
    %192 = vector.load %arg10[%c1_217, %c1_218, %c0_219] : memref<3x3x128xbf16, #tpu.memory_space<vmem>>, vector<1x1x128xbf16>
    %193 = vector.shape_cast %192 : vector<1x1x128xbf16> to vector<1x128xbf16>
    %c1_220 = arith.constant 1 : index
    %c2_221 = arith.constant 2 : index
    %c0_222 = arith.constant 0 : index
    %194 = vector.load %arg10[%c1_220, %c2_221, %c0_222] : memref<3x3x128xbf16, #tpu.memory_space<vmem>>, vector<1x1x128xbf16>
    %195 = vector.shape_cast %194 : vector<1x1x128xbf16> to vector<1x128xbf16>
    %c2_223 = arith.constant 2 : index
    %c0_224 = arith.constant 0 : index
    %c0_225 = arith.constant 0 : index
    %196 = vector.load %arg10[%c2_223, %c0_224, %c0_225] : memref<3x3x128xbf16, #tpu.memory_space<vmem>>, vector<1x1x128xbf16>
    %197 = vector.shape_cast %196 : vector<1x1x128xbf16> to vector<1x128xbf16>
    %c2_226 = arith.constant 2 : index
    %c1_227 = arith.constant 1 : index
    %c0_228 = arith.constant 0 : index
    %198 = vector.load %arg10[%c2_226, %c1_227, %c0_228] : memref<3x3x128xbf16, #tpu.memory_space<vmem>>, vector<1x1x128xbf16>
    %199 = vector.shape_cast %198 : vector<1x1x128xbf16> to vector<1x128xbf16>
    %c2_229 = arith.constant 2 : index
    %c2_230 = arith.constant 2 : index
    %c0_231 = arith.constant 0 : index
    %200 = vector.load %arg10[%c2_229, %c2_230, %c0_231] : memref<3x3x128xbf16, #tpu.memory_space<vmem>>, vector<1x1x128xbf16>
    %201 = vector.shape_cast %200 : vector<1x1x128xbf16> to vector<1x128xbf16>
    %202 = tpu.concatenate %185, %187, %189, %191, %193, %195, %197, %199, %201 in 1 : vector<1x128xbf16>, vector<1x128xbf16>, vector<1x128xbf16>, vector<1x128xbf16>, vector<1x128xbf16>, vector<1x128xbf16>, vector<1x128xbf16>, vector<1x128xbf16>, vector<1x128xbf16> -> vector<1x1152xbf16>
    %c0_232 = arith.constant 0 : index
    %c0_233 = arith.constant 0 : index
    %203 = vector.load %arg6[%c0_232, %c0_233] : memref<1152x128xbf16, #tpu.memory_space<vmem>>, vector<1152x128xbf16>
    %cst_234 = arith.constant dense<0.000000e+00> : vector<1x128xf32>
    %204 = tpu.matmul %202, %203, %cst_234 {dimension_numbers = #tpu.dot_dimension_numbers<[1], [0], [0], [1], [0, 0, 1, 1], [], []>} : vector<1x1152xbf16>, vector<1152x128xbf16>, vector<1x128xf32> -> vector<1x128xf32>
    %c0_235 = arith.constant 0 : index
    %c0_236 = arith.constant 0 : index
    %205 = vector.load %arg7[%c0_235, %c0_236] : memref<1x128xf32, #tpu.memory_space<vmem>>, vector<1x128xf32>
    %206 = arith.addf %204, %205 : vector<1x128xf32>
    %cst_237 = arith.constant 0.000000e+00 : f32
    %207 = vector.broadcast %cst_237 : f32 to vector<1x128xf32>
    %208 = arith.maximumf %206, %207 : vector<1x128xf32>
    %c0_238 = arith.constant 0 : index
    %c0_239 = arith.constant 0 : index
    %c0_240 = arith.constant 0 : index
    %c0_241 = arith.constant 0 : index
    %209 = vector.load %arg8[%c0_238, %c0_239, %c0_240, %c0_241] : memref<1x1x1x128xf32, #tpu.memory_space<vmem>>, vector<1x1x1x128xf32>
    %210 = vector.shape_cast %209 : vector<1x1x1x128xf32> to vector<1x128xf32>
    %211 = vector.shape_cast %208 : vector<1x128xf32> to vector<1x1x1x128xf32>
    tpu.vector_store %arg8[%c0_238, %c0_239, %c0_240, %c0_241], %211 {strides = array<i32>} : memref<1x1x1x128xf32, #tpu.memory_space<vmem>>, vector<1x1x1x128xf32>,
    return
  }
  func.func @transform_0(%arg0: i32) -> (i32, i32, i32) {
    %c0_i32 = arith.constant 0 : i32
    %c0_i32_0 = arith.constant 0 : i32
    %c0_i32_1 = arith.constant 0 : i32
    return %arg0, %c0_i32, %c0_i32_0 : i32, i32, i32
  }
  func.func @transform_1(%arg0: i32) -> (i32, i32) {
    %c0_i32 = arith.constant 0 : i32
    %c0_i32_0 = arith.constant 0 : i32
    %c0_i32_1 = arith.constant 0 : i32
    return %c0_i32, %c0_i32_0 : i32, i32
  }
  func.func @transform_2(%arg0: i32) -> (i32, i32) {
    %c0_i32 = arith.constant 0 : i32
    %c0_i32_0 = arith.constant 0 : i32
    %c0_i32_1 = arith.constant 0 : i32
    return %c0_i32, %c0_i32_0 : i32, i32
  }
  func.func @transform_3(%arg0: i32) -> (i32, i32) {
    %c0_i32 = arith.constant 0 : i32
    %c0_i32_0 = arith.constant 0 : i32
    %c0_i32_1 = arith.constant 0 : i32
    return %c0_i32, %c0_i32_0 : i32, i32
  }
  func.func @transform_4(%arg0: i32) -> (i32, i32) {
    %c0_i32 = arith.constant 0 : i32
    %c0_i32_0 = arith.constant 0 : i32
    %c0_i32_1 = arith.constant 0 : i32
    return %c0_i32, %c0_i32_0 : i32, i32
  }
  func.func @transform_5(%arg0: i32) -> (i32, i32) {
    %c0_i32 = arith.constant 0 : i32
    %c0_i32_0 = arith.constant 0 : i32
    %c0_i32_1 = arith.constant 0 : i32
    return %c0_i32, %c0_i32_0 : i32, i32
  }
  func.func @transform_6(%arg0: i32) -> (i32, i32) {
    %c0_i32 = arith.constant 0 : i32
    %c0_i32_0 = arith.constant 0 : i32
    %c0_i32_1 = arith.constant 0 : i32
    return %c0_i32, %c0_i32_0 : i32, i32
  }
  func.func @transform_7(%arg0: i32) -> (i32, i32, i32, i32) {
    %c0_i32 = arith.constant 0 : i32
    %c0_i32_0 = arith.constant 0 : i32
    %c0_i32_1 = arith.constant 0 : i32
    %c0_i32_2 = arith.constant 0 : i32
    return %arg0, %c0_i32, %c0_i32_0, %c0_i32_1 : i32, i32, i32, i32
  }
}

</mosaic_0001>

<llo_original>
// kernel: atari_base_forward.1
$region0: #{atari_base_forward.1}
  #allocation0 [shape = 'u32[]', space=smem, size = 0x4, offset = 0x4, fixed_abs, tag = 'smem constant byte address 0x4 - core index']
  #allocation1 [shape = 'u32[72,128]{1,0:T(1,128)}', space=vmem, size = 0x9000, scoped, tag = 'internal scratch']
  #allocation2 [shape = 'bf16[4,16,128]{2,1,0:T(8,128)(2,1)}', space=vmem, size = 0x4000, scoped, tag = 'scratch operand']
  #allocation3 [shape = 'bf16[3,3,128]{2,1,0:T(4,128)(2,1)}', space=vmem, size = 0xc00, scoped, tag = 'scratch operand']
  %s0 = inlined_call_operand.vmem [shape: bf16[2,64,256], index: 0, kind: input, shape index: {}]
  %s1 = inlined_call_operand.vmem [shape: bf16[256,128], index: 1, kind: input, shape index: {}]
  %s2 = inlined_call_operand.vmem [shape: f32[1,128], index: 2, kind: input, shape index: {}]
  %s3 = inlined_call_operand.vmem [shape: bf16[2048,128], index: 3, kind: input, shape index: {}]
  %s4 = inlined_call_operand.vmem [shape: f32[1,128], index: 4, kind: input, shape index: {}]
  %s5 = inlined_call_operand.vmem [shape: bf16[1152,128], index: 5, kind: input, shape index: {}]
  %s6 = inlined_call_operand.vmem [shape: f32[1,128], index: 6, kind: input, shape index: {}]
  %s7 = inlined_call_operand.hbm [shape: f32[2,1,1,128], index: 7, kind: output, shape index: {}]
  %s8 = sld [smem:[#allocation0]]
  $region61: #{atari_base_forward.1} parent=0
    _
  %s10 = ssub.s32 1, %s8
  %s11 = scalar_select 0, %s10, %s8
  $region1: #{atari_base_forward.1} parent=0
    #allocation4 [shape = 'u8[1024]{0}', space=vmem, size = 0x400, scoped, tag = 'output window, operand 0']
    #allocation5 [shape = 's32[2]{0}', space=sflag, size = 0x8, scoped, tag = 'scoped memory for atari_base_forward.1']
    %12 = vsyncpa [#allocation5], 0
    %s13 = scalar_lea.sflag [#allocation5], 1
    %14 = vsyncpa %s13, 0
    loop: start=0, step=1, limit=4
    $region2: #{atari_base_forward.1} parent=1 // loop_pre_header
      _
    $region3: #{atari_base_forward.1} parent=1 // loop_header
      %s16 = sphi 0, %s20
      %p17 = scmp.ge.s32.totalorder %s16, 4
      %s26 = sphi 0, %s28
      %s29 = sphi 0, %s26
      %s30 = sphi 0, %s29
      %s46 = sphi 0, %s30
      %s50 = sphi 0, %s50
      %s52 = sphi 0, %s50
      %s53 = sphi 0, %s52
      %s67 = sphi 0, %s53
      %s71 = sphi 0, %s71
      %s73 = sphi 0, %s71
      %s74 = sphi 0, %s73
      %s88 = sphi 0, %s74
      %s92 = sphi 0, %s92
      %s94 = sphi 0, %s92
      %s95 = sphi 0, %s94
      %s109 = sphi 0, %s95
      %s113 = sphi 0, %s113
      %s115 = sphi 0, %s113
      %s116 = sphi 0, %s115
      %s130 = sphi 0, %s116
      %s134 = sphi 0, %s134
      %s136 = sphi 0, %s134
      %s137 = sphi 0, %s136
      %s151 = sphi 0, %s137
      %s155 = sphi 0, %s155
      %s157 = sphi 0, %s155
      %s158 = sphi 0, %s157
      %s172 = sphi 0, %s158
      %s178 = sphi 0, %s180
      %s181 = sphi 0, %s178
      %s182 = sphi 0, %s181
      %s198 = sphi 0, %s182
    $region4: #{atari_base_forward.1} parent=1 // loop_header_branch
      %19 = sbr.rel (%p17) target = $region8
    $region5: #{atari_base_forward.1} parent=1 // loop_body
      %s21 = ssub.s32 %s16, 1
      %s22 = ssub.s32 %s16, 2
      %s23 = sadd.s32 %s16, 1
      %s24 = ssub.s32 %s16, %s23
      %p25 = scmp.eq.s32.totalorder %s24, 0
      %s27 = sadd.s32 %s26, 1
      %s28 = scalar_select %p25, %s26, %s27
      %p31 = pneg %p25
      %p32 = scmp.eq.s32.totalorder %s16, 1
      %p33 = por %p31, %p32
      %p34 = scmp.ne.s32.totalorder %s26, %s29
      %p35 = scmp.eq.s32.totalorder %s16, 0
      %p36 = por %p34, %p35
      %p37 = scmp.ne.s32.totalorder %s26, %s29
      %p38 = scmp.eq.s32.totalorder %s21, 1
      %p39 = por %p37, %p38
      %p40 = scmp.ne.s32.totalorder %s29, %s30
      %p41 = scmp.eq.s32.totalorder %s21, 0
      %p42 = por %p40, %p41
      %p43 = scmp.ne.s32.totalorder %s29, %s30
      %p44 = scmp.eq.s32.totalorder %s22, 1
      %p45 = por %p43, %p44
      %p47 = scmp.ne.s32.totalorder %s30, %s46
      %p48 = scmp.eq.s32.totalorder %s22, 0
      %p49 = por %p47, %p48
      %s51 = sadd.s32 %s50, 1
      %p54 = scmp.eq.s32.totalorder %s16, 1
      %p55 = scmp.ne.s32.totalorder %s50, %s52
      %p56 = scmp.eq.s32.totalorder %s16, 0
      %p57 = por %p55, %p56
      %p58 = scmp.ne.s32.totalorder %s50, %s52
      %p59 = scmp.eq.s32.totalorder %s21, 1
      %p60 = por %p58, %p59
      %p61 = scmp.ne.s32.totalorder %s52, %s53
      %p62 = scmp.eq.s32.totalorder %s21, 0
      %p63 = por %p61, %p62
      %p64 = scmp.ne.s32.totalorder %s52, %s53
      %p65 = scmp.eq.s32.totalorder %s22, 1
      %p66 = por %p64, %p65
      %p68 = scmp.ne.s32.totalorder %s53, %s67
      %p69 = scmp.eq.s32.totalorder %s22, 0
      %p70 = por %p68, %p69
      %s72 = sadd.s32 %s71, 1
      %p75 = scmp.eq.s32.totalorder %s16, 1
      %p76 = scmp.ne.s32.totalorder %s71, %s73
      %p77 = scmp.eq.s32.totalorder %s16, 0
      %p78 = por %p76, %p77
      %p79 = scmp.ne.s32.totalorder %s71, %s73
      %p80 = scmp.eq.s32.totalorder %s21, 1
      %p81 = por %p79, %p80
      %p82 = scmp.ne.s32.totalorder %s73, %s74
      %p83 = scmp.eq.s32.totalorder %s21, 0
      %p84 = por %p82, %p83
      %p85 = scmp.ne.s32.totalorder %s73, %s74
      %p86 = scmp.eq.s32.totalorder %s22, 1
      %p87 = por %p85, %p86
      %p89 = scmp.ne.s32.totalorder %s74, %s88
      %p90 = scmp.eq.s32.totalorder %s22, 0
      %p91 = por %p89, %p90
      %s93 = sadd.s32 %s92, 1
      %p96 = scmp.eq.s32.totalorder %s16, 1
      %p97 = scmp.ne.s32.totalorder %s92, %s94
      %p98 = scmp.eq.s32.totalorder %s16, 0
      %p99 = por %p97, %p98
      %p100 = scmp.ne.s32.totalorder %s92, %s94
      %p101 = scmp.eq.s32.totalorder %s21, 1
      %p102 = por %p100, %p101
      %p103 = scmp.ne.s32.totalorder %s94, %s95
      %p104 = scmp.eq.s32.totalorder %s21, 0
      %p105 = por %p103, %p104
      %p106 = scmp.ne.s32.totalorder %s94, %s95
      %p107 = scmp.eq.s32.totalorder %s22, 1
      %p108 = por %p106, %p107
      %p110 = scmp.ne.s32.totalorder %s95, %s109
      %p111 = scmp.eq.s32.totalorder %s22, 0
      %p112 = por %p110, %p111
      %s114 = sadd.s32 %s113, 1
      %p117 = scmp.eq.s32.totalorder %s16, 1
      %p118 = scmp.ne.s32.totalorder %s113, %s115
      %p119 = scmp.eq.s32.totalorder %s16, 0
      %p120 = por %p118, %p119
      %p121 = scmp.ne.s32.totalorder %s113, %s115
      %p122 = scmp.eq.s32.totalorder %s21, 1
      %p123 = por %p121, %p122
      %p124 = scmp.ne.s32.totalorder %s115, %s116
      %p125 = scmp.eq.s32.totalorder %s21, 0
      %p126 = por %p124, %p125
      %p127 = scmp.ne.s32.totalorder %s115, %s116
      %p128 = scmp.eq.s32.totalorder %s22, 1
      %p129 = por %p127, %p128
      %p131 = scmp.ne.s32.totalorder %s116, %s130
      %p132 = scmp.eq.s32.totalorder %s22, 0
      %p133 = por %p131, %p132
      %s135 = sadd.s32 %s134, 1
      %p138 = scmp.eq.s32.totalorder %s16, 1
      %p139 = scmp.ne.s32.totalorder %s134, %s136
      %p140 = scmp.eq.s32.totalorder %s16, 0
      %p141 = por %p139, %p140
      %p142 = scmp.ne.s32.totalorder %s134, %s136
      %p143 = scmp.eq.s32.totalorder %s21, 1
      %p144 = por %p142, %p143
      %p145 = scmp.ne.s32.totalorder %s136, %s137
      %p146 = scmp.eq.s32.totalorder %s21, 0
      %p147 = por %p145, %p146
      %p148 = scmp.ne.s32.totalorder %s136, %s137
      %p149 = scmp.eq.s32.totalorder %s22, 1
      %p150 = por %p148, %p149
      %p152 = scmp.ne.s32.totalorder %s137, %s151
      %p153 = scmp.eq.s32.totalorder %s22, 0
      %p154 = por %p152, %p153
      %s156 = sadd.s32 %s155, 1
      %p159 = scmp.eq.s32.totalorder %s16, 1
      %p160 = scmp.ne.s32.totalorder %s155, %s157
      %p161 = scmp.eq.s32.totalorder %s16, 0
      %p162 = por %p160, %p161
      %p163 = scmp.ne.s32.totalorder %s155, %s157
      %p164 = scmp.eq.s32.totalorder %s21, 1
      %p165 = por %p163, %p164
      %p166 = scmp.ne.s32.totalorder %s157, %s158
      %p167 = scmp.eq.s32.totalorder %s21, 0
      %p168 = por %p166, %p167
      %p169 = scmp.ne.s32.totalorder %s157, %s158
      %p170 = scmp.eq.s32.totalorder %s22, 1
      %p171 = por %p169, %p170
      %p173 = scmp.ne.s32.totalorder %s158, %s172
      %p174 = scmp.eq.s32.totalorder %s22, 0
      %p175 = por %p173, %p174
      %s176 = ssub.s32 %s16, %s23
      %p177 = scmp.eq.s32.totalorder %s176, 0
      %s179 = sadd.s32 %s178, 1
      %s180 = scalar_select %p177, %s178, %s179
      %p183 = pneg %p177
      %p184 = scmp.eq.s32.totalorder %s16, 1
      %p185 = por %p183, %p184
      %p186 = scmp.ne.s32.totalorder %s178, %s181
      %p187 = scmp.eq.s32.totalorder %s16, 0
      %p188 = por %p186, %p187
      %p189 = scmp.ne.s32.totalorder %s178, %s181
      %p190 = scmp.eq.s32.totalorder %s21, 1
      %p191 = por %p189, %p190
      %p192 = scmp.ne.s32.totalorder %s181, %s182
      %p193 = scmp.eq.s32.totalorder %s21, 0
      %p194 = por %p192, %p193
      %p195 = scmp.ne.s32.totalorder %s181, %s182
      %p196 = scmp.eq.s32.totalorder %s22, 1
      %p197 = por %p195, %p196
      %p199 = scmp.ne.s32.totalorder %s182, %s198
      %p200 = scmp.eq.s32.totalorder %s22, 0
      %p201 = por %p199, %p200
      %p202 = scmp.le.s32.totalorder 1, %s16
      %p203 = scmp.lt.s32.totalorder %s16, 3
      %p204 = pnand %p202, %p203
      %p205 = pneg %p204
      // Predicated region
      $region9: #{atari_base_forward.1} parent=5 // pred_check
        _
      $region10: #{atari_base_forward.1} parent=5 // pred_check_branch
        %207 = sbr.rel (%p204) target = $region12
      $region11: #{atari_base_forward.1} parent=5 // pred_region
        %s208 = ssub.s32 %s16, 1
        // Predicated region
        $region13: #{atari_base_forward.1} parent=11 // pred_check
          %p209 = pneg %p63
        $region14: #{atari_base_forward.1} parent=11 // pred_check_branch
          %211 = sbr.rel (%p209) target = $region16
        $region15: #{atari_base_forward.1} parent=11 // pred_region
          _
        $region16: #{atari_base_forward.1} parent=11 // pred_fallthru
          _
        // Predicated region
        $region17: #{atari_base_forward.1} parent=11 // pred_check
          %p212 = pneg %p84
        $region18: #{atari_base_forward.1} parent=11 // pred_check_branch
          %214 = sbr.rel (%p212) target = $region20
        $region19: #{atari_base_forward.1} parent=11 // pred_region
          _
        $region20: #{atari_base_forward.1} parent=11 // pred_fallthru
          _
        // Predicated region
        $region21: #{atari_base_forward.1} parent=11 // pred_check
          %p215 = pneg %p105
        $region22: #{atari_base_forward.1} parent=11 // pred_check_branch
          %217 = sbr.rel (%p215) target = $region24
        $region23: #{atari_base_forward.1} parent=11 // pred_region
          _
        $region24: #{atari_base_forward.1} parent=11 // pred_fallthru
          _
        // Predicated region
        $region25: #{atari_base_forward.1} parent=11 // pred_check
          %p218 = pneg %p126
        $region26: #{atari_base_forward.1} parent=11 // pred_check_branch
          %220 = sbr.rel (%p218) target = $region28
        $region27: #{atari_base_forward.1} parent=11 // pred_region
          _
        $region28: #{atari_base_forward.1} parent=11 // pred_fallthru
          _
        // Predicated region
        $region29: #{atari_base_forward.1} parent=11 // pred_check
          %p221 = pneg %p147
        $region30: #{atari_base_forward.1} parent=11 // pred_check_branch
          %223 = sbr.rel (%p221) target = $region32
        $region31: #{atari_base_forward.1} parent=11 // pred_region
          _
        $region32: #{atari_base_forward.1} parent=11 // pred_fallthru
          _
        // Predicated region
        $region33: #{atari_base_forward.1} parent=11 // pred_check
          %p224 = pneg %p168
        $region34: #{atari_base_forward.1} parent=11 // pred_check_branch
          %226 = sbr.rel (%p224) target = $region36
        $region35: #{atari_base_forward.1} parent=11 // pred_region
          _
        $region36: #{atari_base_forward.1} parent=11 // pred_fallthru
          _
      $region12: #{atari_base_forward.1} parent=5 // pred_fallthru
        _
      %p227 = scmp.lt.s32.totalorder %s16, 2
      // Predicated region
      $region37: #{atari_base_forward.1} parent=5 // pred_check
        %p228 = pneg %p227
      $region38: #{atari_base_forward.1} parent=5 // pred_check_branch
        %230 = sbr.rel (%p228) target = $region40
      $region39: #{atari_base_forward.1} parent=5 // pred_region
        // Predicated region
        $region41: #{atari_base_forward.1} parent=39 // pred_check
          %p231 = pneg %p36
        $region42: #{atari_base_forward.1} parent=39 // pred_check_branch
          %233 = sbr.rel (%p231) target = $region44
        $region43: #{atari_base_forward.1} parent=39 // pred_region
          %p234 = scmp.lt.s32.totalorder %s16, 1
          %s235 = scalar_select %p234, %s16, 1
          %s236 = smul.addr %s235, 16
          %s237 = smul.addr %s236, 4
          %s238 = scalar_lea.vmem %s0, %s237
        $region44: #{atari_base_forward.1} parent=39 // pred_fallthru
          _
      $region40: #{atari_base_forward.1} parent=5 // pred_fallthru
        _
      %p239 = scmp.le.s32.totalorder 1, %s16
      %p240 = scmp.lt.s32.totalorder %s16, 3
      %p241 = pnand %p239, %p240
      %p242 = pneg %p241
      // Predicated region
      $region45: #{atari_base_forward.1} parent=5 // pred_check
        _
      $region46: #{atari_base_forward.1} parent=5 // pred_check_branch
        %244 = sbr.rel (%p241) target = $region48
      $region47: #{atari_base_forward.1} parent=5 // pred_region
        %s245 = ssub.s32 %s16, 1
        %p246 = scmp.lt.s32.totalorder %s21, 1
        %s247 = scalar_select %p246, %s21, 1
        %s248 = smul.addr %s247, 16
        %s249 = smul.addr %s248, 4
        %s250 = scalar_lea.vmem %s0, %s249
        %p251 = pneg %p42
        %p252 = pneg %p39
        %p253 = pneg %p63
        %p254 = pneg %p60
        %p255 = pneg %p84
        %p256 = pneg %p81
        %p257 = pneg %p105
        %p258 = pneg %p102
        %p259 = pneg %p126
        %p260 = pneg %p123
        %p261 = pneg %p147
        %p262 = pneg %p144
        %p263 = pneg %p168
        %p264 = pneg %p165
        %p265 = pneg %p194
        %p266 = pneg %p191
        %s267 = sand.u32 %s181, 1
        %s268 = scalar_lea.sflag [#allocation5], %s267
        %s269 = sand.u32 %s181, 1
        %s270 = scalar_lea.vmem [#allocation4], %s269
        %p271 = scmp.lt.s32.totalorder %s21, 1
        %s272 = scalar_select %p271, %s21, 1
        %s273 = smul.addr %s272, 16
        %s274 = smul.addr %s273, 4
        %s275 = scalar_lea.vmem %s0, %s274
        %v276 = vld [vmem:[%s275] sm:$0xff]
        %v277 = vld [vmem:[%s275 + $0x8] sm:$0xff]
        %v278 = vld [vmem:[%s1] sm:$0xf]
        %v279 = vld [vmem:[%s1 + $0x4] sm:$0xf]
        %v280 = vld [vmem:[%s1 + $0x8] sm:$0xf]
        %v281 = vld [vmem:[%s1 + $0xc] sm:$0xf]
        %v282 = vld [vmem:[%s1 + $0x10] sm:$0xf]
        %v283 = vld [vmem:[%s1 + $0x14] sm:$0xf]
        %v284 = vld [vmem:[%s1 + $0x18] sm:$0xf]
        %v285 = vld [vmem:[%s1 + $0x1c] sm:$0xf]
        %v286 = vld [vmem:[%s1 + $0x20] sm:$0xf]
        %v287 = vld [vmem:[%s1 + $0x24] sm:$0xf]
        %v288 = vld [vmem:[%s1 + $0x28] sm:$0xf]
        %v289 = vld [vmem:[%s1 + $0x2c] sm:$0xf]
        %v290 = vld [vmem:[%s1 + $0x30] sm:$0xf]
        %v291 = vld [vmem:[%s1 + $0x34] sm:$0xf]
        %v292 = vld [vmem:[%s1 + $0x38] sm:$0xf]
        %v293 = vld [vmem:[%s1 + $0x3c] sm:$0xf]
        %v294 = vld [vmem:[%s1 + $0x40] sm:$0xf]
        %v295 = vld [vmem:[%s1 + $0x44] sm:$0xf]
        %v296 = vld [vmem:[%s1 + $0x48] sm:$0xf]
        %v297 = vld [vmem:[%s1 + $0x4c] sm:$0xf]
        %v298 = vld [vmem:[%s1 + $0x50] sm:$0xf]
        %v299 = vld [vmem:[%s1 + $0x54] sm:$0xf]
        %v300 = vld [vmem:[%s1 + $0x58] sm:$0xf]
        %v301 = vld [vmem:[%s1 + $0x5c] sm:$0xf]
        %v302 = vld [vmem:[%s1 + $0x60] sm:$0xf]
        %v303 = vld [vmem:[%s1 + $0x64] sm:$0xf]
        %v304 = vld [vmem:[%s1 + $0x68] sm:$0xf]
        %v305 = vld [vmem:[%s1 + $0x6c] sm:$0xf]
        %v306 = vld [vmem:[%s1 + $0x70] sm:$0xf]
        %v307 = vld [vmem:[%s1 + $0x74] sm:$0xf]
        %v308 = vld [vmem:[%s1 + $0x78] sm:$0xf]
        %v309 = vld [vmem:[%s1 + $0x7c] sm:$0xf]
        %v310 = vld [vmem:[%s2] sm:$0x1]
        %v312 = vperm.slane %v310, 0
        %v316 = vunpack.c.l.b16 %v276
        %v317 = vunpack.c.h.b16 %v276
        %v318 = vunpack.c.l.b16 %v277
        %v319 = vunpack.c.h.b16 %v277
        %v320 = vpack.c.b16 %v318, %v316
        %v321 = vpack.c.b16 %v319, %v317
        %v356 = vunpack.c.l.b16 %v278
        %v357 = vunpack.c.l.b16 %v279
        %v358 = vunpack.c.l.b16 %v280
        %v359 = vunpack.c.l.b16 %v281
        %v360 = vunpack.c.l.b16 %v282
        %v361 = vunpack.c.l.b16 %v283
        %v362 = vunpack.c.l.b16 %v284
        %v363 = vunpack.c.l.b16 %v285
        %v364 = vunpack.c.l.b16 %v286
        %v365 = vunpack.c.l.b16 %v287
        %v366 = vunpack.c.l.b16 %v288
        %v367 = vunpack.c.l.b16 %v289
        %v368 = vunpack.c.l.b16 %v290
        %v369 = vunpack.c.l.b16 %v291
        %v370 = vunpack.c.l.b16 %v292
        %v371 = vunpack.c.l.b16 %v293
        %v372 = vunpack.c.l.b16 %v294
        %v373 = vunpack.c.l.b16 %v295
        %v374 = vunpack.c.l.b16 %v296
        %v375 = vunpack.c.l.b16 %v297
        %v376 = vunpack.c.l.b16 %v298
        %v377 = vunpack.c.l.b16 %v299
        %v378 = vunpack.c.l.b16 %v300
        %v379 = vunpack.c.l.b16 %v301
        %v380 = vunpack.c.l.b16 %v302
        %v381 = vunpack.c.l.b16 %v303
        %v382 = vunpack.c.l.b16 %v304
        %v383 = vunpack.c.l.b16 %v305
        %v384 = vunpack.c.l.b16 %v306
        %v385 = vunpack.c.l.b16 %v307
        %v386 = vunpack.c.l.b16 %v308
        %v387 = vunpack.c.l.b16 %v309
        %v388 = vpack.c.b16 %v357, %v356
        %v389 = vpack.c.b16 %v359, %v358
        %v390 = vpack.c.b16 %v361, %v360
        %v391 = vpack.c.b16 %v363, %v362
        %v392 = vpack.c.b16 %v365, %v364
        %v393 = vpack.c.b16 %v367, %v366
        %v394 = vpack.c.b16 %v369, %v368
        %v395 = vpack.c.b16 %v371, %v370
        %v396 = vpack.c.b16 %v373, %v372
        %v397 = vpack.c.b16 %v375, %v374
        %v398 = vpack.c.b16 %v377, %v376
        %v399 = vpack.c.b16 %v379, %v378
        %v400 = vpack.c.b16 %v381, %v380
        %v401 = vpack.c.b16 %v383, %v382
        %v402 = vpack.c.b16 %v385, %v384
        %v403 = vpack.c.b16 %v387, %v386
        %420 = vmatpush.bf16.msra.mxu0 %v395
        %421 = vmatpush.bf16.msra.mxu0 %v394
        %422 = vmatpush.bf16.msra.mxu0 %v393
        %423 = vmatpush.bf16.msra.mxu0 %v392
        %424 = vmatpush.bf16.msra.mxu0 %v391
        %425 = vmatpush.bf16.msra.mxu0 %v390
        %426 = vmatpush.bf16.msra.mxu0 %v389
        %427 = vmatpush.bf16.msra.mxu0 %v388
        %428 = vmatmul.bf16.gmra.mxu0 %v320
        %v429 = vpop.f32.mrf.mxu0
        %v430 = vadd.f32 %v312, %v429
        %v431 = vpop.f32.mrf.mxu0
        %v432 = vadd.f32 %v312, %v431
        %433 = vdwg.mxu0
        %434 = vmatpush.bf16.msra.mxu0 %v403
        %435 = vmatpush.bf16.msra.mxu0 %v402
        %436 = vmatpush.bf16.msra.mxu0 %v401
        %437 = vmatpush.bf16.msra.mxu0 %v400
        %438 = vmatpush.bf16.msra.mxu0 %v399
        %439 = vmatpush.bf16.msra.mxu0 %v398
        %440 = vmatpush.bf16.msra.mxu0 %v397
        %441 = vmatpush.bf16.msra.mxu0 %v396
        %442 = vmatmul.bf16.gmra.mxu0 %v321
        %v443 = vpop.f32.mrf.mxu0
        %v444 = vadd.f32 %v430, %v443
        %v445 = vpop.f32.mrf.mxu0
        %v446 = vadd.f32 %v432, %v445
        %447 = vdwg.mxu0
        %v448 = vmax.f32 %v444, 0.0
        %v449 = vmax.f32 %v446, 0.0
        %v450 = vpack.c.bf16 %v448, %v448
        %v451 = vpack.c.bf16 %v449, %v449
        %452 = vst [vmem:[#allocation2] sm:$0xf] %v450
        %453 = vst [vmem:[#allocation2 + $0x4] sm:$0xf] %v451
        %v454 = vld [vmem:[%s275 + $0x10] sm:$0xff]
        %v455 = vld [vmem:[%s275 + $0x18] sm:$0xff]
        %v456 = vld [vmem:[%s1] sm:$0xf]
        %v457 = vld [vmem:[%s1 + $0x4] sm:$0xf]
        %v458 = vld [vmem:[%s1 + $0x8] sm:$0xf]
        %v459 = vld [vmem:[%s1 + $0xc] sm:$0xf]
        %v460 = vld [vmem:[%s1 + $0x10] sm:$0xf]
        %v461 = vld [vmem:[%s1 + $0x14] sm:$0xf]
        %v462 = vld [vmem:[%s1 + $0x18] sm:$0xf]
        %v463 = vld [vmem:[%s1 + $0x1c] sm:$0xf]
        %v464 = vld [vmem:[%s1 + $0x20] sm:$0xf]
        %v465 = vld [vmem:[%s1 + $0x24] sm:$0xf]
        %v466 = vld [vmem:[%s1 + $0x28] sm:$0xf]
        %v467 = vld [vmem:[%s1 + $0x2c] sm:$0xf]
        %v468 = vld [vmem:[%s1 + $0x30] sm:$0xf]
        %v469 = vld [vmem:[%s1 + $0x34] sm:$0xf]
        %v470 = vld [vmem:[%s1 + $0x38] sm:$0xf]
        %v471 = vld [vmem:[%s1 + $0x3c] sm:$0xf]
        %v472 = vld [vmem:[%s1 + $0x40] sm:$0xf]
        %v473 = vld [vmem:[%s1 + $0x44] sm:$0xf]
        %v474 = vld [vmem:[%s1 + $0x48] sm:$0xf]
        %v475 = vld [vmem:[%s1 + $0x4c] sm:$0xf]
        %v476 = vld [vmem:[%s1 + $0x50] sm:$0xf]
        %v477 = vld [vmem:[%s1 + $0x54] sm:$0xf]
        %v478 = vld [vmem:[%s1 + $0x58] sm:$0xf]
        %v479 = vld [vmem:[%s1 + $0x5c] sm:$0xf]
        %v480 = vld [vmem:[%s1 + $0x60] sm:$0xf]
        %v481 = vld [vmem:[%s1 + $0x64] sm:$0xf]
        %v482 = vld [vmem:[%s1 + $0x68] sm:$0xf]
        %v483 = vld [vmem:[%s1 + $0x6c] sm:$0xf]
        %v484 = vld [vmem:[%s1 + $0x70] sm:$0xf]
        %v485 = vld [vmem:[%s1 + $0x74] sm:$0xf]
        %v486 = vld [vmem:[%s1 + $0x78] sm:$0xf]
        %v487 = vld [vmem:[%s1 + $0x7c] sm:$0xf]
        %v488 = vld [vmem:[%s2] sm:$0x1]
        %v490 = vperm.slane %v488, 0
        %v494 = vunpack.c.l.b16 %v454
        %v495 = vunpack.c.h.b16 %v454
        %v496 = vunpack.c.l.b16 %v455
        %v497 = vunpack.c.h.b16 %v455
        %v498 = vpack.c.b16 %v496, %v494
        %v499 = vpack.c.b16 %v497, %v495
        %v534 = vunpack.c.l.b16 %v456
        %v535 = vunpack.c.l.b16 %v457
        %v536 = vunpack.c.l.b16 %v458
        %v537 = vunpack.c.l.b16 %v459
        %v538 = vunpack.c.l.b16 %v460
        %v539 = vunpack.c.l.b16 %v461
        %v540 = vunpack.c.l.b16 %v462
        %v541 = vunpack.c.l.b16 %v463
        %v542 = vunpack.c.l.b16 %v464
        %v543 = vunpack.c.l.b16 %v465
        %v544 = vunpack.c.l.b16 %v466
        %v545 = vunpack.c.l.b16 %v467
        %v546 = vunpack.c.l.b16 %v468
        %v547 = vunpack.c.l.b16 %v469
        %v548 = vunpack.c.l.b16 %v470
        %v549 = vunpack.c.l.b16 %v471
        %v550 = vunpack.c.l.b16 %v472
        %v551 = vunpack.c.l.b16 %v473
        %v552 = vunpack.c.l.b16 %v474
        %v553 = vunpack.c.l.b16 %v475
        %v554 = vunpack.c.l.b16 %v476
        %v555 = vunpack.c.l.b16 %v477
        %v556 = vunpack.c.l.b16 %v478
        %v557 = vunpack.c.l.b16 %v479
        %v558 = vunpack.c.l.b16 %v480
        %v559 = vunpack.c.l.b16 %v481
        %v560 = vunpack.c.l.b16 %v482
        %v561 = vunpack.c.l.b16 %v483
        %v562 = vunpack.c.l.b16 %v484
        %v563 = vunpack.c.l.b16 %v485
        %v564 = vunpack.c.l.b16 %v486
        %v565 = vunpack.c.l.b16 %v487
        %v566 = vpack.c.b16 %v535, %v534
        %v567 = vpack.c.b16 %v537, %v536
        %v568 = vpack.c.b16 %v539, %v538
        %v569 = vpack.c.b16 %v541, %v540
        %v570 = vpack.c.b16 %v543, %v542
        %v571 = vpack.c.b16 %v545, %v544
        %v572 = vpack.c.b16 %v547, %v546
        %v573 = vpack.c.b16 %v549, %v548
        %v574 = vpack.c.b16 %v551, %v550
        %v575 = vpack.c.b16 %v553, %v552
        %v576 = vpack.c.b16 %v555, %v554
        %v577 = vpack.c.b16 %v557, %v556
        %v578 = vpack.c.b16 %v559, %v558
        %v579 = vpack.c.b16 %v561, %v560
        %v580 = vpack.c.b16 %v563, %v562
        %v581 = vpack.c.b16 %v565, %v564
        %598 = vmatpush.bf16.msra.mxu0 %v573
        %599 = vmatpush.bf16.msra.mxu0 %v572
        %600 = vmatpush.bf16.msra.mxu0 %v571
        %601 = vmatpush.bf16.msra.mxu0 %v570
        %602 = vmatpush.bf16.msra.mxu0 %v569
        %603 = vmatpush.bf16.msra.mxu0 %v568
        %604 = vmatpush.bf16.msra.mxu0 %v567
        %605 = vmatpush.bf16.msra.mxu0 %v566
        %606 = vmatmul.bf16.gmra.mxu0 %v498
        %v607 = vpop.f32.mrf.mxu0
        %v608 = vadd.f32 %v490, %v607
        %v609 = vpop.f32.mrf.mxu0
        %v610 = vadd.f32 %v490, %v609
        %611 = vdwg.mxu0
        %612 = vmatpush.bf16.msra.mxu0 %v581
        %613 = vmatpush.bf16.msra.mxu0 %v580
        %614 = vmatpush.bf16.msra.mxu0 %v579
        %615 = vmatpush.bf16.msra.mxu0 %v578
        %616 = vmatpush.bf16.msra.mxu0 %v577
        %617 = vmatpush.bf16.msra.mxu0 %v576
        %618 = vmatpush.bf16.msra.mxu0 %v575
        %619 = vmatpush.bf16.msra.mxu0 %v574
        %620 = vmatmul.bf16.gmra.mxu0 %v499
        %v621 = vpop.f32.mrf.mxu0
        %v622 = vadd.f32 %v608, %v621
        %v623 = vpop.f32.mrf.mxu0
        %v624 = vadd.f32 %v610, %v623
        %625 = vdwg.mxu0
        %v626 = vmax.f32 %v622, 0.0
        %v627 = vmax.f32 %v624, 0.0
        %v628 = vpack.c.bf16 %v626, %v626
        %v629 = vpack.c.bf16 %v627, %v627
        %s630 = scalar_lea.vmem [#allocation2], 8
        %631 = vst [vmem:[%s630] sm:$0xf] %v628
        %632 = vst [vmem:[%s630 + $0x4] sm:$0xf] %v629
        %v633 = vld [vmem:[%s275 + $0x20] sm:$0xff]
        %v634 = vld [vmem:[%s275 + $0x28] sm:$0xff]
        %v635 = vld [vmem:[%s1] sm:$0xf]
        %v636 = vld [vmem:[%s1 + $0x4] sm:$0xf]
        %v637 = vld [vmem:[%s1 + $0x8] sm:$0xf]
        %v638 = vld [vmem:[%s1 + $0xc] sm:$0xf]
        %v639 = vld [vmem:[%s1 + $0x10] sm:$0xf]
        %v640 = vld [vmem:[%s1 + $0x14] sm:$0xf]
        %v641 = vld [vmem:[%s1 + $0x18] sm:$0xf]
        %v642 = vld [vmem:[%s1 + $0x1c] sm:$0xf]
        %v643 = vld [vmem:[%s1 + $0x20] sm:$0xf]
        %v644 = vld [vmem:[%s1 + $0x24] sm:$0xf]
        %v645 = vld [vmem:[%s1 + $0x28] sm:$0xf]
        %v646 = vld [vmem:[%s1 + $0x2c] sm:$0xf]
        %v647 = vld [vmem:[%s1 + $0x30] sm:$0xf]
        %v648 = vld [vmem:[%s1 + $0x34] sm:$0xf]
        %v649 = vld [vmem:[%s1 + $0x38] sm:$0xf]
        %v650 = vld [vmem:[%s1 + $0x3c] sm:$0xf]
        %v651 = vld [vmem:[%s1 + $0x40] sm:$0xf]
        %v652 = vld [vmem:[%s1 + $0x44] sm:$0xf]
        %v653 = vld [vmem:[%s1 + $0x48] sm:$0xf]
        %v654 = vld [vmem:[%s1 + $0x4c] sm:$0xf]
        %v655 = vld [vmem:[%s1 + $0x50] sm:$0xf]
        %v656 = vld [vmem:[%s1 + $0x54] sm:$0xf]
        %v657 = vld [vmem:[%s1 + $0x58] sm:$0xf]
        %v658 = vld [vmem:[%s1 + $0x5c] sm:$0xf]
        %v659 = vld [vmem:[%s1 + $0x60] sm:$0xf]
        %v660 = vld [vmem:[%s1 + $0x64] sm:$0xf]
        %v661 = vld [vmem:[%s1 + $0x68] sm:$0xf]
        %v662 = vld [vmem:[%s1 + $0x6c] sm:$0xf]
        %v663 = vld [vmem:[%s1 + $0x70] sm:$0xf]
        %v664 = vld [vmem:[%s1 + $0x74] sm:$0xf]
        %v665 = vld [vmem:[%s1 + $0x78] sm:$0xf]
        %v666 = vld [vmem:[%s1 + $0x7c] sm:$0xf]
        %v667 = vld [vmem:[%s2] sm:$0x1]
        %v669 = vperm.slane %v667, 0
        %v673 = vunpack.c.l.b16 %v633
        %v674 = vunpack.c.h.b16 %v633
        %v675 = vunpack.c.l.b16 %v634
        %v676 = vunpack.c.h.b16 %v634
        %v677 = vpack.c.b16 %v675, %v673
        %v678 = vpack.c.b16 %v676, %v674
        %v713 = vunpack.c.l.b16 %v635
        %v714 = vunpack.c.l.b16 %v636
        %v715 = vunpack.c.l.b16 %v637
        %v716 = vunpack.c.l.b16 %v638
        %v717 = vunpack.c.l.b16 %v639
        %v718 = vunpack.c.l.b16 %v640
        %v719 = vunpack.c.l.b16 %v641
        %v720 = vunpack.c.l.b16 %v642
        %v721 = vunpack.c.l.b16 %v643
        %v722 = vunpack.c.l.b16 %v644
        %v723 = vunpack.c.l.b16 %v645
        %v724 = vunpack.c.l.b16 %v646
        %v725 = vunpack.c.l.b16 %v647
        %v726 = vunpack.c.l.b16 %v648
        %v727 = vunpack.c.l.b16 %v649
        %v728 = vunpack.c.l.b16 %v650
        %v729 = vunpack.c.l.b16 %v651
        %v730 = vunpack.c.l.b16 %v652
        %v731 = vunpack.c.l.b16 %v653
        %v732 = vunpack.c.l.b16 %v654
        %v733 = vunpack.c.l.b16 %v655
        %v734 = vunpack.c.l.b16 %v656
        %v735 = vunpack.c.l.b16 %v657
        %v736 = vunpack.c.l.b16 %v658
        %v737 = vunpack.c.l.b16 %v659
        %v738 = vunpack.c.l.b16 %v660
        %v739 = vunpack.c.l.b16 %v661
        %v740 = vunpack.c.l.b16 %v662
        %v741 = vunpack.c.l.b16 %v663
        %v742 = vunpack.c.l.b16 %v664
        %v743 = vunpack.c.l.b16 %v665
        %v744 = vunpack.c.l.b16 %v666
        %v745 = vpack.c.b16 %v714, %v713
        %v746 = vpack.c.b16 %v716, %v715
        %v747 = vpack.c.b16 %v718, %v717
        %v748 = vpack.c.b16 %v720, %v719
        %v749 = vpack.c.b16 %v722, %v721
        %v750 = vpack.c.b16 %v724, %v723
        %v751 = vpack.c.b16 %v726, %v725
        %v752 = vpack.c.b16 %v728, %v727
        %v753 = vpack.c.b16 %v730, %v729
        %v754 = vpack.c.b16 %v732, %v731
        %v755 = vpack.c.b16 %v734, %v733
        %v756 = vpack.c.b16 %v736, %v735
        %v757 = vpack.c.b16 %v738, %v737
        %v758 = vpack.c.b16 %v740, %v739
        %v759 = vpack.c.b16 %v742, %v741
        %v760 = vpack.c.b16 %v744, %v743
        %777 = vmatpush.bf16.msra.mxu0 %v752
        %778 = vmatpush.bf16.msra.mxu0 %v751
        %779 = vmatpush.bf16.msra.mxu0 %v750
        %780 = vmatpush.bf16.msra.mxu0 %v749
        %781 = vmatpush.bf16.msra.mxu0 %v748
        %782 = vmatpush.bf16.msra.mxu0 %v747
        %783 = vmatpush.bf16.msra.mxu0 %v746
        %784 = vmatpush.bf16.msra.mxu0 %v745
        %785 = vmatmul.bf16.gmra.mxu0 %v677
        %v786 = vpop.f32.mrf.mxu0
        %v787 = vadd.f32 %v669, %v786
        %v788 = vpop.f32.mrf.mxu0
        %v789 = vadd.f32 %v669, %v788
        %790 = vdwg.mxu0
        %791 = vmatpush.bf16.msra.mxu0 %v760
        %792 = vmatpush.bf16.msra.mxu0 %v759
        %793 = vmatpush.bf16.msra.mxu0 %v758
        %794 = vmatpush.bf16.msra.mxu0 %v757
        %795 = vmatpush.bf16.msra.mxu0 %v756
        %796 = vmatpush.bf16.msra.mxu0 %v755
        %797 = vmatpush.bf16.msra.mxu0 %v754
        %798 = vmatpush.bf16.msra.mxu0 %v753
        %799 = vmatmul.bf16.gmra.mxu0 %v678
        %v800 = vpop.f32.mrf.mxu0
        %v801 = vadd.f32 %v787, %v800
        %v802 = vpop.f32.mrf.mxu0
        %v803 = vadd.f32 %v789, %v802
        %804 = vdwg.mxu0
        %v805 = vmax.f32 %v801, 0.0
        %v806 = vmax.f32 %v803, 0.0
        %v807 = vpack.c.bf16 %v805, %v805
        %v808 = vpack.c.bf16 %v806, %v806
        %s809 = scalar_lea.vmem [#allocation2], 16
        %810 = vst [vmem:[%s809] sm:$0xf] %v807
        %811 = vst [vmem:[%s809 + $0x4] sm:$0xf] %v808
        %v812 = vld [vmem:[%s275 + $0x30] sm:$0xff]
        %v813 = vld [vmem:[%s275 + $0x38] sm:$0xff]
        %v814 = vld [vmem:[%s1] sm:$0xf]
        %v815 = vld [vmem:[%s1 + $0x4] sm:$0xf]
        %v816 = vld [vmem:[%s1 + $0x8] sm:$0xf]
        %v817 = vld [vmem:[%s1 + $0xc] sm:$0xf]
        %v818 = vld [vmem:[%s1 + $0x10] sm:$0xf]
        %v819 = vld [vmem:[%s1 + $0x14] sm:$0xf]
        %v820 = vld [vmem:[%s1 + $0x18] sm:$0xf]
        %v821 = vld [vmem:[%s1 + $0x1c] sm:$0xf]
        %v822 = vld [vmem:[%s1 + $0x20] sm:$0xf]
        %v823 = vld [vmem:[%s1 + $0x24] sm:$0xf]
        %v824 = vld [vmem:[%s1 + $0x28] sm:$0xf]
        %v825 = vld [vmem:[%s1 + $0x2c] sm:$0xf]
        %v826 = vld [vmem:[%s1 + $0x30] sm:$0xf]
        %v827 = vld [vmem:[%s1 + $0x34] sm:$0xf]
        %v828 = vld [vmem:[%s1 + $0x38] sm:$0xf]
        %v829 = vld [vmem:[%s1 + $0x3c] sm:$0xf]
        %v830 = vld [vmem:[%s1 + $0x40] sm:$0xf]
        %v831 = vld [vmem:[%s1 + $0x44] sm:$0xf]
        %v832 = vld [vmem:[%s1 + $0x48] sm:$0xf]
        %v833 = vld [vmem:[%s1 + $0x4c] sm:$0xf]
        %v834 = vld [vmem:[%s1 + $0x50] sm:$0xf]
        %v835 = vld [vmem:[%s1 + $0x54] sm:$0xf]
        %v836 = vld [vmem:[%s1 + $0x58] sm:$0xf]
        %v837 = vld [vmem:[%s1 + $0x5c] sm:$0xf]
        %v838 = vld [vmem:[%s1 + $0x60] sm:$0xf]
        %v839 = vld [vmem:[%s1 + $0x64] sm:$0xf]
        %v840 = vld [vmem:[%s1 + $0x68] sm:$0xf]
        %v841 = vld [vmem:[%s1 + $0x6c] sm:$0xf]
        %v842 = vld [vmem:[%s1 + $0x70] sm:$0xf]
        %v843 = vld [vmem:[%s1 + $0x74] sm:$0xf]
        %v844 = vld [vmem:[%s1 + $0x78] sm:$0xf]
        %v845 = vld [vmem:[%s1 + $0x7c] sm:$0xf]
        %v846 = vld [vmem:[%s2] sm:$0x1]
        %v848 = vperm.slane %v846, 0
        %v852 = vunpack.c.l.b16 %v812
        %v853 = vunpack.c.h.b16 %v812
        %v854 = vunpack.c.l.b16 %v813
        %v855 = vunpack.c.h.b16 %v813
        %v856 = vpack.c.b16 %v854, %v852
        %v857 = vpack.c.b16 %v855, %v853
        %v892 = vunpack.c.l.b16 %v814
        %v893 = vunpack.c.l.b16 %v815
        %v894 = vunpack.c.l.b16 %v816
        %v895 = vunpack.c.l.b16 %v817
        %v896 = vunpack.c.l.b16 %v818
        %v897 = vunpack.c.l.b16 %v819
        %v898 = vunpack.c.l.b16 %v820
        %v899 = vunpack.c.l.b16 %v821
        %v900 = vunpack.c.l.b16 %v822
        %v901 = vunpack.c.l.b16 %v823
        %v902 = vunpack.c.l.b16 %v824
        %v903 = vunpack.c.l.b16 %v825
        %v904 = vunpack.c.l.b16 %v826
        %v905 = vunpack.c.l.b16 %v827
        %v906 = vunpack.c.l.b16 %v828
        %v907 = vunpack.c.l.b16 %v829
        %v908 = vunpack.c.l.b16 %v830
        %v909 = vunpack.c.l.b16 %v831
        %v910 = vunpack.c.l.b16 %v832
        %v911 = vunpack.c.l.b16 %v833
        %v912 = vunpack.c.l.b16 %v834
        %v913 = vunpack.c.l.b16 %v835
        %v914 = vunpack.c.l.b16 %v836
        %v915 = vunpack.c.l.b16 %v837
        %v916 = vunpack.c.l.b16 %v838
        %v917 = vunpack.c.l.b16 %v839
        %v918 = vunpack.c.l.b16 %v840
        %v919 = vunpack.c.l.b16 %v841
        %v920 = vunpack.c.l.b16 %v842
        %v921 = vunpack.c.l.b16 %v843
        %v922 = vunpack.c.l.b16 %v844
        %v923 = vunpack.c.l.b16 %v845
        %v924 = vpack.c.b16 %v893, %v892
        %v925 = vpack.c.b16 %v895, %v894
        %v926 = vpack.c.b16 %v897, %v896
        %v927 = vpack.c.b16 %v899, %v898
        %v928 = vpack.c.b16 %v901, %v900
        %v929 = vpack.c.b16 %v903, %v902
        %v930 = vpack.c.b16 %v905, %v904
        %v931 = vpack.c.b16 %v907, %v906
        %v932 = vpack.c.b16 %v909, %v908
        %v933 = vpack.c.b16 %v911, %v910
        %v934 = vpack.c.b16 %v913, %v912
        %v935 = vpack.c.b16 %v915, %v914
        %v936 = vpack.c.b16 %v917, %v916
        %v937 = vpack.c.b16 %v919, %v918
        %v938 = vpack.c.b16 %v921, %v920
        %v939 = vpack.c.b16 %v923, %v922
        %956 = vmatpush.bf16.msra.mxu0 %v931
        %957 = vmatpush.bf16.msra.mxu0 %v930
        %958 = vmatpush.bf16.msra.mxu0 %v929
        %959 = vmatpush.bf16.msra.mxu0 %v928
        %960 = vmatpush.bf16.msra.mxu0 %v927
        %961 = vmatpush.bf16.msra.mxu0 %v926
        %962 = vmatpush.bf16.msra.mxu0 %v925
        %963 = vmatpush.bf16.msra.mxu0 %v924
        %964 = vmatmul.bf16.gmra.mxu0 %v856
        %v965 = vpop.f32.mrf.mxu0
        %v966 = vadd.f32 %v848, %v965
        %v967 = vpop.f32.mrf.mxu0
        %v968 = vadd.f32 %v848, %v967
        %969 = vdwg.mxu0
        %970 = vmatpush.bf16.msra.mxu0 %v939
        %971 = vmatpush.bf16.msra.mxu0 %v938
        %972 = vmatpush.bf16.msra.mxu0 %v937
        %973 = vmatpush.bf16.msra.mxu0 %v936
        %974 = vmatpush.bf16.msra.mxu0 %v935
        %975 = vmatpush.bf16.msra.mxu0 %v934
        %976 = vmatpush.bf16.msra.mxu0 %v933
        %977 = vmatpush.bf16.msra.mxu0 %v932
        %978 = vmatmul.bf16.gmra.mxu0 %v857
        %v979 = vpop.f32.mrf.mxu0
        %v980 = vadd.f32 %v966, %v979
        %v981 = vpop.f32.mrf.mxu0
        %v982 = vadd.f32 %v968, %v981
        %983 = vdwg.mxu0
        %v984 = vmax.f32 %v980, 0.0
        %v985 = vmax.f32 %v982, 0.0
        %v986 = vpack.c.bf16 %v984, %v984
        %v987 = vpack.c.bf16 %v985, %v985
        %s988 = scalar_lea.vmem [#allocation2], 24
        %989 = vst [vmem:[%s988] sm:$0xf] %v986
        %990 = vst [vmem:[%s988 + $0x4] sm:$0xf] %v987
        %v991 = vld [vmem:[#allocation2] sm:$0x3]
        %v992 = vld [vmem:[%s630] sm:$0x3]
        %v993 = vld [vmem:[%s809] sm:$0x3]
        %v994 = vld [vmem:[%s988] sm:$0x3]
        %v995 = vld [vmem:[#allocation2] sm:$0xc]
        %v996 = vld [vmem:[%s630] sm:$0xc]
        %v997 = vld [vmem:[%s809] sm:$0xc]
        %v998 = vld [vmem:[%s988] sm:$0xc]
        %v1000 = vunpack.c.l.b16 %v991
        %v1001 = vpack.c.b16 %v1000, %v1000
        %v1003 = vshrl.u32 %v1001, 16
        %v1005 = vshll.u32 %v1001, 16
        %v1007 = vrot.slane %v1005, 1
        %v1008 = vor.u32 %v1003, %v1007
        %v1011 = vunpack.c.l.b16 %v992
        %v1012 = vpack.c.b16 %v1011, %v1011
        %v1014 = vshrl.u32 %v1012, 16
        %v1016 = vshll.u32 %v1012, 16
        %v1018 = vrot.slane %v1016, 1
        %v1019 = vor.u32 %v1014, %v1018
        %v1022 = vunpack.c.l.b16 %v993
        %v1023 = vpack.c.b16 %v1022, %v1022
        %v1025 = vshrl.u32 %v1023, 16
        %v1027 = vshll.u32 %v1023, 16
        %v1029 = vrot.slane %v1027, 1
        %v1030 = vor.u32 %v1025, %v1029
        %v1033 = vunpack.c.l.b16 %v994
        %v1034 = vpack.c.b16 %v1033, %v1033
        %v1036 = vshrl.u32 %v1034, 16
        %v1038 = vshll.u32 %v1034, 16
        %v1040 = vrot.slane %v1038, 1
        %v1041 = vor.u32 %v1036, %v1040
        %v1044 = vunpack.c.l.b16 %v995
        %v1045 = vpack.c.b16 %v1044, %v1044
        %v1046 = vrot.slane %v1045, 2
        %v1049 = vunpack.c.l.b16 %v996
        %v1050 = vpack.c.b16 %v1049, %v1049
        %v1051 = vrot.slane %v1050, 2
        %v1054 = vshrl.u32 %v1045, 16
        %v1056 = vrot.slane %v1054, 2
        %v1057 = vshll.u32 %v1045, 16
        %v1059 = vrot.slane %v1057, 3
        %v1060 = vor.u32 %v1056, %v1059
        %v1063 = vshrl.u32 %v1050, 16
        %v1065 = vrot.slane %v1063, 2
        %v1066 = vshll.u32 %v1050, 16
        %v1068 = vrot.slane %v1066, 3
        %v1069 = vor.u32 %v1065, %v1068
        %v1072 = vunpack.c.l.b16 %v997
        %v1073 = vpack.c.b16 %v1072, %v1072
        %v1074 = vrot.slane %v1073, 2
        %v1077 = vunpack.c.l.b16 %v998
        %v1078 = vpack.c.b16 %v1077, %v1077
        %v1079 = vrot.slane %v1078, 2
        %v1082 = vshrl.u32 %v1073, 16
        %v1084 = vrot.slane %v1082, 2
        %v1085 = vshll.u32 %v1073, 16
        %v1087 = vrot.slane %v1085, 3
        %v1088 = vor.u32 %v1084, %v1087
        %v1091 = vshrl.u32 %v1078, 16
        %v1093 = vrot.slane %v1091, 2
        %v1094 = vshll.u32 %v1078, 16
        %v1096 = vrot.slane %v1094, 3
        %v1097 = vor.u32 %v1093, %v1096
        %v1099 = vld [vmem:[%s3] sm:$0xf]
        %v1100 = vld [vmem:[%s3 + $0x4] sm:$0xf]
        %v1101 = vld [vmem:[%s3 + $0x8] sm:$0xf]
        %v1102 = vld [vmem:[%s3 + $0xc] sm:$0xf]
        %v1103 = vld [vmem:[%s3 + $0x10] sm:$0xf]
        %v1104 = vld [vmem:[%s3 + $0x14] sm:$0xf]
        %v1105 = vld [vmem:[%s3 + $0x18] sm:$0xf]
        %v1106 = vld [vmem:[%s3 + $0x1c] sm:$0xf]
        %v1107 = vld [vmem:[%s3 + $0x20] sm:$0xf]
        %v1108 = vld [vmem:[%s3 + $0x24] sm:$0xf]
        %v1109 = vld [vmem:[%s3 + $0x28] sm:$0xf]
        %v1110 = vld [vmem:[%s3 + $0x2c] sm:$0xf]
        %v1111 = vld [vmem:[%s3 + $0x30] sm:$0xf]
        %v1112 = vld [vmem:[%s3 + $0x34] sm:$0xf]
        %v1113 = vld [vmem:[%s3 + $0x38] sm:$0xf]
        %v1114 = vld [vmem:[%s3 + $0x3c] sm:$0xf]
        %v1115 = vld [vmem:[%s3 + $0x40] sm:$0xf]
        %v1116 = vld [vmem:[%s3 + $0x44] sm:$0xf]
        %v1117 = vld [vmem:[%s3 + $0x48] sm:$0xf]
        %v1118 = vld [vmem:[%s3 + $0x4c] sm:$0xf]
        %v1119 = vld [vmem:[%s3 + $0x50] sm:$0xf]
        %v1120 = vld [vmem:[%s3 + $0x54] sm:$0xf]
        %v1121 = vld [vmem:[%s3 + $0x58] sm:$0xf]
        %v1122 = vld [vmem:[%s3 + $0x5c] sm:$0xf]
        %v1123 = vld [vmem:[%s3 + $0x60] sm:$0xf]
        %v1124 = vld [vmem:[%s3 + $0x64] sm:$0xf]
        %v1125 = vld [vmem:[%s3 + $0x68] sm:$0xf]
        %v1126 = vld [vmem:[%s3 + $0x6c] sm:$0xf]
        %v1127 = vld [vmem:[%s3 + $0x70] sm:$0xf]
        %v1128 = vld [vmem:[%s3 + $0x74] sm:$0xf]
        %v1129 = vld [vmem:[%s3 + $0x78] sm:$0xf]
        %v1130 = vld [vmem:[%s3 + $0x7c] sm:$0xf]
        %v1131 = vld [vmem:[%s3 + $0x80] sm:$0xf]
        %v1132 = vld [vmem:[%s3 + $0x84] sm:$0xf]
        %v1133 = vld [vmem:[%s3 + $0x88] sm:$0xf]
        %v1134 = vld [vmem:[%s3 + $0x8c] sm:$0xf]
        %v1135 = vld [vmem:[%s3 + $0x90] sm:$0xf]
        %v1136 = vld [vmem:[%s3 + $0x94] sm:$0xf]
        %v1137 = vld [vmem:[%s3 + $0x98] sm:$0xf]
        %v1138 = vld [vmem:[%s3 + $0x9c] sm:$0xf]
        %v1139 = vld [vmem:[%s3 + $0xa0] sm:$0xf]
        %v1140 = vld [vmem:[%s3 + $0xa4] sm:$0xf]
        %v1141 = vld [vmem:[%s3 + $0xa8] sm:$0xf]
        %v1142 = vld [vmem:[%s3 + $0xac] sm:$0xf]
        %v1143 = vld [vmem:[%s3 + $0xb0] sm:$0xf]
        %v1144 = vld [vmem:[%s3 + $0xb4] sm:$0xf]
        %v1145 = vld [vmem:[%s3 + $0xb8] sm:$0xf]
        %v1146 = vld [vmem:[%s3 + $0xbc] sm:$0xf]
        %v1147 = vld [vmem:[%s3 + $0xc0] sm:$0xf]
        %v1148 = vld [vmem:[%s3 + $0xc4] sm:$0xf]
        %v1149 = vld [vmem:[%s3 + $0xc8] sm:$0xf]
        %v1150 = vld [vmem:[%s3 + $0xcc] sm:$0xf]
        %v1151 = vld [vmem:[%s3 + $0xd0] sm:$0xf]
        %v1152 = vld [vmem:[%s3 + $0xd4] sm:$0xf]
        %v1153 = vld [vmem:[%s3 + $0xd8] sm:$0xf]
        %v1154 = vld [vmem:[%s3 + $0xdc] sm:$0xf]
        %v1155 = vld [vmem:[%s3 + $0xe0] sm:$0xf]
        %v1156 = vld [vmem:[%s3 + $0xe4] sm:$0xf]
        %v1157 = vld [vmem:[%s3 + $0xe8] sm:$0xf]
        %v1158 = vld [vmem:[%s3 + $0xec] sm:$0xf]
        %v1159 = vld [vmem:[%s3 + $0xf0] sm:$0xf]
        %v1160 = vld [vmem:[%s3 + $0xf4] sm:$0xf]
        %v1161 = vld [vmem:[%s3 + $0xf8] sm:$0xf]
        %v1162 = vld [vmem:[%s3 + $0xfc] sm:$0xf]
        %v1163 = vld [vmem:[%s3 + $0x100] sm:$0xf]
        %v1164 = vld [vmem:[%s3 + $0x104] sm:$0xf]
        %v1165 = vld [vmem:[%s3 + $0x108] sm:$0xf]
        %v1166 = vld [vmem:[%s3 + $0x10c] sm:$0xf]
        %v1167 = vld [vmem:[%s3 + $0x110] sm:$0xf]
        %v1168 = vld [vmem:[%s3 + $0x114] sm:$0xf]
        %v1169 = vld [vmem:[%s3 + $0x118] sm:$0xf]
        %v1170 = vld [vmem:[%s3 + $0x11c] sm:$0xf]
        %v1171 = vld [vmem:[%s3 + $0x120] sm:$0xf]
        %v1172 = vld [vmem:[%s3 + $0x124] sm:$0xf]
        %v1173 = vld [vmem:[%s3 + $0x128] sm:$0xf]
        %v1174 = vld [vmem:[%s3 + $0x12c] sm:$0xf]
        %v1175 = vld [vmem:[%s3 + $0x130] sm:$0xf]
        %v1176 = vld [vmem:[%s3 + $0x134] sm:$0xf]
        %v1177 = vld [vmem:[%s3 + $0x138] sm:$0xf]
        %v1178 = vld [vmem:[%s3 + $0x13c] sm:$0xf]
        %v1179 = vld [vmem:[%s3 + $0x140] sm:$0xf]
        %v1180 = vld [vmem:[%s3 + $0x144] sm:$0xf]
        %v1181 = vld [vmem:[%s3 + $0x148] sm:$0xf]
        %v1182 = vld [vmem:[%s3 + $0x14c] sm:$0xf]
        %v1183 = vld [vmem:[%s3 + $0x150] sm:$0xf]
        %v1184 = vld [vmem:[%s3 + $0x154] sm:$0xf]
        %v1185 = vld [vmem:[%s3 + $0x158] sm:$0xf]
        %v1186 = vld [vmem:[%s3 + $0x15c] sm:$0xf]
        %v1187 = vld [vmem:[%s3 + $0x160] sm:$0xf]
        %v1188 = vld [vmem:[%s3 + $0x164] sm:$0xf]
        %v1189 = vld [vmem:[%s3 + $0x168] sm:$0xf]
        %v1190 = vld [vmem:[%s3 + $0x16c] sm:$0xf]
        %v1191 = vld [vmem:[%s3 + $0x170] sm:$0xf]
        %v1192 = vld [vmem:[%s3 + $0x174] sm:$0xf]
        %v1193 = vld [vmem:[%s3 + $0x178] sm:$0xf]
        %v1194 = vld [vmem:[%s3 + $0x17c] sm:$0xf]
        %v1195 = vld [vmem:[%s3 + $0x180] sm:$0xf]
        %v1196 = vld [vmem:[%s3 + $0x184] sm:$0xf]
        %v1197 = vld [vmem:[%s3 + $0x188] sm:$0xf]
        %v1198 = vld [vmem:[%s3 + $0x18c] sm:$0xf]
        %v1199 = vld [vmem:[%s3 + $0x190] sm:$0xf]
        %v1200 = vld [vmem:[%s3 + $0x194] sm:$0xf]
        %v1201 = vld [vmem:[%s3 + $0x198] sm:$0xf]
        %v1202 = vld [vmem:[%s3 + $0x19c] sm:$0xf]
        %v1203 = vld [vmem:[%s3 + $0x1a0] sm:$0xf]
        %v1204 = vld [vmem:[%s3 + $0x1a4] sm:$0xf]
        %v1205 = vld [vmem:[%s3 + $0x1a8] sm:$0xf]
        %v1206 = vld [vmem:[%s3 + $0x1ac] sm:$0xf]
        %v1207 = vld [vmem:[%s3 + $0x1b0] sm:$0xf]
        %v1208 = vld [vmem:[%s3 + $0x1b4] sm:$0xf]
        %v1209 = vld [vmem:[%s3 + $0x1b8] sm:$0xf]
        %v1210 = vld [vmem:[%s3 + $0x1bc] sm:$0xf]
        %v1211 = vld [vmem:[%s3 + $0x1c0] sm:$0xf]
        %v1212 = vld [vmem:[%s3 + $0x1c4] sm:$0xf]
        %v1213 = vld [vmem:[%s3 + $0x1c8] sm:$0xf]
        %v1214 = vld [vmem:[%s3 + $0x1cc] sm:$0xf]
        %v1215 = vld [vmem:[%s3 + $0x1d0] sm:$0xf]
        %v1216 = vld [vmem:[%s3 + $0x1d4] sm:$0xf]
        %v1217 = vld [vmem:[%s3 + $0x1d8] sm:$0xf]
        %v1218 = vld [vmem:[%s3 + $0x1dc] sm:$0xf]
        %v1219 = vld [vmem:[%s3 + $0x1e0] sm:$0xf]
        %v1220 = vld [vmem:[%s3 + $0x1e4] sm:$0xf]
        %v1221 = vld [vmem:[%s3 + $0x1e8] sm:$0xf]
        %v1222 = vld [vmem:[%s3 + $0x1ec] sm:$0xf]
        %v1223 = vld [vmem:[%s3 + $0x1f0] sm:$0xf]
        %v1224 = vld [vmem:[%s3 + $0x1f4] sm:$0xf]
        %v1225 = vld [vmem:[%s3 + $0x1f8] sm:$0xf]
        %v1226 = vld [vmem:[%s3 + $0x1fc] sm:$0xf]
        %v1227 = vld [vmem:[%s3 + $0x200] sm:$0xf]
        %v1228 = vld [vmem:[%s3 + $0x204] sm:$0xf]
        %v1229 = vld [vmem:[%s3 + $0x208] sm:$0xf]
        %v1230 = vld [vmem:[%s3 + $0x20c] sm:$0xf]
        %v1231 = vld [vmem:[%s3 + $0x210] sm:$0xf]
        %v1232 = vld [vmem:[%s3 + $0x214] sm:$0xf]
        %v1233 = vld [vmem:[%s3 + $0x218] sm:$0xf]
        %v1234 = vld [vmem:[%s3 + $0x21c] sm:$0xf]
        %v1235 = vld [vmem:[%s3 + $0x220] sm:$0xf]
        %v1236 = vld [vmem:[%s3 + $0x224] sm:$0xf]
        %v1237 = vld [vmem:[%s3 + $0x228] sm:$0xf]
        %v1238 = vld [vmem:[%s3 + $0x22c] sm:$0xf]
        %v1239 = vld [vmem:[%s3 + $0x230] sm:$0xf]
        %v1240 = vld [vmem:[%s3 + $0x234] sm:$0xf]
        %v1241 = vld [vmem:[%s3 + $0x238] sm:$0xf]
        %v1242 = vld [vmem:[%s3 + $0x23c] sm:$0xf]
        %v1243 = vld [vmem:[%s3 + $0x240] sm:$0xf]
        %v1244 = vld [vmem:[%s3 + $0x244] sm:$0xf]
        %v1245 = vld [vmem:[%s3 + $0x248] sm:$0xf]
        %v1246 = vld [vmem:[%s3 + $0x24c] sm:$0xf]
        %v1247 = vld [vmem:[%s3 + $0x250] sm:$0xf]
        %v1248 = vld [vmem:[%s3 + $0x254] sm:$0xf]
        %v1249 = vld [vmem:[%s3 + $0x258] sm:$0xf]
        %v1250 = vld [vmem:[%s3 + $0x25c] sm:$0xf]
        %v1251 = vld [vmem:[%s3 + $0x260] sm:$0xf]
        %v1252 = vld [vmem:[%s3 + $0x264] sm:$0xf]
        %v1253 = vld [vmem:[%s3 + $0x268] sm:$0xf]
        %v1254 = vld [vmem:[%s3 + $0x26c] sm:$0xf]
        %v1255 = vld [vmem:[%s3 + $0x270] sm:$0xf]
        %v1256 = vld [vmem:[%s3 + $0x274] sm:$0xf]
        %v1257 = vld [vmem:[%s3 + $0x278] sm:$0xf]
        %v1258 = vld [vmem:[%s3 + $0x27c] sm:$0xf]
        %v1259 = vld [vmem:[%s3 + $0x280] sm:$0xf]
        %v1260 = vld [vmem:[%s3 + $0x284] sm:$0xf]
        %v1261 = vld [vmem:[%s3 + $0x288] sm:$0xf]
        %v1262 = vld [vmem:[%s3 + $0x28c] sm:$0xf]
        %v1263 = vld [vmem:[%s3 + $0x290] sm:$0xf]
        %v1264 = vld [vmem:[%s3 + $0x294] sm:$0xf]
        %v1265 = vld [vmem:[%s3 + $0x298] sm:$0xf]
        %v1266 = vld [vmem:[%s3 + $0x29c] sm:$0xf]
        %v1267 = vld [vmem:[%s3 + $0x2a0] sm:$0xf]
        %v1268 = vld [vmem:[%s3 + $0x2a4] sm:$0xf]
        %v1269 = vld [vmem:[%s3 + $0x2a8] sm:$0xf]
        %v1270 = vld [vmem:[%s3 + $0x2ac] sm:$0xf]
        %v1271 = vld [vmem:[%s3 + $0x2b0] sm:$0xf]
        %v1272 = vld [vmem:[%s3 + $0x2b4] sm:$0xf]
        %v1273 = vld [vmem:[%s3 + $0x2b8] sm:$0xf]
        %v1274 = vld [vmem:[%s3 + $0x2bc] sm:$0xf]
        %v1275 = vld [vmem:[%s3 + $0x2c0] sm:$0xf]
        %v1276 = vld [vmem:[%s3 + $0x2c4] sm:$0xf]
        %v1277 = vld [vmem:[%s3 + $0x2c8] sm:$0xf]
        %v1278 = vld [vmem:[%s3 + $0x2cc] sm:$0xf]
        %v1279 = vld [vmem:[%s3 + $0x2d0] sm:$0xf]
        %v1280 = vld [vmem:[%s3 + $0x2d4] sm:$0xf]
        %v1281 = vld [vmem:[%s3 + $0x2d8] sm:$0xf]
        %v1282 = vld [vmem:[%s3 + $0x2dc] sm:$0xf]
        %v1283 = vld [vmem:[%s3 + $0x2e0] sm:$0xf]
        %v1284 = vld [vmem:[%s3 + $0x2e4] sm:$0xf]
        %v1285 = vld [vmem:[%s3 + $0x2e8] sm:$0xf]
        %v1286 = vld [vmem:[%s3 + $0x2ec] sm:$0xf]
        %v1287 = vld [vmem:[%s3 + $0x2f0] sm:$0xf]
        %v1288 = vld [vmem:[%s3 + $0x2f4] sm:$0xf]
        %v1289 = vld [vmem:[%s3 + $0x2f8] sm:$0xf]
        %v1290 = vld [vmem:[%s3 + $0x2fc] sm:$0xf]
        %v1291 = vld [vmem:[%s3 + $0x300] sm:$0xf]
        %v1292 = vld [vmem:[%s3 + $0x304] sm:$0xf]
        %v1293 = vld [vmem:[%s3 + $0x308] sm:$0xf]
        %v1294 = vld [vmem:[%s3 + $0x30c] sm:$0xf]
        %v1295 = vld [vmem:[%s3 + $0x310] sm:$0xf]
        %v1296 = vld [vmem:[%s3 + $0x314] sm:$0xf]
        %v1297 = vld [vmem:[%s3 + $0x318] sm:$0xf]
        %v1298 = vld [vmem:[%s3 + $0x31c] sm:$0xf]
        %v1299 = vld [vmem:[%s3 + $0x320] sm:$0xf]
        %v1300 = vld [vmem:[%s3 + $0x324] sm:$0xf]
        %v1301 = vld [vmem:[%s3 + $0x328] sm:$0xf]
        %v1302 = vld [vmem:[%s3 + $0x32c] sm:$0xf]
        %v1303 = vld [vmem:[%s3 + $0x330] sm:$0xf]
        %v1304 = vld [vmem:[%s3 + $0x334] sm:$0xf]
        %v1305 = vld [vmem:[%s3 + $0x338] sm:$0xf]
        %v1306 = vld [vmem:[%s3 + $0x33c] sm:$0xf]
        %v1307 = vld [vmem:[%s3 + $0x340] sm:$0xf]
        %v1308 = vld [vmem:[%s3 + $0x344] sm:$0xf]
        %v1309 = vld [vmem:[%s3 + $0x348] sm:$0xf]
        %v1310 = vld [vmem:[%s3 + $0x34c] sm:$0xf]
        %v1311 = vld [vmem:[%s3 + $0x350] sm:$0xf]
        %v1312 = vld [vmem:[%s3 + $0x354] sm:$0xf]
        %v1313 = vld [vmem:[%s3 + $0x358] sm:$0xf]
        %v1314 = vld [vmem:[%s3 + $0x35c] sm:$0xf]
        %v1315 = vld [vmem:[%s3 + $0x360] sm:$0xf]
        %v1316 = vld [vmem:[%s3 + $0x364] sm:$0xf]
        %v1317 = vld [vmem:[%s3 + $0x368] sm:$0xf]
        %v1318 = vld [vmem:[%s3 + $0x36c] sm:$0xf]
        %v1319 = vld [vmem:[%s3 + $0x370] sm:$0xf]
        %v1320 = vld [vmem:[%s3 + $0x374] sm:$0xf]
        %v1321 = vld [vmem:[%s3 + $0x378] sm:$0xf]
        %v1322 = vld [vmem:[%s3 + $0x37c] sm:$0xf]
        %v1323 = vld [vmem:[%s3 + $0x380] sm:$0xf]
        %v1324 = vld [vmem:[%s3 + $0x384] sm:$0xf]
        %v1325 = vld [vmem:[%s3 + $0x388] sm:$0xf]
        %v1326 = vld [vmem:[%s3 + $0x38c] sm:$0xf]
        %v1327 = vld [vmem:[%s3 + $0x390] sm:$0xf]
        %v1328 = vld [vmem:[%s3 + $0x394] sm:$0xf]
        %v1329 = vld [vmem:[%s3 + $0x398] sm:$0xf]
        %v1330 = vld [vmem:[%s3 + $0x39c] sm:$0xf]
        %v1331 = vld [vmem:[%s3 + $0x3a0] sm:$0xf]
        %v1332 = vld [vmem:[%s3 + $0x3a4] sm:$0xf]
        %v1333 = vld [vmem:[%s3 + $0x3a8] sm:$0xf]
        %v1334 = vld [vmem:[%s3 + $0x3ac] sm:$0xf]
        %v1335 = vld [vmem:[%s3 + $0x3b0] sm:$0xf]
        %v1336 = vld [vmem:[%s3 + $0x3b4] sm:$0xf]
        %v1337 = vld [vmem:[%s3 + $0x3b8] sm:$0xf]
        %v1338 = vld [vmem:[%s3 + $0x3bc] sm:$0xf]
        %v1339 = vld [vmem:[%s3 + $0x3c0] sm:$0xf]
        %v1340 = vld [vmem:[%s3 + $0x3c4] sm:$0xf]
        %v1341 = vld [vmem:[%s3 + $0x3c8] sm:$0xf]
        %v1342 = vld [vmem:[%s3 + $0x3cc] sm:$0xf]
        %v1343 = vld [vmem:[%s3 + $0x3d0] sm:$0xf]
        %v1344 = vld [vmem:[%s3 + $0x3d4] sm:$0xf]
        %v1345 = vld [vmem:[%s3 + $0x3d8] sm:$0xf]
        %v1346 = vld [vmem:[%s3 + $0x3dc] sm:$0xf]
        %v1347 = vld [vmem:[%s3 + $0x3e0] sm:$0xf]
        %v1348 = vld [vmem:[%s3 + $0x3e4] sm:$0xf]
        %v1349 = vld [vmem:[%s3 + $0x3e8] sm:$0xf]
        %v1350 = vld [vmem:[%s3 + $0x3ec] sm:$0xf]
        %v1351 = vld [vmem:[%s3 + $0x3f0] sm:$0xf]
        %v1352 = vld [vmem:[%s3 + $0x3f4] sm:$0xf]
        %v1353 = vld [vmem:[%s3 + $0x3f8] sm:$0xf]
        %v1354 = vld [vmem:[%s3 + $0x3fc] sm:$0xf]
        %v1355 = vld [vmem:[%s4] sm:$0x1]
        %v1357 = vperm.slane %v1355, 0
        %v1615 = vunpack.c.l.b16 %v1099
        %v1616 = vunpack.c.l.b16 %v1100
        %v1617 = vunpack.c.l.b16 %v1101
        %v1618 = vunpack.c.l.b16 %v1102
        %v1619 = vunpack.c.l.b16 %v1103
        %v1620 = vunpack.c.l.b16 %v1104
        %v1621 = vunpack.c.l.b16 %v1105
        %v1622 = vunpack.c.l.b16 %v1106
        %v1623 = vunpack.c.l.b16 %v1107
        %v1624 = vunpack.c.l.b16 %v1108
        %v1625 = vunpack.c.l.b16 %v1109
        %v1626 = vunpack.c.l.b16 %v1110
        %v1627 = vunpack.c.l.b16 %v1111
        %v1628 = vunpack.c.l.b16 %v1112
        %v1629 = vunpack.c.l.b16 %v1113
        %v1630 = vunpack.c.l.b16 %v1114
        %v1631 = vunpack.c.l.b16 %v1115
        %v1632 = vunpack.c.l.b16 %v1116
        %v1633 = vunpack.c.l.b16 %v1117
        %v1634 = vunpack.c.l.b16 %v1118
        %v1635 = vunpack.c.l.b16 %v1119
        %v1636 = vunpack.c.l.b16 %v1120
        %v1637 = vunpack.c.l.b16 %v1121
        %v1638 = vunpack.c.l.b16 %v1122
        %v1639 = vunpack.c.l.b16 %v1123
        %v1640 = vunpack.c.l.b16 %v1124
        %v1641 = vunpack.c.l.b16 %v1125
        %v1642 = vunpack.c.l.b16 %v1126
        %v1643 = vunpack.c.l.b16 %v1127
        %v1644 = vunpack.c.l.b16 %v1128
        %v1645 = vunpack.c.l.b16 %v1129
        %v1646 = vunpack.c.l.b16 %v1130
        %v1647 = vunpack.c.l.b16 %v1131
        %v1648 = vunpack.c.l.b16 %v1132
        %v1649 = vunpack.c.l.b16 %v1133
        %v1650 = vunpack.c.l.b16 %v1134
        %v1651 = vunpack.c.l.b16 %v1135
        %v1652 = vunpack.c.l.b16 %v1136
        %v1653 = vunpack.c.l.b16 %v1137
        %v1654 = vunpack.c.l.b16 %v1138
        %v1655 = vunpack.c.l.b16 %v1139
        %v1656 = vunpack.c.l.b16 %v1140
        %v1657 = vunpack.c.l.b16 %v1141
        %v1658 = vunpack.c.l.b16 %v1142
        %v1659 = vunpack.c.l.b16 %v1143
        %v1660 = vunpack.c.l.b16 %v1144
        %v1661 = vunpack.c.l.b16 %v1145
        %v1662 = vunpack.c.l.b16 %v1146
        %v1663 = vunpack.c.l.b16 %v1147
        %v1664 = vunpack.c.l.b16 %v1148
        %v1665 = vunpack.c.l.b16 %v1149
        %v1666 = vunpack.c.l.b16 %v1150
        %v1667 = vunpack.c.l.b16 %v1151
        %v1668 = vunpack.c.l.b16 %v1152
        %v1669 = vunpack.c.l.b16 %v1153
        %v1670 = vunpack.c.l.b16 %v1154
        %v1671 = vunpack.c.l.b16 %v1155
        %v1672 = vunpack.c.l.b16 %v1156
        %v1673 = vunpack.c.l.b16 %v1157
        %v1674 = vunpack.c.l.b16 %v1158
        %v1675 = vunpack.c.l.b16 %v1159
        %v1676 = vunpack.c.l.b16 %v1160
        %v1677 = vunpack.c.l.b16 %v1161
        %v1678 = vunpack.c.l.b16 %v1162
        %v1679 = vunpack.c.l.b16 %v1163
        %v1680 = vunpack.c.l.b16 %v1164
        %v1681 = vunpack.c.l.b16 %v1165
        %v1682 = vunpack.c.l.b16 %v1166
        %v1683 = vunpack.c.l.b16 %v1167
        %v1684 = vunpack.c.l.b16 %v1168
        %v1685 = vunpack.c.l.b16 %v1169
        %v1686 = vunpack.c.l.b16 %v1170
        %v1687 = vunpack.c.l.b16 %v1171
        %v1688 = vunpack.c.l.b16 %v1172
        %v1689 = vunpack.c.l.b16 %v1173
        %v1690 = vunpack.c.l.b16 %v1174
        %v1691 = vunpack.c.l.b16 %v1175
        %v1692 = vunpack.c.l.b16 %v1176
        %v1693 = vunpack.c.l.b16 %v1177
        %v1694 = vunpack.c.l.b16 %v1178
        %v1695 = vunpack.c.l.b16 %v1179
        %v1696 = vunpack.c.l.b16 %v1180
        %v1697 = vunpack.c.l.b16 %v1181
        %v1698 = vunpack.c.l.b16 %v1182
        %v1699 = vunpack.c.l.b16 %v1183
        %v1700 = vunpack.c.l.b16 %v1184
        %v1701 = vunpack.c.l.b16 %v1185
        %v1702 = vunpack.c.l.b16 %v1186
        %v1703 = vunpack.c.l.b16 %v1187
        %v1704 = vunpack.c.l.b16 %v1188
        %v1705 = vunpack.c.l.b16 %v1189
        %v1706 = vunpack.c.l.b16 %v1190
        %v1707 = vunpack.c.l.b16 %v1191
        %v1708 = vunpack.c.l.b16 %v1192
        %v1709 = vunpack.c.l.b16 %v1193
        %v1710 = vunpack.c.l.b16 %v1194
        %v1711 = vunpack.c.l.b16 %v1195
        %v1712 = vunpack.c.l.b16 %v1196
        %v1713 = vunpack.c.l.b16 %v1197
        %v1714 = vunpack.c.l.b16 %v1198
        %v1715 = vunpack.c.l.b16 %v1199
        %v1716 = vunpack.c.l.b16 %v1200
        %v1717 = vunpack.c.l.b16 %v1201
        %v1718 = vunpack.c.l.b16 %v1202
        %v1719 = vunpack.c.l.b16 %v1203
        %v1720 = vunpack.c.l.b16 %v1204
        %v1721 = vunpack.c.l.b16 %v1205
        %v1722 = vunpack.c.l.b16 %v1206
        %v1723 = vunpack.c.l.b16 %v1207
        %v1724 = vunpack.c.l.b16 %v1208
        %v1725 = vunpack.c.l.b16 %v1209
        %v1726 = vunpack.c.l.b16 %v1210
        %v1727 = vunpack.c.l.b16 %v1211
        %v1728 = vunpack.c.l.b16 %v1212
        %v1729 = vunpack.c.l.b16 %v1213
        %v1730 = vunpack.c.l.b16 %v1214
        %v1731 = vunpack.c.l.b16 %v1215
        %v1732 = vunpack.c.l.b16 %v1216
        %v1733 = vunpack.c.l.b16 %v1217
        %v1734 = vunpack.c.l.b16 %v1218
        %v1735 = vunpack.c.l.b16 %v1219
        %v1736 = vunpack.c.l.b16 %v1220
        %v1737 = vunpack.c.l.b16 %v1221
        %v1738 = vunpack.c.l.b16 %v1222
        %v1739 = vunpack.c.l.b16 %v1223
        %v1740 = vunpack.c.l.b16 %v1224
        %v1741 = vunpack.c.l.b16 %v1225
        %v1742 = vunpack.c.l.b16 %v1226
        %v1743 = vunpack.c.l.b16 %v1227
        %v1744 = vunpack.c.l.b16 %v1228
        %v1745 = vunpack.c.l.b16 %v1229
        %v1746 = vunpack.c.l.b16 %v1230
        %v1747 = vunpack.c.l.b16 %v1231
        %v1748 = vunpack.c.l.b16 %v1232
        %v1749 = vunpack.c.l.b16 %v1233
        %v1750 = vunpack.c.l.b16 %v1234
        %v1751 = vunpack.c.l.b16 %v1235
        %v1752 = vunpack.c.l.b16 %v1236
        %v1753 = vunpack.c.l.b16 %v1237
        %v1754 = vunpack.c.l.b16 %v1238
        %v1755 = vunpack.c.l.b16 %v1239
        %v1756 = vunpack.c.l.b16 %v1240
        %v1757 = vunpack.c.l.b16 %v1241
        %v1758 = vunpack.c.l.b16 %v1242
        %v1759 = vunpack.c.l.b16 %v1243
        %v1760 = vunpack.c.l.b16 %v1244
        %v1761 = vunpack.c.l.b16 %v1245
        %v1762 = vunpack.c.l.b16 %v1246
        %v1763 = vunpack.c.l.b16 %v1247
        %v1764 = vunpack.c.l.b16 %v1248
        %v1765 = vunpack.c.l.b16 %v1249
        %v1766 = vunpack.c.l.b16 %v1250
        %v1767 = vunpack.c.l.b16 %v1251
        %v1768 = vunpack.c.l.b16 %v1252
        %v1769 = vunpack.c.l.b16 %v1253
        %v1770 = vunpack.c.l.b16 %v1254
        %v1771 = vunpack.c.l.b16 %v1255
        %v1772 = vunpack.c.l.b16 %v1256
        %v1773 = vunpack.c.l.b16 %v1257
        %v1774 = vunpack.c.l.b16 %v1258
        %v1775 = vunpack.c.l.b16 %v1259
        %v1776 = vunpack.c.l.b16 %v1260
        %v1777 = vunpack.c.l.b16 %v1261
        %v1778 = vunpack.c.l.b16 %v1262
        %v1779 = vunpack.c.l.b16 %v1263
        %v1780 = vunpack.c.l.b16 %v1264
        %v1781 = vunpack.c.l.b16 %v1265
        %v1782 = vunpack.c.l.b16 %v1266
        %v1783 = vunpack.c.l.b16 %v1267
        %v1784 = vunpack.c.l.b16 %v1268
        %v1785 = vunpack.c.l.b16 %v1269
        %v1786 = vunpack.c.l.b16 %v1270
        %v1787 = vunpack.c.l.b16 %v1271
        %v1788 = vunpack.c.l.b16 %v1272
        %v1789 = vunpack.c.l.b16 %v1273
        %v1790 = vunpack.c.l.b16 %v1274
        %v1791 = vunpack.c.l.b16 %v1275
        %v1792 = vunpack.c.l.b16 %v1276
        %v1793 = vunpack.c.l.b16 %v1277
        %v1794 = vunpack.c.l.b16 %v1278
        %v1795 = vunpack.c.l.b16 %v1279
        %v1796 = vunpack.c.l.b16 %v1280
        %v1797 = vunpack.c.l.b16 %v1281
        %v1798 = vunpack.c.l.b16 %v1282
        %v1799 = vunpack.c.l.b16 %v1283
        %v1800 = vunpack.c.l.b16 %v1284
        %v1801 = vunpack.c.l.b16 %v1285
        %v1802 = vunpack.c.l.b16 %v1286
        %v1803 = vunpack.c.l.b16 %v1287
        %v1804 = vunpack.c.l.b16 %v1288
        %v1805 = vunpack.c.l.b16 %v1289
        %v1806 = vunpack.c.l.b16 %v1290
        %v1807 = vunpack.c.l.b16 %v1291
        %v1808 = vunpack.c.l.b16 %v1292
        %v1809 = vunpack.c.l.b16 %v1293
        %v1810 = vunpack.c.l.b16 %v1294
        %v1811 = vunpack.c.l.b16 %v1295
        %v1812 = vunpack.c.l.b16 %v1296
        %v1813 = vunpack.c.l.b16 %v1297
        %v1814 = vunpack.c.l.b16 %v1298
        %v1815 = vunpack.c.l.b16 %v1299
        %v1816 = vunpack.c.l.b16 %v1300
        %v1817 = vunpack.c.l.b16 %v1301
        %v1818 = vunpack.c.l.b16 %v1302
        %v1819 = vunpack.c.l.b16 %v1303
        %v1820 = vunpack.c.l.b16 %v1304
        %v1821 = vunpack.c.l.b16 %v1305
        %v1822 = vunpack.c.l.b16 %v1306
        %v1823 = vunpack.c.l.b16 %v1307
        %v1824 = vunpack.c.l.b16 %v1308
        %v1825 = vunpack.c.l.b16 %v1309
        %v1826 = vunpack.c.l.b16 %v1310
        %v1827 = vunpack.c.l.b16 %v1311
        %v1828 = vunpack.c.l.b16 %v1312
        %v1829 = vunpack.c.l.b16 %v1313
        %v1830 = vunpack.c.l.b16 %v1314
        %v1831 = vunpack.c.l.b16 %v1315
        %v1832 = vunpack.c.l.b16 %v1316
        %v1833 = vunpack.c.l.b16 %v1317
        %v1834 = vunpack.c.l.b16 %v1318
        %v1835 = vunpack.c.l.b16 %v1319
        %v1836 = vunpack.c.l.b16 %v1320
        %v1837 = vunpack.c.l.b16 %v1321
        %v1838 = vunpack.c.l.b16 %v1322
        %v1839 = vunpack.c.l.b16 %v1323
        %v1840 = vunpack.c.l.b16 %v1324
        %v1841 = vunpack.c.l.b16 %v1325
        %v1842 = vunpack.c.l.b16 %v1326
        %v1843 = vunpack.c.l.b16 %v1327
        %v1844 = vunpack.c.l.b16 %v1328
        %v1845 = vunpack.c.l.b16 %v1329
        %v1846 = vunpack.c.l.b16 %v1330
        %v1847 = vunpack.c.l.b16 %v1331
        %v1848 = vunpack.c.l.b16 %v1332
        %v1849 = vunpack.c.l.b16 %v1333
        %v1850 = vunpack.c.l.b16 %v1334
        %v1851 = vunpack.c.l.b16 %v1335
        %v1852 = vunpack.c.l.b16 %v1336
        %v1853 = vunpack.c.l.b16 %v1337
        %v1854 = vunpack.c.l.b16 %v1338
        %v1855 = vunpack.c.l.b16 %v1339
        %v1856 = vunpack.c.l.b16 %v1340
        %v1857 = vunpack.c.l.b16 %v1341
        %v1858 = vunpack.c.l.b16 %v1342
        %v1859 = vunpack.c.l.b16 %v1343
        %v1860 = vunpack.c.l.b16 %v1344
        %v1861 = vunpack.c.l.b16 %v1345
        %v1862 = vunpack.c.l.b16 %v1346
        %v1863 = vunpack.c.l.b16 %v1347
        %v1864 = vunpack.c.l.b16 %v1348
        %v1865 = vunpack.c.l.b16 %v1349
        %v1866 = vunpack.c.l.b16 %v1350
        %v1867 = vunpack.c.l.b16 %v1351
        %v1868 = vunpack.c.l.b16 %v1352
        %v1869 = vunpack.c.l.b16 %v1353
        %v1870 = vunpack.c.l.b16 %v1354
        %v1871 = vpack.c.b16 %v1616, %v1615
        %v1872 = vpack.c.b16 %v1618, %v1617
        %v1873 = vpack.c.b16 %v1620, %v1619
        %v1874 = vpack.c.b16 %v1622, %v1621
        %v1875 = vpack.c.b16 %v1624, %v1623
        %v1876 = vpack.c.b16 %v1626, %v1625
        %v1877 = vpack.c.b16 %v1628, %v1627
        %v1878 = vpack.c.b16 %v1630, %v1629
        %v1879 = vpack.c.b16 %v1632, %v1631
        %v1880 = vpack.c.b16 %v1634, %v1633
        %v1881 = vpack.c.b16 %v1636, %v1635
        %v1882 = vpack.c.b16 %v1638, %v1637
        %v1883 = vpack.c.b16 %v1640, %v1639
        %v1884 = vpack.c.b16 %v1642, %v1641
        %v1885 = vpack.c.b16 %v1644, %v1643
        %v1886 = vpack.c.b16 %v1646, %v1645
        %v1887 = vpack.c.b16 %v1648, %v1647
        %v1888 = vpack.c.b16 %v1650, %v1649
        %v1889 = vpack.c.b16 %v1652, %v1651
        %v1890 = vpack.c.b16 %v1654, %v1653
        %v1891 = vpack.c.b16 %v1656, %v1655
        %v1892 = vpack.c.b16 %v1658, %v1657
        %v1893 = vpack.c.b16 %v1660, %v1659
        %v1894 = vpack.c.b16 %v1662, %v1661
        %v1895 = vpack.c.b16 %v1664, %v1663
        %v1896 = vpack.c.b16 %v1666, %v1665
        %v1897 = vpack.c.b16 %v1668, %v1667
        %v1898 = vpack.c.b16 %v1670, %v1669
        %v1899 = vpack.c.b16 %v1672, %v1671
        %v1900 = vpack.c.b16 %v1674, %v1673
        %v1901 = vpack.c.b16 %v1676, %v1675
        %v1902 = vpack.c.b16 %v1678, %v1677
        %v1903 = vpack.c.b16 %v1680, %v1679
        %v1904 = vpack.c.b16 %v1682, %v1681
        %v1905 = vpack.c.b16 %v1684, %v1683
        %v1906 = vpack.c.b16 %v1686, %v1685
        %v1907 = vpack.c.b16 %v1688, %v1687
        %v1908 = vpack.c.b16 %v1690, %v1689
        %v1909 = vpack.c.b16 %v1692, %v1691
        %v1910 = vpack.c.b16 %v1694, %v1693
        %v1911 = vpack.c.b16 %v1696, %v1695
        %v1912 = vpack.c.b16 %v1698, %v1697
        %v1913 = vpack.c.b16 %v1700, %v1699
        %v1914 = vpack.c.b16 %v1702, %v1701
        %v1915 = vpack.c.b16 %v1704, %v1703
        %v1916 = vpack.c.b16 %v1706, %v1705
        %v1917 = vpack.c.b16 %v1708, %v1707
        %v1918 = vpack.c.b16 %v1710, %v1709
        %v1919 = vpack.c.b16 %v1712, %v1711
        %v1920 = vpack.c.b16 %v1714, %v1713
        %v1921 = vpack.c.b16 %v1716, %v1715
        %v1922 = vpack.c.b16 %v1718, %v1717
        %v1923 = vpack.c.b16 %v1720, %v1719
        %v1924 = vpack.c.b16 %v1722, %v1721
        %v1925 = vpack.c.b16 %v1724, %v1723
        %v1926 = vpack.c.b16 %v1726, %v1725
        %v1927 = vpack.c.b16 %v1728, %v1727
        %v1928 = vpack.c.b16 %v1730, %v1729
        %v1929 = vpack.c.b16 %v1732, %v1731
        %v1930 = vpack.c.b16 %v1734, %v1733
        %v1931 = vpack.c.b16 %v1736, %v1735
        %v1932 = vpack.c.b16 %v1738, %v1737
        %v1933 = vpack.c.b16 %v1740, %v1739
        %v1934 = vpack.c.b16 %v1742, %v1741
        %v1935 = vpack.c.b16 %v1744, %v1743
        %v1936 = vpack.c.b16 %v1746, %v1745
        %v1937 = vpack.c.b16 %v1748, %v1747
        %v1938 = vpack.c.b16 %v1750, %v1749
        %v1939 = vpack.c.b16 %v1752, %v1751
        %v1940 = vpack.c.b16 %v1754, %v1753
        %v1941 = vpack.c.b16 %v1756, %v1755
        %v1942 = vpack.c.b16 %v1758, %v1757
        %v1943 = vpack.c.b16 %v1760, %v1759
        %v1944 = vpack.c.b16 %v1762, %v1761
        %v1945 = vpack.c.b16 %v1764, %v1763
        %v1946 = vpack.c.b16 %v1766, %v1765
        %v1947 = vpack.c.b16 %v1768, %v1767
        %v1948 = vpack.c.b16 %v1770, %v1769
        %v1949 = vpack.c.b16 %v1772, %v1771
        %v1950 = vpack.c.b16 %v1774, %v1773
        %v1951 = vpack.c.b16 %v1776, %v1775
        %v1952 = vpack.c.b16 %v1778, %v1777
        %v1953 = vpack.c.b16 %v1780, %v1779
        %v1954 = vpack.c.b16 %v1782, %v1781
        %v1955 = vpack.c.b16 %v1784, %v1783
        %v1956 = vpack.c.b16 %v1786, %v1785
        %v1957 = vpack.c.b16 %v1788, %v1787
        %v1958 = vpack.c.b16 %v1790, %v1789
        %v1959 = vpack.c.b16 %v1792, %v1791
        %v1960 = vpack.c.b16 %v1794, %v1793
        %v1961 = vpack.c.b16 %v1796, %v1795
        %v1962 = vpack.c.b16 %v1798, %v1797
        %v1963 = vpack.c.b16 %v1800, %v1799
        %v1964 = vpack.c.b16 %v1802, %v1801
        %v1965 = vpack.c.b16 %v1804, %v1803
        %v1966 = vpack.c.b16 %v1806, %v1805
        %v1967 = vpack.c.b16 %v1808, %v1807
        %v1968 = vpack.c.b16 %v1810, %v1809
        %v1969 = vpack.c.b16 %v1812, %v1811
        %v1970 = vpack.c.b16 %v1814, %v1813
        %v1971 = vpack.c.b16 %v1816, %v1815
        %v1972 = vpack.c.b16 %v1818, %v1817
        %v1973 = vpack.c.b16 %v1820, %v1819
        %v1974 = vpack.c.b16 %v1822, %v1821
        %v1975 = vpack.c.b16 %v1824, %v1823
        %v1976 = vpack.c.b16 %v1826, %v1825
        %v1977 = vpack.c.b16 %v1828, %v1827
        %v1978 = vpack.c.b16 %v1830, %v1829
        %v1979 = vpack.c.b16 %v1832, %v1831
        %v1980 = vpack.c.b16 %v1834, %v1833
        %v1981 = vpack.c.b16 %v1836, %v1835
        %v1982 = vpack.c.b16 %v1838, %v1837
        %v1983 = vpack.c.b16 %v1840, %v1839
        %v1984 = vpack.c.b16 %v1842, %v1841
        %v1985 = vpack.c.b16 %v1844, %v1843
        %v1986 = vpack.c.b16 %v1846, %v1845
        %v1987 = vpack.c.b16 %v1848, %v1847
        %v1988 = vpack.c.b16 %v1850, %v1849
        %v1989 = vpack.c.b16 %v1852, %v1851
        %v1990 = vpack.c.b16 %v1854, %v1853
        %v1991 = vpack.c.b16 %v1856, %v1855
        %v1992 = vpack.c.b16 %v1858, %v1857
        %v1993 = vpack.c.b16 %v1860, %v1859
        %v1994 = vpack.c.b16 %v1862, %v1861
        %v1995 = vpack.c.b16 %v1864, %v1863
        %v1996 = vpack.c.b16 %v1866, %v1865
        %v1997 = vpack.c.b16 %v1868, %v1867
        %v1998 = vpack.c.b16 %v1870, %v1869
        %2127 = vmatpush.bf16.msra.mxu0 %v1878
        %2128 = vmatpush.bf16.msra.mxu0 %v1877
        %2129 = vmatpush.bf16.msra.mxu0 %v1876
        %2130 = vmatpush.bf16.msra.mxu0 %v1875
        %2131 = vmatpush.bf16.msra.mxu0 %v1874
        %2132 = vmatpush.bf16.msra.mxu0 %v1873
        %2133 = vmatpush.bf16.msra.mxu0 %v1872
        %2134 = vmatpush.bf16.msra.mxu0 %v1871
        %2135 = vmatmul.bf16.gmra.mxu0 %v991
        %v2136 = vpop.f32.mrf.mxu0
        %v2137 = vadd.f32 %v1357, %v2136
        %v2138 = vpop.f32.mrf.mxu0
        %2139 = vdwg.mxu0
        %2140 = vmatpush.bf16.msra.mxu0 %v1886
        %2141 = vmatpush.bf16.msra.mxu0 %v1885
        %2142 = vmatpush.bf16.msra.mxu0 %v1884
        %2143 = vmatpush.bf16.msra.mxu0 %v1883
        %2144 = vmatpush.bf16.msra.mxu0 %v1882
        %2145 = vmatpush.bf16.msra.mxu0 %v1881
        %2146 = vmatpush.bf16.msra.mxu0 %v1880
        %2147 = vmatpush.bf16.msra.mxu0 %v1879
        %2148 = vmatmul.bf16.gmra.mxu0 %v992
        %v2149 = vpop.f32.mrf.mxu0
        %v2150 = vadd.f32 %v2137, %v2149
        %v2151 = vpop.f32.mrf.mxu0
        %2152 = vdwg.mxu0
        %2153 = vmatpush.bf16.msra.mxu0 %v1894
        %2154 = vmatpush.bf16.msra.mxu0 %v1893
        %2155 = vmatpush.bf16.msra.mxu0 %v1892
        %2156 = vmatpush.bf16.msra.mxu0 %v1891
        %2157 = vmatpush.bf16.msra.mxu0 %v1890
        %2158 = vmatpush.bf16.msra.mxu0 %v1889
        %2159 = vmatpush.bf16.msra.mxu0 %v1888
        %2160 = vmatpush.bf16.msra.mxu0 %v1887
        %2161 = vmatmul.bf16.gmra.mxu0 %v1008
        %v2162 = vpop.f32.mrf.mxu0
        %v2163 = vadd.f32 %v2150, %v2162
        %v2164 = vpop.f32.mrf.mxu0
        %2165 = vdwg.mxu0
        %2166 = vmatpush.bf16.msra.mxu0 %v1902
        %2167 = vmatpush.bf16.msra.mxu0 %v1901
        %2168 = vmatpush.bf16.msra.mxu0 %v1900
        %2169 = vmatpush.bf16.msra.mxu0 %v1899
        %2170 = vmatpush.bf16.msra.mxu0 %v1898
        %2171 = vmatpush.bf16.msra.mxu0 %v1897
        %2172 = vmatpush.bf16.msra.mxu0 %v1896
        %2173 = vmatpush.bf16.msra.mxu0 %v1895
        %2174 = vmatmul.bf16.gmra.mxu0 %v1019
        %v2175 = vpop.f32.mrf.mxu0
        %v2176 = vadd.f32 %v2163, %v2175
        %v2177 = vpop.f32.mrf.mxu0
        %2178 = vdwg.mxu0
        %2179 = vmatpush.bf16.msra.mxu0 %v1910
        %2180 = vmatpush.bf16.msra.mxu0 %v1909
        %2181 = vmatpush.bf16.msra.mxu0 %v1908
        %2182 = vmatpush.bf16.msra.mxu0 %v1907
        %2183 = vmatpush.bf16.msra.mxu0 %v1906
        %2184 = vmatpush.bf16.msra.mxu0 %v1905
        %2185 = vmatpush.bf16.msra.mxu0 %v1904
        %2186 = vmatpush.bf16.msra.mxu0 %v1903
        %2187 = vmatmul.bf16.gmra.mxu0 %v993
        %v2188 = vpop.f32.mrf.mxu0
        %v2189 = vadd.f32 %v2176, %v2188
        %v2190 = vpop.f32.mrf.mxu0
        %2191 = vdwg.mxu0
        %2192 = vmatpush.bf16.msra.mxu0 %v1918
        %2193 = vmatpush.bf16.msra.mxu0 %v1917
        %2194 = vmatpush.bf16.msra.mxu0 %v1916
        %2195 = vmatpush.bf16.msra.mxu0 %v1915
        %2196 = vmatpush.bf16.msra.mxu0 %v1914
        %2197 = vmatpush.bf16.msra.mxu0 %v1913
        %2198 = vmatpush.bf16.msra.mxu0 %v1912
        %2199 = vmatpush.bf16.msra.mxu0 %v1911
        %2200 = vmatmul.bf16.gmra.mxu0 %v994
        %v2201 = vpop.f32.mrf.mxu0
        %v2202 = vadd.f32 %v2189, %v2201
        %v2203 = vpop.f32.mrf.mxu0
        %2204 = vdwg.mxu0
        %2205 = vmatpush.bf16.msra.mxu0 %v1926
        %2206 = vmatpush.bf16.msra.mxu0 %v1925
        %2207 = vmatpush.bf16.msra.mxu0 %v1924
        %2208 = vmatpush.bf16.msra.mxu0 %v1923
        %2209 = vmatpush.bf16.msra.mxu0 %v1922
        %2210 = vmatpush.bf16.msra.mxu0 %v1921
        %2211 = vmatpush.bf16.msra.mxu0 %v1920
        %2212 = vmatpush.bf16.msra.mxu0 %v1919
        %2213 = vmatmul.bf16.gmra.mxu0 %v1030
        %v2214 = vpop.f32.mrf.mxu0
        %v2215 = vadd.f32 %v2202, %v2214
        %v2216 = vpop.f32.mrf.mxu0
        %2217 = vdwg.mxu0
        %2218 = vmatpush.bf16.msra.mxu0 %v1934
        %2219 = vmatpush.bf16.msra.mxu0 %v1933
        %2220 = vmatpush.bf16.msra.mxu0 %v1932
        %2221 = vmatpush.bf16.msra.mxu0 %v1931
        %2222 = vmatpush.bf16.msra.mxu0 %v1930
        %2223 = vmatpush.bf16.msra.mxu0 %v1929
        %2224 = vmatpush.bf16.msra.mxu0 %v1928
        %2225 = vmatpush.bf16.msra.mxu0 %v1927
        %2226 = vmatmul.bf16.gmra.mxu0 %v1041
        %v2227 = vpop.f32.mrf.mxu0
        %v2228 = vadd.f32 %v2215, %v2227
        %v2229 = vpop.f32.mrf.mxu0
        %2230 = vdwg.mxu0
        %2231 = vmatpush.bf16.msra.mxu0 %v1942
        %2232 = vmatpush.bf16.msra.mxu0 %v1941
        %2233 = vmatpush.bf16.msra.mxu0 %v1940
        %2234 = vmatpush.bf16.msra.mxu0 %v1939
        %2235 = vmatpush.bf16.msra.mxu0 %v1938
        %2236 = vmatpush.bf16.msra.mxu0 %v1937
        %2237 = vmatpush.bf16.msra.mxu0 %v1936
        %2238 = vmatpush.bf16.msra.mxu0 %v1935
        %2239 = vmatmul.bf16.gmra.mxu0 %v1046
        %v2240 = vpop.f32.mrf.mxu0
        %v2241 = vadd.f32 %v2228, %v2240
        %v2242 = vpop.f32.mrf.mxu0
        %2243 = vdwg.mxu0
        %2244 = vmatpush.bf16.msra.mxu0 %v1950
        %2245 = vmatpush.bf16.msra.mxu0 %v1949
        %2246 = vmatpush.bf16.msra.mxu0 %v1948
        %2247 = vmatpush.bf16.msra.mxu0 %v1947
        %2248 = vmatpush.bf16.msra.mxu0 %v1946
        %2249 = vmatpush.bf16.msra.mxu0 %v1945
        %2250 = vmatpush.bf16.msra.mxu0 %v1944
        %2251 = vmatpush.bf16.msra.mxu0 %v1943
        %2252 = vmatmul.bf16.gmra.mxu0 %v1051
        %v2253 = vpop.f32.mrf.mxu0
        %v2254 = vadd.f32 %v2241, %v2253
        %v2255 = vpop.f32.mrf.mxu0
        %2256 = vdwg.mxu0
        %2257 = vmatpush.bf16.msra.mxu0 %v1958
        %2258 = vmatpush.bf16.msra.mxu0 %v1957
        %2259 = vmatpush.bf16.msra.mxu0 %v1956
        %2260 = vmatpush.bf16.msra.mxu0 %v1955
        %2261 = vmatpush.bf16.msra.mxu0 %v1954
        %2262 = vmatpush.bf16.msra.mxu0 %v1953
        %2263 = vmatpush.bf16.msra.mxu0 %v1952
        %2264 = vmatpush.bf16.msra.mxu0 %v1951
        %2265 = vmatmul.bf16.gmra.mxu0 %v1060
        %v2266 = vpop.f32.mrf.mxu0
        %v2267 = vadd.f32 %v2254, %v2266
        %v2268 = vpop.f32.mrf.mxu0
        %2269 = vdwg.mxu0
        %2270 = vmatpush.bf16.msra.mxu0 %v1966
        %2271 = vmatpush.bf16.msra.mxu0 %v1965
        %2272 = vmatpush.bf16.msra.mxu0 %v1964
        %2273 = vmatpush.bf16.msra.mxu0 %v1963
        %2274 = vmatpush.bf16.msra.mxu0 %v1962
        %2275 = vmatpush.bf16.msra.mxu0 %v1961
        %2276 = vmatpush.bf16.msra.mxu0 %v1960
        %2277 = vmatpush.bf16.msra.mxu0 %v1959
        %2278 = vmatmul.bf16.gmra.mxu0 %v1069
        %v2279 = vpop.f32.mrf.mxu0
        %v2280 = vadd.f32 %v2267, %v2279
        %v2281 = vpop.f32.mrf.mxu0
        %2282 = vdwg.mxu0
        %2283 = vmatpush.bf16.msra.mxu0 %v1974
        %2284 = vmatpush.bf16.msra.mxu0 %v1973
        %2285 = vmatpush.bf16.msra.mxu0 %v1972
        %2286 = vmatpush.bf16.msra.mxu0 %v1971
        %2287 = vmatpush.bf16.msra.mxu0 %v1970
        %2288 = vmatpush.bf16.msra.mxu0 %v1969
        %2289 = vmatpush.bf16.msra.mxu0 %v1968
        %2290 = vmatpush.bf16.msra.mxu0 %v1967
        %2291 = vmatmul.bf16.gmra.mxu0 %v1074
        %v2292 = vpop.f32.mrf.mxu0
        %v2293 = vadd.f32 %v2280, %v2292
        %v2294 = vpop.f32.mrf.mxu0
        %2295 = vdwg.mxu0
        %2296 = vmatpush.bf16.msra.mxu0 %v1982
        %2297 = vmatpush.bf16.msra.mxu0 %v1981
        %2298 = vmatpush.bf16.msra.mxu0 %v1980
        %2299 = vmatpush.bf16.msra.mxu0 %v1979
        %2300 = vmatpush.bf16.msra.mxu0 %v1978
        %2301 = vmatpush.bf16.msra.mxu0 %v1977
        %2302 = vmatpush.bf16.msra.mxu0 %v1976
        %2303 = vmatpush.bf16.msra.mxu0 %v1975
        %2304 = vmatmul.bf16.gmra.mxu0 %v1079
        %v2305 = vpop.f32.mrf.mxu0
        %v2306 = vadd.f32 %v2293, %v2305
        %v2307 = vpop.f32.mrf.mxu0
        %2308 = vdwg.mxu0
        %2309 = vmatpush.bf16.msra.mxu0 %v1990
        %2310 = vmatpush.bf16.msra.mxu0 %v1989
        %2311 = vmatpush.bf16.msra.mxu0 %v1988
        %2312 = vmatpush.bf16.msra.mxu0 %v1987
        %2313 = vmatpush.bf16.msra.mxu0 %v1986
        %2314 = vmatpush.bf16.msra.mxu0 %v1985
        %2315 = vmatpush.bf16.msra.mxu0 %v1984
        %2316 = vmatpush.bf16.msra.mxu0 %v1983
        %2317 = vmatmul.bf16.gmra.mxu0 %v1088
        %v2318 = vpop.f32.mrf.mxu0
        %v2319 = vadd.f32 %v2306, %v2318
        %v2320 = vpop.f32.mrf.mxu0
        %2321 = vdwg.mxu0
        %2322 = vmatpush.bf16.msra.mxu0 %v1998
        %2323 = vmatpush.bf16.msra.mxu0 %v1997
        %2324 = vmatpush.bf16.msra.mxu0 %v1996
        %2325 = vmatpush.bf16.msra.mxu0 %v1995
        %2326 = vmatpush.bf16.msra.mxu0 %v1994
        %2327 = vmatpush.bf16.msra.mxu0 %v1993
        %2328 = vmatpush.bf16.msra.mxu0 %v1992
        %2329 = vmatpush.bf16.msra.mxu0 %v1991
        %2330 = vmatmul.bf16.gmra.mxu0 %v1097
        %v2331 = vpop.f32.mrf.mxu0
        %v2332 = vadd.f32 %v2319, %v2331
        %v2333 = vpop.f32.mrf.mxu0
        %2334 = vdwg.mxu0
        %v2335 = vmax.f32 %v2332, 0.0
        %v2336 = vpack.c.bf16 %v2335, %v2335
        %vm2337 = vcmask 1041408
        %vm2338 = vsmask.f32 1280
        %vm2339 = vmand %vm2337, %vm2338
        %v2340 = vld [vmem:[#allocation3] sm:$0x3]
        %v2341 = vsel %vm2339, %v2336, %v2340
        %2342 = vst [vmem:[#allocation3] sm:$0x3] %v2341
        %v2343 = vld [vmem:[#allocation2] sm:$0xc]
        %v2344 = vld [vmem:[%s630] sm:$0xc]
        %v2345 = vld [vmem:[%s809] sm:$0xc]
        %v2346 = vld [vmem:[%s988] sm:$0xc]
        %v2347 = vld [vmem:[#allocation2 + $0x4] sm:$0x3]
        %v2348 = vld [vmem:[%s630 + $0x4] sm:$0x3]
        %v2349 = vld [vmem:[%s809 + $0x4] sm:$0x3]
        %v2350 = vld [vmem:[%s988 + $0x4] sm:$0x3]
        %v2352 = vunpack.c.l.b16 %v2343
        %v2353 = vpack.c.b16 %v2352, %v2352
        %v2355 = vshrl.u32 %v2353, 16
        %v2357 = vshll.u32 %v2353, 16
        %v2359 = vrot.slane %v2357, 1
        %v2360 = vor.u32 %v2355, %v2359
        %v2362 = vunpack.c.l.b16 %v2344
        %v2363 = vpack.c.b16 %v2362, %v2362
        %v2365 = vshrl.u32 %v2363, 16
        %v2367 = vshll.u32 %v2363, 16
        %v2369 = vrot.slane %v2367, 1
        %v2370 = vor.u32 %v2365, %v2369
        %v2372 = vunpack.c.l.b16 %v2345
        %v2373 = vpack.c.b16 %v2372, %v2372
        %v2375 = vshrl.u32 %v2373, 16
        %v2377 = vshll.u32 %v2373, 16
        %v2379 = vrot.slane %v2377, 1
        %v2380 = vor.u32 %v2375, %v2379
        %v2382 = vunpack.c.l.b16 %v2346
        %v2383 = vpack.c.b16 %v2382, %v2382
        %v2385 = vshrl.u32 %v2383, 16
        %v2387 = vshll.u32 %v2383, 16
        %v2389 = vrot.slane %v2387, 1
        %v2390 = vor.u32 %v2385, %v2389
        %v2392 = vunpack.c.l.b16 %v2347
        %v2393 = vpack.c.b16 %v2392, %v2392
        %v2394 = vrot.slane %v2393, 6
        %v2396 = vunpack.c.l.b16 %v2348
        %v2397 = vpack.c.b16 %v2396, %v2396
        %v2398 = vrot.slane %v2397, 6
        %v2400 = vshrl.u32 %v2393, 16
        %v2402 = vrot.slane %v2400, 6
        %v2403 = vshll.u32 %v2393, 16
        %v2405 = vrot.slane %v2403, 7
        %v2406 = vor.u32 %v2402, %v2405
        %v2408 = vshrl.u32 %v2397, 16
        %v2410 = vrot.slane %v2408, 6
        %v2411 = vshll.u32 %v2397, 16
        %v2413 = vrot.slane %v2411, 7
        %v2414 = vor.u32 %v2410, %v2413
        %v2416 = vunpack.c.l.b16 %v2349
        %v2417 = vpack.c.b16 %v2416, %v2416
        %v2418 = vrot.slane %v2417, 6
        %v2420 = vunpack.c.l.b16 %v2350
        %v2421 = vpack.c.b16 %v2420, %v2420
        %v2422 = vrot.slane %v2421, 6
        %v2424 = vshrl.u32 %v2417, 16
        %v2426 = vrot.slane %v2424, 6
        %v2427 = vshll.u32 %v2417, 16
        %v2429 = vrot.slane %v2427, 7
        %v2430 = vor.u32 %v2426, %v2429
        %v2432 = vshrl.u32 %v2421, 16
        %v2434 = vrot.slane %v2432, 6
        %v2435 = vshll.u32 %v2421, 16
        %v2437 = vrot.slane %v2435, 7
        %v2438 = vor.u32 %v2434, %v2437
        %v2439 = vld [vmem:[%s3] sm:$0xf]
        %v2440 = vld [vmem:[%s3 + $0x4] sm:$0xf]
        %v2441 = vld [vmem:[%s3 + $0x8] sm:$0xf]
        %v2442 = vld [vmem:[%s3 + $0xc] sm:$0xf]
        %v2443 = vld [vmem:[%s3 + $0x10] sm:$0xf]
        %v2444 = vld [vmem:[%s3 + $0x14] sm:$0xf]
        %v2445 = vld [vmem:[%s3 + $0x18] sm:$0xf]
        %v2446 = vld [vmem:[%s3 + $0x1c] sm:$0xf]
        %v2447 = vld [vmem:[%s3 + $0x20] sm:$0xf]
        %v2448 = vld [vmem:[%s3 + $0x24] sm:$0xf]
        %v2449 = vld [vmem:[%s3 + $0x28] sm:$0xf]
        %v2450 = vld [vmem:[%s3 + $0x2c] sm:$0xf]
        %v2451 = vld [vmem:[%s3 + $0x30] sm:$0xf]
        %v2452 = vld [vmem:[%s3 + $0x34] sm:$0xf]
        %v2453 = vld [vmem:[%s3 + $0x38] sm:$0xf]
        %v2454 = vld [vmem:[%s3 + $0x3c] sm:$0xf]
        %v2455 = vld [vmem:[%s3 + $0x40] sm:$0xf]
        %v2456 = vld [vmem:[%s3 + $0x44] sm:$0xf]
        %v2457 = vld [vmem:[%s3 + $0x48] sm:$0xf]
        %v2458 = vld [vmem:[%s3 + $0x4c] sm:$0xf]
        %v2459 = vld [vmem:[%s3 + $0x50] sm:$0xf]
        %v2460 = vld [vmem:[%s3 + $0x54] sm:$0xf]
        %v2461 = vld [vmem:[%s3 + $0x58] sm:$0xf]
        %v2462 = vld [vmem:[%s3 + $0x5c] sm:$0xf]
        %v2463 = vld [vmem:[%s3 + $0x60] sm:$0xf]
        %v2464 = vld [vmem:[%s3 + $0x64] sm:$0xf]
        %v2465 = vld [vmem:[%s3 + $0x68] sm:$0xf]
        %v2466 = vld [vmem:[%s3 + $0x6c] sm:$0xf]
        %v2467 = vld [vmem:[%s3 + $0x70] sm:$0xf]
        %v2468 = vld [vmem:[%s3 + $0x74] sm:$0xf]
        %v2469 = vld [vmem:[%s3 + $0x78] sm:$0xf]
        %v2470 = vld [vmem:[%s3 + $0x7c] sm:$0xf]
        %v2471 = vld [vmem:[%s3 + $0x80] sm:$0xf]
        %v2472 = vld [vmem:[%s3 + $0x84] sm:$0xf]
        %v2473 = vld [vmem:[%s3 + $0x88] sm:$0xf]
        %v2474 = vld [vmem:[%s3 + $0x8c] sm:$0xf]
        %v2475 = vld [vmem:[%s3 + $0x90] sm:$0xf]
        %v2476 = vld [vmem:[%s3 + $0x94] sm:$0xf]
        %v2477 = vld [vmem:[%s3 + $0x98] sm:$0xf]
        %v2478 = vld [vmem:[%s3 + $0x9c] sm:$0xf]
        %v2479 = vld [vmem:[%s3 + $0xa0] sm:$0xf]
        %v2480 = vld [vmem:[%s3 + $0xa4] sm:$0xf]
        %v2481 = vld [vmem:[%s3 + $0xa8] sm:$0xf]
        %v2482 = vld [vmem:[%s3 + $0xac] sm:$0xf]
        %v2483 = vld [vmem:[%s3 + $0xb0] sm:$0xf]
        %v2484 = vld [vmem:[%s3 + $0xb4] sm:$0xf]
        %v2485 = vld [vmem:[%s3 + $0xb8] sm:$0xf]
        %v2486 = vld [vmem:[%s3 + $0xbc] sm:$0xf]
        %v2487 = vld [vmem:[%s3 + $0xc0] sm:$0xf]
        %v2488 = vld [vmem:[%s3 + $0xc4] sm:$0xf]
        %v2489 = vld [vmem:[%s3 + $0xc8] sm:$0xf]
        %v2490 = vld [vmem:[%s3 + $0xcc] sm:$0xf]
        %v2491 = vld [vmem:[%s3 + $0xd0] sm:$0xf]
        %v2492 = vld [vmem:[%s3 + $0xd4] sm:$0xf]
        %v2493 = vld [vmem:[%s3 + $0xd8] sm:$0xf]
        %v2494 = vld [vmem:[%s3 + $0xdc] sm:$0xf]
        %v2495 = vld [vmem:[%s3 + $0xe0] sm:$0xf]
        %v2496 = vld [vmem:[%s3 + $0xe4] sm:$0xf]
        %v2497 = vld [vmem:[%s3 + $0xe8] sm:$0xf]
        %v2498 = vld [vmem:[%s3 + $0xec] sm:$0xf]
        %v2499 = vld [vmem:[%s3 + $0xf0] sm:$0xf]
        %v2500 = vld [vmem:[%s3 + $0xf4] sm:$0xf]
        %v2501 = vld [vmem:[%s3 + $0xf8] sm:$0xf]
        %v2502 = vld [vmem:[%s3 + $0xfc] sm:$0xf]
        %v2503 = vld [vmem:[%s3 + $0x100] sm:$0xf]
        %v2504 = vld [vmem:[%s3 + $0x104] sm:$0xf]
        %v2505 = vld [vmem:[%s3 + $0x108] sm:$0xf]
        %v2506 = vld [vmem:[%s3 + $0x10c] sm:$0xf]
        %v2507 = vld [vmem:[%s3 + $0x110] sm:$0xf]
        %v2508 = vld [vmem:[%s3 + $0x114] sm:$0xf]
        %v2509 = vld [vmem:[%s3 + $0x118] sm:$0xf]
        %v2510 = vld [vmem:[%s3 + $0x11c] sm:$0xf]
        %v2511 = vld [vmem:[%s3 + $0x120] sm:$0xf]
        %v2512 = vld [vmem:[%s3 + $0x124] sm:$0xf]
        %v2513 = vld [vmem:[%s3 + $0x128] sm:$0xf]
        %v2514 = vld [vmem:[%s3 + $0x12c] sm:$0xf]
        %v2515 = vld [vmem:[%s3 + $0x130] sm:$0xf]
        %v2516 = vld [vmem:[%s3 + $0x134] sm:$0xf]
        %v2517 = vld [vmem:[%s3 + $0x138] sm:$0xf]
        %v2518 = vld [vmem:[%s3 + $0x13c] sm:$0xf]
        %v2519 = vld [vmem:[%s3 + $0x140] sm:$0xf]
        %v2520 = vld [vmem:[%s3 + $0x144] sm:$0xf]
        %v2521 = vld [vmem:[%s3 + $0x148] sm:$0xf]
        %v2522 = vld [vmem:[%s3 + $0x14c] sm:$0xf]
        %v2523 = vld [vmem:[%s3 + $0x150] sm:$0xf]
        %v2524 = vld [vmem:[%s3 + $0x154] sm:$0xf]
        %v2525 = vld [vmem:[%s3 + $0x158] sm:$0xf]
        %v2526 = vld [vmem:[%s3 + $0x15c] sm:$0xf]
        %v2527 = vld [vmem:[%s3 + $0x160] sm:$0xf]
        %v2528 = vld [vmem:[%s3 + $0x164] sm:$0xf]
        %v2529 = vld [vmem:[%s3 + $0x168] sm:$0xf]
        %v2530 = vld [vmem:[%s3 + $0x16c] sm:$0xf]
        %v2531 = vld [vmem:[%s3 + $0x170] sm:$0xf]
        %v2532 = vld [vmem:[%s3 + $0x174] sm:$0xf]
        %v2533 = vld [vmem:[%s3 + $0x178] sm:$0xf]
        %v2534 = vld [vmem:[%s3 + $0x17c] sm:$0xf]
        %v2535 = vld [vmem:[%s3 + $0x180] sm:$0xf]
        %v2536 = vld [vmem:[%s3 + $0x184] sm:$0xf]
        %v2537 = vld [vmem:[%s3 + $0x188] sm:$0xf]
        %v2538 = vld [vmem:[%s3 + $0x18c] sm:$0xf]
        %v2539 = vld [vmem:[%s3 + $0x190] sm:$0xf]
        %v2540 = vld [vmem:[%s3 + $0x194] sm:$0xf]
        %v2541 = vld [vmem:[%s3 + $0x198] sm:$0xf]
        %v2542 = vld [vmem:[%s3 + $0x19c] sm:$0xf]
        %v2543 = vld [vmem:[%s3 + $0x1a0] sm:$0xf]
        %v2544 = vld [vmem:[%s3 + $0x1a4] sm:$0xf]
        %v2545 = vld [vmem:[%s3 + $0x1a8] sm:$0xf]
        %v2546 = vld [vmem:[%s3 + $0x1ac] sm:$0xf]
        %v2547 = vld [vmem:[%s3 + $0x1b0] sm:$0xf]
        %v2548 = vld [vmem:[%s3 + $0x1b4] sm:$0xf]
        %v2549 = vld [vmem:[%s3 + $0x1b8] sm:$0xf]
        %v2550 = vld [vmem:[%s3 + $0x1bc] sm:$0xf]
        %v2551 = vld [vmem:[%s3 + $0x1c0] sm:$0xf]
        %v2552 = vld [vmem:[%s3 + $0x1c4] sm:$0xf]
        %v2553 = vld [vmem:[%s3 + $0x1c8] sm:$0xf]
        %v2554 = vld [vmem:[%s3 + $0x1cc] sm:$0xf]
        %v2555 = vld [vmem:[%s3 + $0x1d0] sm:$0xf]
        %v2556 = vld [vmem:[%s3 + $0x1d4] sm:$0xf]
        %v2557 = vld [vmem:[%s3 + $0x1d8] sm:$0xf]
        %v2558 = vld [vmem:[%s3 + $0x1dc] sm:$0xf]
        %v2559 = vld [vmem:[%s3 + $0x1e0] sm:$0xf]
        %v2560 = vld [vmem:[%s3 + $0x1e4] sm:$0xf]
        %v2561 = vld [vmem:[%s3 + $0x1e8] sm:$0xf]
        %v2562 = vld [vmem:[%s3 + $0x1ec] sm:$0xf]
        %v2563 = vld [vmem:[%s3 + $0x1f0] sm:$0xf]
        %v2564 = vld [vmem:[%s3 + $0x1f4] sm:$0xf]
        %v2565 = vld [vmem:[%s3 + $0x1f8] sm:$0xf]
        %v2566 = vld [vmem:[%s3 + $0x1fc] sm:$0xf]
        %v2567 = vld [vmem:[%s3 + $0x200] sm:$0xf]
        %v2568 = vld [vmem:[%s3 + $0x204] sm:$0xf]
        %v2569 = vld [vmem:[%s3 + $0x208] sm:$0xf]
        %v2570 = vld [vmem:[%s3 + $0x20c] sm:$0xf]
        %v2571 = vld [vmem:[%s3 + $0x210] sm:$0xf]
        %v2572 = vld [vmem:[%s3 + $0x214] sm:$0xf]
        %v2573 = vld [vmem:[%s3 + $0x218] sm:$0xf]
        %v2574 = vld [vmem:[%s3 + $0x21c] sm:$0xf]
        %v2575 = vld [vmem:[%s3 + $0x220] sm:$0xf]
        %v2576 = vld [vmem:[%s3 + $0x224] sm:$0xf]
        %v2577 = vld [vmem:[%s3 + $0x228] sm:$0xf]
        %v2578 = vld [vmem:[%s3 + $0x22c] sm:$0xf]
        %v2579 = vld [vmem:[%s3 + $0x230] sm:$0xf]
        %v2580 = vld [vmem:[%s3 + $0x234] sm:$0xf]
        %v2581 = vld [vmem:[%s3 + $0x238] sm:$0xf]
        %v2582 = vld [vmem:[%s3 + $0x23c] sm:$0xf]
        %v2583 = vld [vmem:[%s3 + $0x240] sm:$0xf]
        %v2584 = vld [vmem:[%s3 + $0x244] sm:$0xf]
        %v2585 = vld [vmem:[%s3 + $0x248] sm:$0xf]
        %v2586 = vld [vmem:[%s3 + $0x24c] sm:$0xf]
        %v2587 = vld [vmem:[%s3 + $0x250] sm:$0xf]
        %v2588 = vld [vmem:[%s3 + $0x254] sm:$0xf]
        %v2589 = vld [vmem:[%s3 + $0x258] sm:$0xf]
        %v2590 = vld [vmem:[%s3 + $0x25c] sm:$0xf]
        %v2591 = vld [vmem:[%s3 + $0x260] sm:$0xf]
        %v2592 = vld [vmem:[%s3 + $0x264] sm:$0xf]
        %v2593 = vld [vmem:[%s3 + $0x268] sm:$0xf]
        %v2594 = vld [vmem:[%s3 + $0x26c] sm:$0xf]
        %v2595 = vld [vmem:[%s3 + $0x270] sm:$0xf]
        %v2596 = vld [vmem:[%s3 + $0x274] sm:$0xf]
        %v2597 = vld [vmem:[%s3 + $0x278] sm:$0xf]
        %v2598 = vld [vmem:[%s3 + $0x27c] sm:$0xf]
        %v2599 = vld [vmem:[%s3 + $0x280] sm:$0xf]
        %v2600 = vld [vmem:[%s3 + $0x284] sm:$0xf]
        %v2601 = vld [vmem:[%s3 + $0x288] sm:$0xf]
        %v2602 = vld [vmem:[%s3 + $0x28c] sm:$0xf]
        %v2603 = vld [vmem:[%s3 + $0x290] sm:$0xf]
        %v2604 = vld [vmem:[%s3 + $0x294] sm:$0xf]
        %v2605 = vld [vmem:[%s3 + $0x298] sm:$0xf]
        %v2606 = vld [vmem:[%s3 + $0x29c] sm:$0xf]
        %v2607 = vld [vmem:[%s3 + $0x2a0] sm:$0xf]
        %v2608 = vld [vmem:[%s3 + $0x2a4] sm:$0xf]
        %v2609 = vld [vmem:[%s3 + $0x2a8] sm:$0xf]
        %v2610 = vld [vmem:[%s3 + $0x2ac] sm:$0xf]
        %v2611 = vld [vmem:[%s3 + $0x2b0] sm:$0xf]
        %v2612 = vld [vmem:[%s3 + $0x2b4] sm:$0xf]
        %v2613 = vld [vmem:[%s3 + $0x2b8] sm:$0xf]
        %v2614 = vld [vmem:[%s3 + $0x2bc] sm:$0xf]
        %v2615 = vld [vmem:[%s3 + $0x2c0] sm:$0xf]
        %v2616 = vld [vmem:[%s3 + $0x2c4] sm:$0xf]
        %v2617 = vld [vmem:[%s3 + $0x2c8] sm:$0xf]
        %v2618 = vld [vmem:[%s3 + $0x2cc] sm:$0xf]
        %v2619 = vld [vmem:[%s3 + $0x2d0] sm:$0xf]
        %v2620 = vld [vmem:[%s3 + $0x2d4] sm:$0xf]
        %v2621 = vld [vmem:[%s3 + $0x2d8] sm:$0xf]
        %v2622 = vld [vmem:[%s3 + $0x2dc] sm:$0xf]
        %v2623 = vld [vmem:[%s3 + $0x2e0] sm:$0xf]
        %v2624 = vld [vmem:[%s3 + $0x2e4] sm:$0xf]
        %v2625 = vld [vmem:[%s3 + $0x2e8] sm:$0xf]
        %v2626 = vld [vmem:[%s3 + $0x2ec] sm:$0xf]
        %v2627 = vld [vmem:[%s3 + $0x2f0] sm:$0xf]
        %v2628 = vld [vmem:[%s3 + $0x2f4] sm:$0xf]
        %v2629 = vld [vmem:[%s3 + $0x2f8] sm:$0xf]
        %v2630 = vld [vmem:[%s3 + $0x2fc] sm:$0xf]
        %v2631 = vld [vmem:[%s3 + $0x300] sm:$0xf]
        %v2632 = vld [vmem:[%s3 + $0x304] sm:$0xf]
        %v2633 = vld [vmem:[%s3 + $0x308] sm:$0xf]
        %v2634 = vld [vmem:[%s3 + $0x30c] sm:$0xf]
        %v2635 = vld [vmem:[%s3 + $0x310] sm:$0xf]
        %v2636 = vld [vmem:[%s3 + $0x314] sm:$0xf]
        %v2637 = vld [vmem:[%s3 + $0x318] sm:$0xf]
        %v2638 = vld [vmem:[%s3 + $0x31c] sm:$0xf]
        %v2639 = vld [vmem:[%s3 + $0x320] sm:$0xf]
        %v2640 = vld [vmem:[%s3 + $0x324] sm:$0xf]
        %v2641 = vld [vmem:[%s3 + $0x328] sm:$0xf]
        %v2642 = vld [vmem:[%s3 + $0x32c] sm:$0xf]
        %v2643 = vld [vmem:[%s3 + $0x330] sm:$0xf]
        %v2644 = vld [vmem:[%s3 + $0x334] sm:$0xf]
        %v2645 = vld [vmem:[%s3 + $0x338] sm:$0xf]
        %v2646 = vld [vmem:[%s3 + $0x33c] sm:$0xf]
        %v2647 = vld [vmem:[%s3 + $0x340] sm:$0xf]
        %v2648 = vld [vmem:[%s3 + $0x344] sm:$0xf]
        %v2649 = vld [vmem:[%s3 + $0x348] sm:$0xf]
        %v2650 = vld [vmem:[%s3 + $0x34c] sm:$0xf]
        %v2651 = vld [vmem:[%s3 + $0x350] sm:$0xf]
        %v2652 = vld [vmem:[%s3 + $0x354] sm:$0xf]
        %v2653 = vld [vmem:[%s3 + $0x358] sm:$0xf]
        %v2654 = vld [vmem:[%s3 + $0x35c] sm:$0xf]
        %v2655 = vld [vmem:[%s3 + $0x360] sm:$0xf]
        %v2656 = vld [vmem:[%s3 + $0x364] sm:$0xf]
        %v2657 = vld [vmem:[%s3 + $0x368] sm:$0xf]
        %v2658 = vld [vmem:[%s3 + $0x36c] sm:$0xf]
        %v2659 = vld [vmem:[%s3 + $0x370] sm:$0xf]
        %v2660 = vld [vmem:[%s3 + $0x374] sm:$0xf]
        %v2661 = vld [vmem:[%s3 + $0x378] sm:$0xf]
        %v2662 = vld [vmem:[%s3 + $0x37c] sm:$0xf]
        %v2663 = vld [vmem:[%s3 + $0x380] sm:$0xf]
        %v2664 = vld [vmem:[%s3 + $0x384] sm:$0xf]
        %v2665 = vld [vmem:[%s3 + $0x388] sm:$0xf]
        %v2666 = vld [vmem:[%s3 + $0x38c] sm:$0xf]
        %v2667 = vld [vmem:[%s3 + $0x390] sm:$0xf]
        %v2668 = vld [vmem:[%s3 + $0x394] sm:$0xf]
        %v2669 = vld [vmem:[%s3 + $0x398] sm:$0xf]
        %v2670 = vld [vmem:[%s3 + $0x39c] sm:$0xf]
        %v2671 = vld [vmem:[%s3 + $0x3a0] sm:$0xf]
        %v2672 = vld [vmem:[%s3 + $0x3a4] sm:$0xf]
        %v2673 = vld [vmem:[%s3 + $0x3a8] sm:$0xf]
        %v2674 = vld [vmem:[%s3 + $0x3ac] sm:$0xf]
        %v2675 = vld [vmem:[%s3 + $0x3b0] sm:$0xf]
        %v2676 = vld [vmem:[%s3 + $0x3b4] sm:$0xf]
        %v2677 = vld [vmem:[%s3 + $0x3b8] sm:$0xf]
        %v2678 = vld [vmem:[%s3 + $0x3bc] sm:$0xf]
        %v2679 = vld [vmem:[%s3 + $0x3c0] sm:$0xf]
        %v2680 = vld [vmem:[%s3 + $0x3c4] sm:$0xf]
        %v2681 = vld [vmem:[%s3 + $0x3c8] sm:$0xf]
        %v2682 = vld [vmem:[%s3 + $0x3cc] sm:$0xf]
        %v2683 = vld [vmem:[%s3 + $0x3d0] sm:$0xf]
        %v2684 = vld [vmem:[%s3 + $0x3d4] sm:$0xf]
        %v2685 = vld [vmem:[%s3 + $0x3d8] sm:$0xf]
        %v2686 = vld [vmem:[%s3 + $0x3dc] sm:$0xf]
        %v2687 = vld [vmem:[%s3 + $0x3e0] sm:$0xf]
        %v2688 = vld [vmem:[%s3 + $0x3e4] sm:$0xf]
        %v2689 = vld [vmem:[%s3 + $0x3e8] sm:$0xf]
        %v2690 = vld [vmem:[%s3 + $0x3ec] sm:$0xf]
        %v2691 = vld [vmem:[%s3 + $0x3f0] sm:$0xf]
        %v2692 = vld [vmem:[%s3 + $0x3f4] sm:$0xf]
        %v2693 = vld [vmem:[%s3 + $0x3f8] sm:$0xf]
        %v2694 = vld [vmem:[%s3 + $0x3fc] sm:$0xf]
        %v2695 = vld [vmem:[%s4] sm:$0x1]
        %v2697 = vperm.slane %v2695, 0
        %v2699 = vrot.slane %v2343, 2
        %v2700 = vrot.slane %v2344, 2
        %v2701 = vrot.slane %v2360, 2
        %v2702 = vrot.slane %v2370, 2
        %v2703 = vrot.slane %v2345, 2
        %v2704 = vrot.slane %v2346, 2
        %v2705 = vrot.slane %v2380, 2
        %v2706 = vrot.slane %v2390, 2
        %v2707 = vrot.slane %v2394, 2
        %v2708 = vrot.slane %v2398, 2
        %v2709 = vrot.slane %v2406, 2
        %v2710 = vrot.slane %v2414, 2
        %v2711 = vrot.slane %v2418, 2
        %v2712 = vrot.slane %v2422, 2
        %v2713 = vrot.slane %v2430, 2
        %v2714 = vrot.slane %v2438, 2
        %v2987 = vunpack.c.l.b16 %v2439
        %v2988 = vunpack.c.l.b16 %v2440
        %v2989 = vunpack.c.l.b16 %v2441
        %v2990 = vunpack.c.l.b16 %v2442
        %v2991 = vunpack.c.l.b16 %v2443
        %v2992 = vunpack.c.l.b16 %v2444
        %v2993 = vunpack.c.l.b16 %v2445
        %v2994 = vunpack.c.l.b16 %v2446
        %v2995 = vunpack.c.l.b16 %v2447
        %v2996 = vunpack.c.l.b16 %v2448
        %v2997 = vunpack.c.l.b16 %v2449
        %v2998 = vunpack.c.l.b16 %v2450
        %v2999 = vunpack.c.l.b16 %v2451
        %v3000 = vunpack.c.l.b16 %v2452
        %v3001 = vunpack.c.l.b16 %v2453
        %v3002 = vunpack.c.l.b16 %v2454
        %v3003 = vunpack.c.l.b16 %v2455
        %v3004 = vunpack.c.l.b16 %v2456
        %v3005 = vunpack.c.l.b16 %v2457
        %v3006 = vunpack.c.l.b16 %v2458
        %v3007 = vunpack.c.l.b16 %v2459
        %v3008 = vunpack.c.l.b16 %v2460
        %v3009 = vunpack.c.l.b16 %v2461
        %v3010 = vunpack.c.l.b16 %v2462
        %v3011 = vunpack.c.l.b16 %v2463
        %v3012 = vunpack.c.l.b16 %v2464
        %v3013 = vunpack.c.l.b16 %v2465
        %v3014 = vunpack.c.l.b16 %v2466
        %v3015 = vunpack.c.l.b16 %v2467
        %v3016 = vunpack.c.l.b16 %v2468
        %v3017 = vunpack.c.l.b16 %v2469
        %v3018 = vunpack.c.l.b16 %v2470
        %v3019 = vunpack.c.l.b16 %v2471
        %v3020 = vunpack.c.l.b16 %v2472
        %v3021 = vunpack.c.l.b16 %v2473
        %v3022 = vunpack.c.l.b16 %v2474
        %v3023 = vunpack.c.l.b16 %v2475
        %v3024 = vunpack.c.l.b16 %v2476
        %v3025 = vunpack.c.l.b16 %v2477
        %v3026 = vunpack.c.l.b16 %v2478
        %v3027 = vunpack.c.l.b16 %v2479
        %v3028 = vunpack.c.l.b16 %v2480
        %v3029 = vunpack.c.l.b16 %v2481
        %v3030 = vunpack.c.l.b16 %v2482
        %v3031 = vunpack.c.l.b16 %v2483
        %v3032 = vunpack.c.l.b16 %v2484
        %v3033 = vunpack.c.l.b16 %v2485
        %v3034 = vunpack.c.l.b16 %v2486
        %v3035 = vunpack.c.l.b16 %v2487
        %v3036 = vunpack.c.l.b16 %v2488
        %v3037 = vunpack.c.l.b16 %v2489
        %v3038 = vunpack.c.l.b16 %v2490
        %v3039 = vunpack.c.l.b16 %v2491
        %v3040 = vunpack.c.l.b16 %v2492
        %v3041 = vunpack.c.l.b16 %v2493
        %v3042 = vunpack.c.l.b16 %v2494
        %v3043 = vunpack.c.l.b16 %v2495
        %v3044 = vunpack.c.l.b16 %v2496
        %v3045 = vunpack.c.l.b16 %v2497
        %v3046 = vunpack.c.l.b16 %v2498
        %v3047 = vunpack.c.l.b16 %v2499
        %v3048 = vunpack.c.l.b16 %v2500
        %v3049 = vunpack.c.l.b16 %v2501
        %v3050 = vunpack.c.l.b16 %v2502
        %v3051 = vunpack.c.l.b16 %v2503
        %v3052 = vunpack.c.l.b16 %v2504
        %v3053 = vunpack.c.l.b16 %v2505
        %v3054 = vunpack.c.l.b16 %v2506
        %v3055 = vunpack.c.l.b16 %v2507
        %v3056 = vunpack.c.l.b16 %v2508
        %v3057 = vunpack.c.l.b16 %v2509
        %v3058 = vunpack.c.l.b16 %v2510
        %v3059 = vunpack.c.l.b16 %v2511
        %v3060 = vunpack.c.l.b16 %v2512
        %v3061 = vunpack.c.l.b16 %v2513
        %v3062 = vunpack.c.l.b16 %v2514
        %v3063 = vunpack.c.l.b16 %v2515
        %v3064 = vunpack.c.l.b16 %v2516
        %v3065 = vunpack.c.l.b16 %v2517
        %v3066 = vunpack.c.l.b16 %v2518
        %v3067 = vunpack.c.l.b16 %v2519
        %v3068 = vunpack.c.l.b16 %v2520
        %v3069 = vunpack.c.l.b16 %v2521
        %v3070 = vunpack.c.l.b16 %v2522
        %v3071 = vunpack.c.l.b16 %v2523
        %v3072 = vunpack.c.l.b16 %v2524
        %v3073 = vunpack.c.l.b16 %v2525
        %v3074 = vunpack.c.l.b16 %v2526
        %v3075 = vunpack.c.l.b16 %v2527
        %v3076 = vunpack.c.l.b16 %v2528
        %v3077 = vunpack.c.l.b16 %v2529
        %v3078 = vunpack.c.l.b16 %v2530
        %v3079 = vunpack.c.l.b16 %v2531
        %v3080 = vunpack.c.l.b16 %v2532
        %v3081 = vunpack.c.l.b16 %v2533
        %v3082 = vunpack.c.l.b16 %v2534
        %v3083 = vunpack.c.l.b16 %v2535
        %v3084 = vunpack.c.l.b16 %v2536
        %v3085 = vunpack.c.l.b16 %v2537
        %v3086 = vunpack.c.l.b16 %v2538
        %v3087 = vunpack.c.l.b16 %v2539
        %v3088 = vunpack.c.l.b16 %v2540
        %v3089 = vunpack.c.l.b16 %v2541
        %v3090 = vunpack.c.l.b16 %v2542
        %v3091 = vunpack.c.l.b16 %v2543
        %v3092 = vunpack.c.l.b16 %v2544
        %v3093 = vunpack.c.l.b16 %v2545
        %v3094 = vunpack.c.l.b16 %v2546
        %v3095 = vunpack.c.l.b16 %v2547
        %v3096 = vunpack.c.l.b16 %v2548
        %v3097 = vunpack.c.l.b16 %v2549
        %v3098 = vunpack.c.l.b16 %v2550
        %v3099 = vunpack.c.l.b16 %v2551
        %v3100 = vunpack.c.l.b16 %v2552
        %v3101 = vunpack.c.l.b16 %v2553
        %v3102 = vunpack.c.l.b16 %v2554
        %v3103 = vunpack.c.l.b16 %v2555
        %v3104 = vunpack.c.l.b16 %v2556
        %v3105 = vunpack.c.l.b16 %v2557
        %v3106 = vunpack.c.l.b16 %v2558
        %v3107 = vunpack.c.l.b16 %v2559
        %v3108 = vunpack.c.l.b16 %v2560
        %v3109 = vunpack.c.l.b16 %v2561
        %v3110 = vunpack.c.l.b16 %v2562
        %v3111 = vunpack.c.l.b16 %v2563
        %v3112 = vunpack.c.l.b16 %v2564
        %v3113 = vunpack.c.l.b16 %v2565
        %v3114 = vunpack.c.l.b16 %v2566
        %v3115 = vunpack.c.l.b16 %v2567
        %v3116 = vunpack.c.l.b16 %v2568
        %v3117 = vunpack.c.l.b16 %v2569
        %v3118 = vunpack.c.l.b16 %v2570
        %v3119 = vunpack.c.l.b16 %v2571
        %v3120 = vunpack.c.l.b16 %v2572
        %v3121 = vunpack.c.l.b16 %v2573
        %v3122 = vunpack.c.l.b16 %v2574
        %v3123 = vunpack.c.l.b16 %v2575
        %v3124 = vunpack.c.l.b16 %v2576
        %v3125 = vunpack.c.l.b16 %v2577
        %v3126 = vunpack.c.l.b16 %v2578
        %v3127 = vunpack.c.l.b16 %v2579
        %v3128 = vunpack.c.l.b16 %v2580
        %v3129 = vunpack.c.l.b16 %v2581
        %v3130 = vunpack.c.l.b16 %v2582
        %v3131 = vunpack.c.l.b16 %v2583
        %v3132 = vunpack.c.l.b16 %v2584
        %v3133 = vunpack.c.l.b16 %v2585
        %v3134 = vunpack.c.l.b16 %v2586
        %v3135 = vunpack.c.l.b16 %v2587
        %v3136 = vunpack.c.l.b16 %v2588
        %v3137 = vunpack.c.l.b16 %v2589
        %v3138 = vunpack.c.l.b16 %v2590
        %v3139 = vunpack.c.l.b16 %v2591
        %v3140 = vunpack.c.l.b16 %v2592
        %v3141 = vunpack.c.l.b16 %v2593
        %v3142 = vunpack.c.l.b16 %v2594
        %v3143 = vunpack.c.l.b16 %v2595
        %v3144 = vunpack.c.l.b16 %v2596
        %v3145 = vunpack.c.l.b16 %v2597
        %v3146 = vunpack.c.l.b16 %v2598
        %v3147 = vunpack.c.l.b16 %v2599
        %v3148 = vunpack.c.l.b16 %v2600
        %v3149 = vunpack.c.l.b16 %v2601
        %v3150 = vunpack.c.l.b16 %v2602
        %v3151 = vunpack.c.l.b16 %v2603
        %v3152 = vunpack.c.l.b16 %v2604
        %v3153 = vunpack.c.l.b16 %v2605
        %v3154 = vunpack.c.l.b16 %v2606
        %v3155 = vunpack.c.l.b16 %v2607
        %v3156 = vunpack.c.l.b16 %v2608
        %v3157 = vunpack.c.l.b16 %v2609
        %v3158 = vunpack.c.l.b16 %v2610
        %v3159 = vunpack.c.l.b16 %v2611
        %v3160 = vunpack.c.l.b16 %v2612
        %v3161 = vunpack.c.l.b16 %v2613
        %v3162 = vunpack.c.l.b16 %v2614
        %v3163 = vunpack.c.l.b16 %v2615
        %v3164 = vunpack.c.l.b16 %v2616
        %v3165 = vunpack.c.l.b16 %v2617
        %v3166 = vunpack.c.l.b16 %v2618
        %v3167 = vunpack.c.l.b16 %v2619
        %v3168 = vunpack.c.l.b16 %v2620
        %v3169 = vunpack.c.l.b16 %v2621
        %v3170 = vunpack.c.l.b16 %v2622
        %v3171 = vunpack.c.l.b16 %v2623
        %v3172 = vunpack.c.l.b16 %v2624
        %v3173 = vunpack.c.l.b16 %v2625
        %v3174 = vunpack.c.l.b16 %v2626
        %v3175 = vunpack.c.l.b16 %v2627
        %v3176 = vunpack.c.l.b16 %v2628
        %v3177 = vunpack.c.l.b16 %v2629
        %v3178 = vunpack.c.l.b16 %v2630
        %v3179 = vunpack.c.l.b16 %v2631
        %v3180 = vunpack.c.l.b16 %v2632
        %v3181 = vunpack.c.l.b16 %v2633
        %v3182 = vunpack.c.l.b16 %v2634
        %v3183 = vunpack.c.l.b16 %v2635
        %v3184 = vunpack.c.l.b16 %v2636
        %v3185 = vunpack.c.l.b16 %v2637
        %v3186 = vunpack.c.l.b16 %v2638
        %v3187 = vunpack.c.l.b16 %v2639
        %v3188 = vunpack.c.l.b16 %v2640
        %v3189 = vunpack.c.l.b16 %v2641
        %v3190 = vunpack.c.l.b16 %v2642
        %v3191 = vunpack.c.l.b16 %v2643
        %v3192 = vunpack.c.l.b16 %v2644
        %v3193 = vunpack.c.l.b16 %v2645
        %v3194 = vunpack.c.l.b16 %v2646
        %v3195 = vunpack.c.l.b16 %v2647
        %v3196 = vunpack.c.l.b16 %v2648
        %v3197 = vunpack.c.l.b16 %v2649
        %v3198 = vunpack.c.l.b16 %v2650
        %v3199 = vunpack.c.l.b16 %v2651
        %v3200 = vunpack.c.l.b16 %v2652
        %v3201 = vunpack.c.l.b16 %v2653
        %v3202 = vunpack.c.l.b16 %v2654
        %v3203 = vunpack.c.l.b16 %v2655
        %v3204 = vunpack.c.l.b16 %v2656
        %v3205 = vunpack.c.l.b16 %v2657
        %v3206 = vunpack.c.l.b16 %v2658
        %v3207 = vunpack.c.l.b16 %v2659
        %v3208 = vunpack.c.l.b16 %v2660
        %v3209 = vunpack.c.l.b16 %v2661
        %v3210 = vunpack.c.l.b16 %v2662
        %v3211 = vunpack.c.l.b16 %v2663
        %v3212 = vunpack.c.l.b16 %v2664
        %v3213 = vunpack.c.l.b16 %v2665
        %v3214 = vunpack.c.l.b16 %v2666
        %v3215 = vunpack.c.l.b16 %v2667
        %v3216 = vunpack.c.l.b16 %v2668
        %v3217 = vunpack.c.l.b16 %v2669
        %v3218 = vunpack.c.l.b16 %v2670
        %v3219 = vunpack.c.l.b16 %v2671
        %v3220 = vunpack.c.l.b16 %v2672
        %v3221 = vunpack.c.l.b16 %v2673
        %v3222 = vunpack.c.l.b16 %v2674
        %v3223 = vunpack.c.l.b16 %v2675
        %v3224 = vunpack.c.l.b16 %v2676
        %v3225 = vunpack.c.l.b16 %v2677
        %v3226 = vunpack.c.l.b16 %v2678
        %v3227 = vunpack.c.l.b16 %v2679
        %v3228 = vunpack.c.l.b16 %v2680
        %v3229 = vunpack.c.l.b16 %v2681
        %v3230 = vunpack.c.l.b16 %v2682
        %v3231 = vunpack.c.l.b16 %v2683
        %v3232 = vunpack.c.l.b16 %v2684
        %v3233 = vunpack.c.l.b16 %v2685
        %v3234 = vunpack.c.l.b16 %v2686
        %v3235 = vunpack.c.l.b16 %v2687
        %v3236 = vunpack.c.l.b16 %v2688
        %v3237 = vunpack.c.l.b16 %v2689
        %v3238 = vunpack.c.l.b16 %v2690
        %v3239 = vunpack.c.l.b16 %v2691
        %v3240 = vunpack.c.l.b16 %v2692
        %v3241 = vunpack.c.l.b16 %v2693
        %v3242 = vunpack.c.l.b16 %v2694
        %v3243 = vpack.c.b16 %v2988, %v2987
        %v3244 = vpack.c.b16 %v2990, %v2989
        %v3245 = vpack.c.b16 %v2992, %v2991
        %v3246 = vpack.c.b16 %v2994, %v2993
        %v3247 = vpack.c.b16 %v2996, %v2995
        %v3248 = vpack.c.b16 %v2998, %v2997
        %v3249 = vpack.c.b16 %v3000, %v2999
        %v3250 = vpack.c.b16 %v3002, %v3001
        %v3251 = vpack.c.b16 %v3004, %v3003
        %v3252 = vpack.c.b16 %v3006, %v3005
        %v3253 = vpack.c.b16 %v3008, %v3007
        %v3254 = vpack.c.b16 %v3010, %v3009
        %v3255 = vpack.c.b16 %v3012, %v3011
        %v3256 = vpack.c.b16 %v3014, %v3013
        %v3257 = vpack.c.b16 %v3016, %v3015
        %v3258 = vpack.c.b16 %v3018, %v3017
        %v3259 = vpack.c.b16 %v3020, %v3019
        %v3260 = vpack.c.b16 %v3022, %v3021
        %v3261 = vpack.c.b16 %v3024, %v3023
        %v3262 = vpack.c.b16 %v3026, %v3025
        %v3263 = vpack.c.b16 %v3028, %v3027
        %v3264 = vpack.c.b16 %v3030, %v3029
        %v3265 = vpack.c.b16 %v3032, %v3031
        %v3266 = vpack.c.b16 %v3034, %v3033
        %v3267 = vpack.c.b16 %v3036, %v3035
        %v3268 = vpack.c.b16 %v3038, %v3037
        %v3269 = vpack.c.b16 %v3040, %v3039
        %v3270 = vpack.c.b16 %v3042, %v3041
        %v3271 = vpack.c.b16 %v3044, %v3043
        %v3272 = vpack.c.b16 %v3046, %v3045
        %v3273 = vpack.c.b16 %v3048, %v3047
        %v3274 = vpack.c.b16 %v3050, %v3049
        %v3275 = vpack.c.b16 %v3052, %v3051
        %v3276 = vpack.c.b16 %v3054, %v3053
        %v3277 = vpack.c.b16 %v3056, %v3055
        %v3278 = vpack.c.b16 %v3058, %v3057
        %v3279 = vpack.c.b16 %v3060, %v3059
        %v3280 = vpack.c.b16 %v3062, %v3061
        %v3281 = vpack.c.b16 %v3064, %v3063
        %v3282 = vpack.c.b16 %v3066, %v3065
        %v3283 = vpack.c.b16 %v3068, %v3067
        %v3284 = vpack.c.b16 %v3070, %v3069
        %v3285 = vpack.c.b16 %v3072, %v3071
        %v3286 = vpack.c.b16 %v3074, %v3073
        %v3287 = vpack.c.b16 %v3076, %v3075
        %v3288 = vpack.c.b16 %v3078, %v3077
        %v3289 = vpack.c.b16 %v3080, %v3079
        %v3290 = vpack.c.b16 %v3082, %v3081
        %v3291 = vpack.c.b16 %v3084, %v3083
        %v3292 = vpack.c.b16 %v3086, %v3085
        %v3293 = vpack.c.b16 %v3088, %v3087
        %v3294 = vpack.c.b16 %v3090, %v3089
        %v3295 = vpack.c.b16 %v3092, %v3091
        %v3296 = vpack.c.b16 %v3094, %v3093
        %v3297 = vpack.c.b16 %v3096, %v3095
        %v3298 = vpack.c.b16 %v3098, %v3097
        %v3299 = vpack.c.b16 %v3100, %v3099
        %v3300 = vpack.c.b16 %v3102, %v3101
        %v3301 = vpack.c.b16 %v3104, %v3103
        %v3302 = vpack.c.b16 %v3106, %v3105
        %v3303 = vpack.c.b16 %v3108, %v3107
        %v3304 = vpack.c.b16 %v3110, %v3109
        %v3305 = vpack.c.b16 %v3112, %v3111
        %v3306 = vpack.c.b16 %v3114, %v3113
        %v3307 = vpack.c.b16 %v3116, %v3115
        %v3308 = vpack.c.b16 %v3118, %v3117
        %v3309 = vpack.c.b16 %v3120, %v3119
        %v3310 = vpack.c.b16 %v3122, %v3121
        %v3311 = vpack.c.b16 %v3124, %v3123
        %v3312 = vpack.c.b16 %v3126, %v3125
        %v3313 = vpack.c.b16 %v3128, %v3127
        %v3314 = vpack.c.b16 %v3130, %v3129
        %v3315 = vpack.c.b16 %v3132, %v3131
        %v3316 = vpack.c.b16 %v3134, %v3133
        %v3317 = vpack.c.b16 %v3136, %v3135
        %v3318 = vpack.c.b16 %v3138, %v3137
        %v3319 = vpack.c.b16 %v3140, %v3139
        %v3320 = vpack.c.b16 %v3142, %v3141
        %v3321 = vpack.c.b16 %v3144, %v3143
        %v3322 = vpack.c.b16 %v3146, %v3145
        %v3323 = vpack.c.b16 %v3148, %v3147
        %v3324 = vpack.c.b16 %v3150, %v3149
        %v3325 = vpack.c.b16 %v3152, %v3151
        %v3326 = vpack.c.b16 %v3154, %v3153
        %v3327 = vpack.c.b16 %v3156, %v3155
        %v3328 = vpack.c.b16 %v3158, %v3157
        %v3329 = vpack.c.b16 %v3160, %v3159
        %v3330 = vpack.c.b16 %v3162, %v3161
        %v3331 = vpack.c.b16 %v3164, %v3163
        %v3332 = vpack.c.b16 %v3166, %v3165
        %v3333 = vpack.c.b16 %v3168, %v3167
        %v3334 = vpack.c.b16 %v3170, %v3169
        %v3335 = vpack.c.b16 %v3172, %v3171
        %v3336 = vpack.c.b16 %v3174, %v3173
        %v3337 = vpack.c.b16 %v3176, %v3175
        %v3338 = vpack.c.b16 %v3178, %v3177
        %v3339 = vpack.c.b16 %v3180, %v3179
        %v3340 = vpack.c.b16 %v3182, %v3181
        %v3341 = vpack.c.b16 %v3184, %v3183
        %v3342 = vpack.c.b16 %v3186, %v3185
        %v3343 = vpack.c.b16 %v3188, %v3187
        %v3344 = vpack.c.b16 %v3190, %v3189
        %v3345 = vpack.c.b16 %v3192, %v3191
        %v3346 = vpack.c.b16 %v3194, %v3193
        %v3347 = vpack.c.b16 %v3196, %v3195
        %v3348 = vpack.c.b16 %v3198, %v3197
        %v3349 = vpack.c.b16 %v3200, %v3199
        %v3350 = vpack.c.b16 %v3202, %v3201
        %v3351 = vpack.c.b16 %v3204, %v3203
        %v3352 = vpack.c.b16 %v3206, %v3205
        %v3353 = vpack.c.b16 %v3208, %v3207
        %v3354 = vpack.c.b16 %v3210, %v3209
        %v3355 = vpack.c.b16 %v3212, %v3211
        %v3356 = vpack.c.b16 %v3214, %v3213
        %v3357 = vpack.c.b16 %v3216, %v3215
        %v3358 = vpack.c.b16 %v3218, %v3217
        %v3359 = vpack.c.b16 %v3220, %v3219
        %v3360 = vpack.c.b16 %v3222, %v3221
        %v3361 = vpack.c.b16 %v3224, %v3223
        %v3362 = vpack.c.b16 %v3226, %v3225
        %v3363 = vpack.c.b16 %v3228, %v3227
        %v3364 = vpack.c.b16 %v3230, %v3229
        %v3365 = vpack.c.b16 %v3232, %v3231
        %v3366 = vpack.c.b16 %v3234, %v3233
        %v3367 = vpack.c.b16 %v3236, %v3235
        %v3368 = vpack.c.b16 %v3238, %v3237
        %v3369 = vpack.c.b16 %v3240, %v3239
        %v3370 = vpack.c.b16 %v3242, %v3241
        %3499 = vmatpush.bf16.msra.mxu0 %v3250
        %3500 = vmatpush.bf16.msra.mxu0 %v3249
        %3501 = vmatpush.bf16.msra.mxu0 %v3248
        %3502 = vmatpush.bf16.msra.mxu0 %v3247
        %3503 = vmatpush.bf16.msra.mxu0 %v3246
        %3504 = vmatpush.bf16.msra.mxu0 %v3245
        %3505 = vmatpush.bf16.msra.mxu0 %v3244
        %3506 = vmatpush.bf16.msra.mxu0 %v3243
        %3507 = vmatmul.bf16.gmra.mxu0 %v2699
        %v3508 = vpop.f32.mrf.mxu0
        %v3509 = vadd.f32 %v2697, %v3508
        %v3510 = vpop.f32.mrf.mxu0
        %3511 = vdwg.mxu0
        %3512 = vmatpush.bf16.msra.mxu0 %v3258
        %3513 = vmatpush.bf16.msra.mxu0 %v3257
        %3514 = vmatpush.bf16.msra.mxu0 %v3256
        %3515 = vmatpush.bf16.msra.mxu0 %v3255
        %3516 = vmatpush.bf16.msra.mxu0 %v3254
        %3517 = vmatpush.bf16.msra.mxu0 %v3253
        %3518 = vmatpush.bf16.msra.mxu0 %v3252
        %3519 = vmatpush.bf16.msra.mxu0 %v3251
        %3520 = vmatmul.bf16.gmra.mxu0 %v2700
        %v3521 = vpop.f32.mrf.mxu0
        %v3522 = vadd.f32 %v3509, %v3521
        %v3523 = vpop.f32.mrf.mxu0
        %3524 = vdwg.mxu0
        %3525 = vmatpush.bf16.msra.mxu0 %v3266
        %3526 = vmatpush.bf16.msra.mxu0 %v3265
        %3527 = vmatpush.bf16.msra.mxu0 %v3264
        %3528 = vmatpush.bf16.msra.mxu0 %v3263
        %3529 = vmatpush.bf16.msra.mxu0 %v3262
        %3530 = vmatpush.bf16.msra.mxu0 %v3261
        %3531 = vmatpush.bf16.msra.mxu0 %v3260
        %3532 = vmatpush.bf16.msra.mxu0 %v3259
        %3533 = vmatmul.bf16.gmra.mxu0 %v2701
        %v3534 = vpop.f32.mrf.mxu0
        %v3535 = vadd.f32 %v3522, %v3534
        %v3536 = vpop.f32.mrf.mxu0
        %3537 = vdwg.mxu0
        %3538 = vmatpush.bf16.msra.mxu0 %v3274
        %3539 = vmatpush.bf16.msra.mxu0 %v3273
        %3540 = vmatpush.bf16.msra.mxu0 %v3272
        %3541 = vmatpush.bf16.msra.mxu0 %v3271
        %3542 = vmatpush.bf16.msra.mxu0 %v3270
        %3543 = vmatpush.bf16.msra.mxu0 %v3269
        %3544 = vmatpush.bf16.msra.mxu0 %v3268
        %3545 = vmatpush.bf16.msra.mxu0 %v3267
        %3546 = vmatmul.bf16.gmra.mxu0 %v2702
        %v3547 = vpop.f32.mrf.mxu0
        %v3548 = vadd.f32 %v3535, %v3547
        %v3549 = vpop.f32.mrf.mxu0
        %3550 = vdwg.mxu0
        %3551 = vmatpush.bf16.msra.mxu0 %v3282
        %3552 = vmatpush.bf16.msra.mxu0 %v3281
        %3553 = vmatpush.bf16.msra.mxu0 %v3280
        %3554 = vmatpush.bf16.msra.mxu0 %v3279
        %3555 = vmatpush.bf16.msra.mxu0 %v3278
        %3556 = vmatpush.bf16.msra.mxu0 %v3277
        %3557 = vmatpush.bf16.msra.mxu0 %v3276
        %3558 = vmatpush.bf16.msra.mxu0 %v3275
        %3559 = vmatmul.bf16.gmra.mxu0 %v2703
        %v3560 = vpop.f32.mrf.mxu0
        %v3561 = vadd.f32 %v3548, %v3560
        %v3562 = vpop.f32.mrf.mxu0
        %3563 = vdwg.mxu0
        %3564 = vmatpush.bf16.msra.mxu0 %v3290
        %3565 = vmatpush.bf16.msra.mxu0 %v3289
        %3566 = vmatpush.bf16.msra.mxu0 %v3288
        %3567 = vmatpush.bf16.msra.mxu0 %v3287
        %3568 = vmatpush.bf16.msra.mxu0 %v3286
        %3569 = vmatpush.bf16.msra.mxu0 %v3285
        %3570 = vmatpush.bf16.msra.mxu0 %v3284
        %3571 = vmatpush.bf16.msra.mxu0 %v3283
        %3572 = vmatmul.bf16.gmra.mxu0 %v2704
        %v3573 = vpop.f32.mrf.mxu0
        %v3574 = vadd.f32 %v3561, %v3573
        %v3575 = vpop.f32.mrf.mxu0
        %3576 = vdwg.mxu0
        %3577 = vmatpush.bf16.msra.mxu0 %v3298
        %3578 = vmatpush.bf16.msra.mxu0 %v3297
        %3579 = vmatpush.bf16.msra.mxu0 %v3296
        %3580 = vmatpush.bf16.msra.mxu0 %v3295
        %3581 = vmatpush.bf16.msra.mxu0 %v3294
        %3582 = vmatpush.bf16.msra.mxu0 %v3293
        %3583 = vmatpush.bf16.msra.mxu0 %v3292
        %3584 = vmatpush.bf16.msra.mxu0 %v3291
        %3585 = vmatmul.bf16.gmra.mxu0 %v2705
        %v3586 = vpop.f32.mrf.mxu0
        %v3587 = vadd.f32 %v3574, %v3586
        %v3588 = vpop.f32.mrf.mxu0
        %3589 = vdwg.mxu0
        %3590 = vmatpush.bf16.msra.mxu0 %v3306
        %3591 = vmatpush.bf16.msra.mxu0 %v3305
        %3592 = vmatpush.bf16.msra.mxu0 %v3304
        %3593 = vmatpush.bf16.msra.mxu0 %v3303
        %3594 = vmatpush.bf16.msra.mxu0 %v3302
        %3595 = vmatpush.bf16.msra.mxu0 %v3301
        %3596 = vmatpush.bf16.msra.mxu0 %v3300
        %3597 = vmatpush.bf16.msra.mxu0 %v3299
        %3598 = vmatmul.bf16.gmra.mxu0 %v2706
        %v3599 = vpop.f32.mrf.mxu0
        %v3600 = vadd.f32 %v3587, %v3599
        %v3601 = vpop.f32.mrf.mxu0
        %3602 = vdwg.mxu0
        %3603 = vmatpush.bf16.msra.mxu0 %v3314
        %3604 = vmatpush.bf16.msra.mxu0 %v3313
        %3605 = vmatpush.bf16.msra.mxu0 %v3312
        %3606 = vmatpush.bf16.msra.mxu0 %v3311
        %3607 = vmatpush.bf16.msra.mxu0 %v3310
        %3608 = vmatpush.bf16.msra.mxu0 %v3309
        %3609 = vmatpush.bf16.msra.mxu0 %v3308
        %3610 = vmatpush.bf16.msra.mxu0 %v3307
        %3611 = vmatmul.bf16.gmra.mxu0 %v2707
        %v3612 = vpop.f32.mrf.mxu0
        %v3613 = vadd.f32 %v3600, %v3612
        %v3614 = vpop.f32.mrf.mxu0
        %3615 = vdwg.mxu0
        %3616 = vmatpush.bf16.msra.mxu0 %v3322
        %3617 = vmatpush.bf16.msra.mxu0 %v3321
        %3618 = vmatpush.bf16.msra.mxu0 %v3320
        %3619 = vmatpush.bf16.msra.mxu0 %v3319
        %3620 = vmatpush.bf16.msra.mxu0 %v3318
        %3621 = vmatpush.bf16.msra.mxu0 %v3317
        %3622 = vmatpush.bf16.msra.mxu0 %v3316
        %3623 = vmatpush.bf16.msra.mxu0 %v3315
        %3624 = vmatmul.bf16.gmra.mxu0 %v2708
        %v3625 = vpop.f32.mrf.mxu0
        %v3626 = vadd.f32 %v3613, %v3625
        %v3627 = vpop.f32.mrf.mxu0
        %3628 = vdwg.mxu0
        %3629 = vmatpush.bf16.msra.mxu0 %v3330
        %3630 = vmatpush.bf16.msra.mxu0 %v3329
        %3631 = vmatpush.bf16.msra.mxu0 %v3328
        %3632 = vmatpush.bf16.msra.mxu0 %v3327
        %3633 = vmatpush.bf16.msra.mxu0 %v3326
        %3634 = vmatpush.bf16.msra.mxu0 %v3325
        %3635 = vmatpush.bf16.msra.mxu0 %v3324
        %3636 = vmatpush.bf16.msra.mxu0 %v3323
        %3637 = vmatmul.bf16.gmra.mxu0 %v2709
        %v3638 = vpop.f32.mrf.mxu0
        %v3639 = vadd.f32 %v3626, %v3638
        %v3640 = vpop.f32.mrf.mxu0
        %3641 = vdwg.mxu0
        %3642 = vmatpush.bf16.msra.mxu0 %v3338
        %3643 = vmatpush.bf16.msra.mxu0 %v3337
        %3644 = vmatpush.bf16.msra.mxu0 %v3336
        %3645 = vmatpush.bf16.msra.mxu0 %v3335
        %3646 = vmatpush.bf16.msra.mxu0 %v3334
        %3647 = vmatpush.bf16.msra.mxu0 %v3333
        %3648 = vmatpush.bf16.msra.mxu0 %v3332
        %3649 = vmatpush.bf16.msra.mxu0 %v3331
        %3650 = vmatmul.bf16.gmra.mxu0 %v2710
        %v3651 = vpop.f32.mrf.mxu0
        %v3652 = vadd.f32 %v3639, %v3651
        %v3653 = vpop.f32.mrf.mxu0
        %3654 = vdwg.mxu0
        %3655 = vmatpush.bf16.msra.mxu0 %v3346
        %3656 = vmatpush.bf16.msra.mxu0 %v3345
        %3657 = vmatpush.bf16.msra.mxu0 %v3344
        %3658 = vmatpush.bf16.msra.mxu0 %v3343
        %3659 = vmatpush.bf16.msra.mxu0 %v3342
        %3660 = vmatpush.bf16.msra.mxu0 %v3341
        %3661 = vmatpush.bf16.msra.mxu0 %v3340
        %3662 = vmatpush.bf16.msra.mxu0 %v3339
        %3663 = vmatmul.bf16.gmra.mxu0 %v2711
        %v3664 = vpop.f32.mrf.mxu0
        %v3665 = vadd.f32 %v3652, %v3664
        %v3666 = vpop.f32.mrf.mxu0
        %3667 = vdwg.mxu0
        %3668 = vmatpush.bf16.msra.mxu0 %v3354
        %3669 = vmatpush.bf16.msra.mxu0 %v3353
        %3670 = vmatpush.bf16.msra.mxu0 %v3352
        %3671 = vmatpush.bf16.msra.mxu0 %v3351
        %3672 = vmatpush.bf16.msra.mxu0 %v3350
        %3673 = vmatpush.bf16.msra.mxu0 %v3349
        %3674 = vmatpush.bf16.msra.mxu0 %v3348
        %3675 = vmatpush.bf16.msra.mxu0 %v3347
        %3676 = vmatmul.bf16.gmra.mxu0 %v2712
        %v3677 = vpop.f32.mrf.mxu0
        %v3678 = vadd.f32 %v3665, %v3677
        %v3679 = vpop.f32.mrf.mxu0
        %3680 = vdwg.mxu0
        %3681 = vmatpush.bf16.msra.mxu0 %v3362
        %3682 = vmatpush.bf16.msra.mxu0 %v3361
        %3683 = vmatpush.bf16.msra.mxu0 %v3360
        %3684 = vmatpush.bf16.msra.mxu0 %v3359
        %3685 = vmatpush.bf16.msra.mxu0 %v3358
        %3686 = vmatpush.bf16.msra.mxu0 %v3357
        %3687 = vmatpush.bf16.msra.mxu0 %v3356
        %3688 = vmatpush.bf16.msra.mxu0 %v3355
        %3689 = vmatmul.bf16.gmra.mxu0 %v2713
        %v3690 = vpop.f32.mrf.mxu0
        %v3691 = vadd.f32 %v3678, %v3690
        %v3692 = vpop.f32.mrf.mxu0
        %3693 = vdwg.mxu0
        %3694 = vmatpush.bf16.msra.mxu0 %v3370
        %3695 = vmatpush.bf16.msra.mxu0 %v3369
        %3696 = vmatpush.bf16.msra.mxu0 %v3368
        %3697 = vmatpush.bf16.msra.mxu0 %v3367
        %3698 = vmatpush.bf16.msra.mxu0 %v3366
        %3699 = vmatpush.bf16.msra.mxu0 %v3365
        %3700 = vmatpush.bf16.msra.mxu0 %v3364
        %3701 = vmatpush.bf16.msra.mxu0 %v3363
        %3702 = vmatmul.bf16.gmra.mxu0 %v2714
        %v3703 = vpop.f32.mrf.mxu0
        %v3704 = vadd.f32 %v3691, %v3703
        %v3705 = vpop.f32.mrf.mxu0
        %3706 = vdwg.mxu0
        %v3707 = vmax.f32 %v3704, 0.0
        %v3708 = vpack.c.bf16 %v3707, %v3707
        %s3709 = scalar_lea.vmem [#allocation3], 2
        %v3710 = vld [vmem:[%s3709] sm:$0x3]
        %v3711 = vsel %vm2339, %v3708, %v3710
        %3712 = vst [vmem:[%s3709] sm:$0x3] %v3711
        %v3713 = vld [vmem:[#allocation2 + $0x4] sm:$0x3]
        %v3714 = vld [vmem:[%s630 + $0x4] sm:$0x3]
        %v3715 = vld [vmem:[%s809 + $0x4] sm:$0x3]
        %v3716 = vld [vmem:[%s988 + $0x4] sm:$0x3]
        %v3717 = vld [vmem:[#allocation2 + $0x4] sm:$0xc]
        %v3718 = vld [vmem:[%s630 + $0x4] sm:$0xc]
        %v3719 = vld [vmem:[%s809 + $0x4] sm:$0xc]
        %v3720 = vld [vmem:[%s988 + $0x4] sm:$0xc]
        %v3722 = vunpack.c.l.b16 %v3713
        %v3723 = vpack.c.b16 %v3722, %v3722
        %v3725 = vshrl.u32 %v3723, 16
        %v3727 = vshll.u32 %v3723, 16
        %v3729 = vrot.slane %v3727, 1
        %v3730 = vor.u32 %v3725, %v3729
        %v3733 = vunpack.c.l.b16 %v3714
        %v3734 = vpack.c.b16 %v3733, %v3733
        %v3736 = vshrl.u32 %v3734, 16
        %v3738 = vshll.u32 %v3734, 16
        %v3740 = vrot.slane %v3738, 1
        %v3741 = vor.u32 %v3736, %v3740
        %v3744 = vunpack.c.l.b16 %v3715
        %v3745 = vpack.c.b16 %v3744, %v3744
        %v3747 = vshrl.u32 %v3745, 16
        %v3749 = vshll.u32 %v3745, 16
        %v3751 = vrot.slane %v3749, 1
        %v3752 = vor.u32 %v3747, %v3751
        %v3755 = vunpack.c.l.b16 %v3716
        %v3756 = vpack.c.b16 %v3755, %v3755
        %v3758 = vshrl.u32 %v3756, 16
        %v3760 = vshll.u32 %v3756, 16
        %v3762 = vrot.slane %v3760, 1
        %v3763 = vor.u32 %v3758, %v3762
        %v3766 = vunpack.c.l.b16 %v3717
        %v3767 = vpack.c.b16 %v3766, %v3766
        %v3768 = vrot.slane %v3767, 2
        %v3771 = vunpack.c.l.b16 %v3718
        %v3772 = vpack.c.b16 %v3771, %v3771
        %v3773 = vrot.slane %v3772, 2
        %v3776 = vshrl.u32 %v3767, 16
        %v3778 = vrot.slane %v3776, 2
        %v3779 = vshll.u32 %v3767, 16
        %v3781 = vrot.slane %v3779, 3
        %v3782 = vor.u32 %v3778, %v3781
        %v3785 = vshrl.u32 %v3772, 16
        %v3787 = vrot.slane %v3785, 2
        %v3788 = vshll.u32 %v3772, 16
        %v3790 = vrot.slane %v3788, 3
        %v3791 = vor.u32 %v3787, %v3790
        %v3794 = vunpack.c.l.b16 %v3719
        %v3795 = vpack.c.b16 %v3794, %v3794
        %v3796 = vrot.slane %v3795, 2
        %v3799 = vunpack.c.l.b16 %v3720
        %v3800 = vpack.c.b16 %v3799, %v3799
        %v3801 = vrot.slane %v3800, 2
        %v3804 = vshrl.u32 %v3795, 16
        %v3806 = vrot.slane %v3804, 2
        %v3807 = vshll.u32 %v3795, 16
        %v3809 = vrot.slane %v3807, 3
        %v3810 = vor.u32 %v3806, %v3809
        %v3813 = vshrl.u32 %v3800, 16
        %v3815 = vrot.slane %v3813, 2
        %v3816 = vshll.u32 %v3800, 16
        %v3818 = vrot.slane %v3816, 3
        %v3819 = vor.u32 %v3815, %v3818
        %v3821 = vld [vmem:[%s3] sm:$0xf]
        %v3822 = vld [vmem:[%s3 + $0x4] sm:$0xf]
        %v3823 = vld [vmem:[%s3 + $0x8] sm:$0xf]
        %v3824 = vld [vmem:[%s3 + $0xc] sm:$0xf]
        %v3825 = vld [vmem:[%s3 + $0x10] sm:$0xf]
        %v3826 = vld [vmem:[%s3 + $0x14] sm:$0xf]
        %v3827 = vld [vmem:[%s3 + $0x18] sm:$0xf]
        %v3828 = vld [vmem:[%s3 + $0x1c] sm:$0xf]
        %v3829 = vld [vmem:[%s3 + $0x20] sm:$0xf]
        %v3830 = vld [vmem:[%s3 + $0x24] sm:$0xf]
        %v3831 = vld [vmem:[%s3 + $0x28] sm:$0xf]
        %v3832 = vld [vmem:[%s3 + $0x2c] sm:$0xf]
        %v3833 = vld [vmem:[%s3 + $0x30] sm:$0xf]
        %v3834 = vld [vmem:[%s3 + $0x34] sm:$0xf]
        %v3835 = vld [vmem:[%s3 + $0x38] sm:$0xf]
        %v3836 = vld [vmem:[%s3 + $0x3c] sm:$0xf]
        %v3837 = vld [vmem:[%s3 + $0x40] sm:$0xf]
        %v3838 = vld [vmem:[%s3 + $0x44] sm:$0xf]
        %v3839 = vld [vmem:[%s3 + $0x48] sm:$0xf]
        %v3840 = vld [vmem:[%s3 + $0x4c] sm:$0xf]
        %v3841 = vld [vmem:[%s3 + $0x50] sm:$0xf]
        %v3842 = vld [vmem:[%s3 + $0x54] sm:$0xf]
        %v3843 = vld [vmem:[%s3 + $0x58] sm:$0xf]
        %v3844 = vld [vmem:[%s3 + $0x5c] sm:$0xf]
        %v3845 = vld [vmem:[%s3 + $0x60] sm:$0xf]
        %v3846 = vld [vmem:[%s3 + $0x64] sm:$0xf]
        %v3847 = vld [vmem:[%s3 + $0x68] sm:$0xf]
        %v3848 = vld [vmem:[%s3 + $0x6c] sm:$0xf]
        %v3849 = vld [vmem:[%s3 + $0x70] sm:$0xf]
        %v3850 = vld [vmem:[%s3 + $0x74] sm:$0xf]
        %v3851 = vld [vmem:[%s3 + $0x78] sm:$0xf]
        %v3852 = vld [vmem:[%s3 + $0x7c] sm:$0xf]
        %v3853 = vld [vmem:[%s3 + $0x80] sm:$0xf]
        %v3854 = vld [vmem:[%s3 + $0x84] sm:$0xf]
        %v3855 = vld [vmem:[%s3 + $0x88] sm:$0xf]
        %v3856 = vld [vmem:[%s3 + $0x8c] sm:$0xf]
        %v3857 = vld [vmem:[%s3 + $0x90] sm:$0xf]
        %v3858 = vld [vmem:[%s3 + $0x94] sm:$0xf]
        %v3859 = vld [vmem:[%s3 + $0x98] sm:$0xf]
        %v3860 = vld [vmem:[%s3 + $0x9c] sm:$0xf]
        %v3861 = vld [vmem:[%s3 + $0xa0] sm:$0xf]
        %v3862 = vld [vmem:[%s3 + $0xa4] sm:$0xf]
        %v3863 = vld [vmem:[%s3 + $0xa8] sm:$0xf]
        %v3864 = vld [vmem:[%s3 + $0xac] sm:$0xf]
        %v3865 = vld [vmem:[%s3 + $0xb0] sm:$0xf]
        %v3866 = vld [vmem:[%s3 + $0xb4] sm:$0xf]
        %v3867 = vld [vmem:[%s3 + $0xb8] sm:$0xf]
        %v3868 = vld [vmem:[%s3 + $0xbc] sm:$0xf]
        %v3869 = vld [vmem:[%s3 + $0xc0] sm:$0xf]
        %v3870 = vld [vmem:[%s3 + $0xc4] sm:$0xf]
        %v3871 = vld [vmem:[%s3 + $0xc8] sm:$0xf]
        %v3872 = vld [vmem:[%s3 + $0xcc] sm:$0xf]
        %v3873 = vld [vmem:[%s3 + $0xd0] sm:$0xf]
        %v3874 = vld [vmem:[%s3 + $0xd4] sm:$0xf]
        %v3875 = vld [vmem:[%s3 + $0xd8] sm:$0xf]
        %v3876 = vld [vmem:[%s3 + $0xdc] sm:$0xf]
        %v3877 = vld [vmem:[%s3 + $0xe0] sm:$0xf]
        %v3878 = vld [vmem:[%s3 + $0xe4] sm:$0xf]
        %v3879 = vld [vmem:[%s3 + $0xe8] sm:$0xf]
        %v3880 = vld [vmem:[%s3 + $0xec] sm:$0xf]
        %v3881 = vld [vmem:[%s3 + $0xf0] sm:$0xf]
        %v3882 = vld [vmem:[%s3 + $0xf4] sm:$0xf]
        %v3883 = vld [vmem:[%s3 + $0xf8] sm:$0xf]
        %v3884 = vld [vmem:[%s3 + $0xfc] sm:$0xf]
        %v3885 = vld [vmem:[%s3 + $0x100] sm:$0xf]
        %v3886 = vld [vmem:[%s3 + $0x104] sm:$0xf]
        %v3887 = vld [vmem:[%s3 + $0x108] sm:$0xf]
        %v3888 = vld [vmem:[%s3 + $0x10c] sm:$0xf]
        %v3889 = vld [vmem:[%s3 + $0x110] sm:$0xf]
        %v3890 = vld [vmem:[%s3 + $0x114] sm:$0xf]
        %v3891 = vld [vmem:[%s3 + $0x118] sm:$0xf]
        %v3892 = vld [vmem:[%s3 + $0x11c] sm:$0xf]
        %v3893 = vld [vmem:[%s3 + $0x120] sm:$0xf]
        %v3894 = vld [vmem:[%s3 + $0x124] sm:$0xf]
        %v3895 = vld [vmem:[%s3 + $0x128] sm:$0xf]
        %v3896 = vld [vmem:[%s3 + $0x12c] sm:$0xf]
        %v3897 = vld [vmem:[%s3 + $0x130] sm:$0xf]
        %v3898 = vld [vmem:[%s3 + $0x134] sm:$0xf]
        %v3899 = vld [vmem:[%s3 + $0x138] sm:$0xf]
        %v3900 = vld [vmem:[%s3 + $0x13c] sm:$0xf]
        %v3901 = vld [vmem:[%s3 + $0x140] sm:$0xf]
        %v3902 = vld [vmem:[%s3 + $0x144] sm:$0xf]
        %v3903 = vld [vmem:[%s3 + $0x148] sm:$0xf]
        %v3904 = vld [vmem:[%s3 + $0x14c] sm:$0xf]
        %v3905 = vld [vmem:[%s3 + $0x150] sm:$0xf]
        %v3906 = vld [vmem:[%s3 + $0x154] sm:$0xf]
        %v3907 = vld [vmem:[%s3 + $0x158] sm:$0xf]
        %v3908 = vld [vmem:[%s3 + $0x15c] sm:$0xf]
        %v3909 = vld [vmem:[%s3 + $0x160] sm:$0xf]
        %v3910 = vld [vmem:[%s3 + $0x164] sm:$0xf]
        %v3911 = vld [vmem:[%s3 + $0x168] sm:$0xf]
        %v3912 = vld [vmem:[%s3 + $0x16c] sm:$0xf]
        %v3913 = vld [vmem:[%s3 + $0x170] sm:$0xf]
        %v3914 = vld [vmem:[%s3 + $0x174] sm:$0xf]
        %v3915 = vld [vmem:[%s3 + $0x178] sm:$0xf]
        %v3916 = vld [vmem:[%s3 + $0x17c] sm:$0xf]
        %v3917 = vld [vmem:[%s3 + $0x180] sm:$0xf]
        %v3918 = vld [vmem:[%s3 + $0x184] sm:$0xf]
        %v3919 = vld [vmem:[%s3 + $0x188] sm:$0xf]
        %v3920 = vld [vmem:[%s3 + $0x18c] sm:$0xf]
        %v3921 = vld [vmem:[%s3 + $0x190] sm:$0xf]
        %v3922 = vld [vmem:[%s3 + $0x194] sm:$0xf]
        %v3923 = vld [vmem:[%s3 + $0x198] sm:$0xf]
        %v3924 = vld [vmem:[%s3 + $0x19c] sm:$0xf]
        %v3925 = vld [vmem:[%s3 + $0x1a0] sm:$0xf]
        %v3926 = vld [vmem:[%s3 + $0x1a4] sm:$0xf]
        %v3927 = vld [vmem:[%s3 + $0x1a8] sm:$0xf]
        %v3928 = vld [vmem:[%s3 + $0x1ac] sm:$0xf]
        %v3929 = vld [vmem:[%s3 + $0x1b0] sm:$0xf]
        %v3930 = vld [vmem:[%s3 + $0x1b4] sm:$0xf]
        %v3931 = vld [vmem:[%s3 + $0x1b8] sm:$0xf]
        %v3932 = vld [vmem:[%s3 + $0x1bc] sm:$0xf]
        %v3933 = vld [vmem:[%s3 + $0x1c0] sm:$0xf]
        %v3934 = vld [vmem:[%s3 + $0x1c4] sm:$0xf]
        %v3935 = vld [vmem:[%s3 + $0x1c8] sm:$0xf]
        %v3936 = vld [vmem:[%s3 + $0x1cc] sm:$0xf]
        %v3937 = vld [vmem:[%s3 + $0x1d0] sm:$0xf]
        %v3938 = vld [vmem:[%s3 + $0x1d4] sm:$0xf]
        %v3939 = vld [vmem:[%s3 + $0x1d8] sm:$0xf]
        %v3940 = vld [vmem:[%s3 + $0x1dc] sm:$0xf]
        %v3941 = vld [vmem:[%s3 + $0x1e0] sm:$0xf]
        %v3942 = vld [vmem:[%s3 + $0x1e4] sm:$0xf]
        %v3943 = vld [vmem:[%s3 + $0x1e8] sm:$0xf]
        %v3944 = vld [vmem:[%s3 + $0x1ec] sm:$0xf]
        %v3945 = vld [vmem:[%s3 + $0x1f0] sm:$0xf]
        %v3946 = vld [vmem:[%s3 + $0x1f4] sm:$0xf]
        %v3947 = vld [vmem:[%s3 + $0x1f8] sm:$0xf]
        %v3948 = vld [vmem:[%s3 + $0x1fc] sm:$0xf]
        %v3949 = vld [vmem:[%s3 + $0x200] sm:$0xf]
        %v3950 = vld [vmem:[%s3 + $0x204] sm:$0xf]
        %v3951 = vld [vmem:[%s3 + $0x208] sm:$0xf]
        %v3952 = vld [vmem:[%s3 + $0x20c] sm:$0xf]
        %v3953 = vld [vmem:[%s3 + $0x210] sm:$0xf]
        %v3954 = vld [vmem:[%s3 + $0x214] sm:$0xf]
        %v3955 = vld [vmem:[%s3 + $0x218] sm:$0xf]
        %v3956 = vld [vmem:[%s3 + $0x21c] sm:$0xf]
        %v3957 = vld [vmem:[%s3 + $0x220] sm:$0xf]
        %v3958 = vld [vmem:[%s3 + $0x224] sm:$0xf]
        %v3959 = vld [vmem:[%s3 + $0x228] sm:$0xf]
        %v3960 = vld [vmem:[%s3 + $0x22c] sm:$0xf]
        %v3961 = vld [vmem:[%s3 + $0x230] sm:$0xf]
        %v3962 = vld [vmem:[%s3 + $0x234] sm:$0xf]
        %v3963 = vld [vmem:[%s3 + $0x238] sm:$0xf]
        %v3964 = vld [vmem:[%s3 + $0x23c] sm:$0xf]
        %v3965 = vld [vmem:[%s3 + $0x240] sm:$0xf]
        %v3966 = vld [vmem:[%s3 + $0x244] sm:$0xf]
        %v3967 = vld [vmem:[%s3 + $0x248] sm:$0xf]
        %v3968 = vld [vmem:[%s3 + $0x24c] sm:$0xf]
        %v3969 = vld [vmem:[%s3 + $0x250] sm:$0xf]
        %v3970 = vld [vmem:[%s3 + $0x254] sm:$0xf]
        %v3971 = vld [vmem:[%s3 + $0x258] sm:$0xf]
        %v3972 = vld [vmem:[%s3 + $0x25c] sm:$0xf]
        %v3973 = vld [vmem:[%s3 + $0x260] sm:$0xf]
        %v3974 = vld [vmem:[%s3 + $0x264] sm:$0xf]
        %v3975 = vld [vmem:[%s3 + $0x268] sm:$0xf]
        %v3976 = vld [vmem:[%s3 + $0x26c] sm:$0xf]
        %v3977 = vld [vmem:[%s3 + $0x270] sm:$0xf]
        %v3978 = vld [vmem:[%s3 + $0x274] sm:$0xf]
        %v3979 = vld [vmem:[%s3 + $0x278] sm:$0xf]
        %v3980 = vld [vmem:[%s3 + $0x27c] sm:$0xf]
        %v3981 = vld [vmem:[%s3 + $0x280] sm:$0xf]
        %v3982 = vld [vmem:[%s3 + $0x284] sm:$0xf]
        %v3983 = vld [vmem:[%s3 + $0x288] sm:$0xf]
        %v3984 = vld [vmem:[%s3 + $0x28c] sm:$0xf]
        %v3985 = vld [vmem:[%s3 + $0x290] sm:$0xf]
        %v3986 = vld [vmem:[%s3 + $0x294] sm:$0xf]
        %v3987 = vld [vmem:[%s3 + $0x298] sm:$0xf]
        %v3988 = vld [vmem:[%s3 + $0x29c] sm:$0xf]
        %v3989 = vld [vmem:[%s3 + $0x2a0] sm:$0xf]
        %v3990 = vld [vmem:[%s3 + $0x2a4] sm:$0xf]
        %v3991 = vld [vmem:[%s3 + $0x2a8] sm:$0xf]
        %v3992 = vld [vmem:[%s3 + $0x2ac] sm:$0xf]
        %v3993 = vld [vmem:[%s3 + $0x2b0] sm:$0xf]
        %v3994 = vld [vmem:[%s3 + $0x2b4] sm:$0xf]
        %v3995 = vld [vmem:[%s3 + $0x2b8] sm:$0xf]
        %v3996 = vld [vmem:[%s3 + $0x2bc] sm:$0xf]
        %v3997 = vld [vmem:[%s3 + $0x2c0] sm:$0xf]
        %v3998 = vld [vmem:[%s3 + $0x2c4] sm:$0xf]
        %v3999 = vld [vmem:[%s3 + $0x2c8] sm:$0xf]
        %v4000 = vld [vmem:[%s3 + $0x2cc] sm:$0xf]
        %v4001 = vld [vmem:[%s3 + $0x2d0] sm:$0xf]
        %v4002 = vld [vmem:[%s3 + $0x2d4] sm:$0xf]
        %v4003 = vld [vmem:[%s3 + $0x2d8] sm:$0xf]
        %v4004 = vld [vmem:[%s3 + $0x2dc] sm:$0xf]
        %v4005 = vld [vmem:[%s3 + $0x2e0] sm:$0xf]
        %v4006 = vld [vmem:[%s3 + $0x2e4] sm:$0xf]
        %v4007 = vld [vmem:[%s3 + $0x2e8] sm:$0xf]
        %v4008 = vld [vmem:[%s3 + $0x2ec] sm:$0xf]
        %v4009 = vld [vmem:[%s3 + $0x2f0] sm:$0xf]
        %v4010 = vld [vmem:[%s3 + $0x2f4] sm:$0xf]
        %v4011 = vld [vmem:[%s3 + $0x2f8] sm:$0xf]
        %v4012 = vld [vmem:[%s3 + $0x2fc] sm:$0xf]
        %v4013 = vld [vmem:[%s3 + $0x300] sm:$0xf]
        %v4014 = vld [vmem:[%s3 + $0x304] sm:$0xf]
        %v4015 = vld [vmem:[%s3 + $0x308] sm:$0xf]
        %v4016 = vld [vmem:[%s3 + $0x30c] sm:$0xf]
        %v4017 = vld [vmem:[%s3 + $0x310] sm:$0xf]
        %v4018 = vld [vmem:[%s3 + $0x314] sm:$0xf]
        %v4019 = vld [vmem:[%s3 + $0x318] sm:$0xf]
        %v4020 = vld [vmem:[%s3 + $0x31c] sm:$0xf]
        %v4021 = vld [vmem:[%s3 + $0x320] sm:$0xf]
        %v4022 = vld [vmem:[%s3 + $0x324] sm:$0xf]
        %v4023 = vld [vmem:[%s3 + $0x328] sm:$0xf]
        %v4024 = vld [vmem:[%s3 + $0x32c] sm:$0xf]
        %v4025 = vld [vmem:[%s3 + $0x330] sm:$0xf]
        %v4026 = vld [vmem:[%s3 + $0x334] sm:$0xf]
        %v4027 = vld [vmem:[%s3 + $0x338] sm:$0xf]
        %v4028 = vld [vmem:[%s3 + $0x33c] sm:$0xf]
        %v4029 = vld [vmem:[%s3 + $0x340] sm:$0xf]
        %v4030 = vld [vmem:[%s3 + $0x344] sm:$0xf]
        %v4031 = vld [vmem:[%s3 + $0x348] sm:$0xf]
        %v4032 = vld [vmem:[%s3 + $0x34c] sm:$0xf]
        %v4033 = vld [vmem:[%s3 + $0x350] sm:$0xf]
        %v4034 = vld [vmem:[%s3 + $0x354] sm:$0xf]
        %v4035 = vld [vmem:[%s3 + $0x358] sm:$0xf]
        %v4036 = vld [vmem:[%s3 + $0x35c] sm:$0xf]
        %v4037 = vld [vmem:[%s3 + $0x360] sm:$0xf]
        %v4038 = vld [vmem:[%s3 + $0x364] sm:$0xf]
        %v4039 = vld [vmem:[%s3 + $0x368] sm:$0xf]
        %v4040 = vld [vmem:[%s3 + $0x36c] sm:$0xf]
        %v4041 = vld [vmem:[%s3 + $0x370] sm:$0xf]
        %v4042 = vld [vmem:[%s3 + $0x374] sm:$0xf]
        %v4043 = vld [vmem:[%s3 + $0x378] sm:$0xf]
        %v4044 = vld [vmem:[%s3 + $0x37c] sm:$0xf]
        %v4045 = vld [vmem:[%s3 + $0x380] sm:$0xf]
        %v4046 = vld [vmem:[%s3 + $0x384] sm:$0xf]
        %v4047 = vld [vmem:[%s3 + $0x388] sm:$0xf]
        %v4048 = vld [vmem:[%s3 + $0x38c] sm:$0xf]
        %v4049 = vld [vmem:[%s3 + $0x390] sm:$0xf]
        %v4050 = vld [vmem:[%s3 + $0x394] sm:$0xf]
        %v4051 = vld [vmem:[%s3 + $0x398] sm:$0xf]
        %v4052 = vld [vmem:[%s3 + $0x39c] sm:$0xf]
        %v4053 = vld [vmem:[%s3 + $0x3a0] sm:$0xf]
        %v4054 = vld [vmem:[%s3 + $0x3a4] sm:$0xf]
        %v4055 = vld [vmem:[%s3 + $0x3a8] sm:$0xf]
        %v4056 = vld [vmem:[%s3 + $0x3ac] sm:$0xf]
        %v4057 = vld [vmem:[%s3 + $0x3b0] sm:$0xf]
        %v4058 = vld [vmem:[%s3 + $0x3b4] sm:$0xf]
        %v4059 = vld [vmem:[%s3 + $0x3b8] sm:$0xf]
        %v4060 = vld [vmem:[%s3 + $0x3bc] sm:$0xf]
        %v4061 = vld [vmem:[%s3 + $0x3c0] sm:$0xf]
        %v4062 = vld [vmem:[%s3 + $0x3c4] sm:$0xf]
        %v4063 = vld [vmem:[%s3 + $0x3c8] sm:$0xf]
        %v4064 = vld [vmem:[%s3 + $0x3cc] sm:$0xf]
        %v4065 = vld [vmem:[%s3 + $0x3d0] sm:$0xf]
        %v4066 = vld [vmem:[%s3 + $0x3d4] sm:$0xf]
        %v4067 = vld [vmem:[%s3 + $0x3d8] sm:$0xf]
        %v4068 = vld [vmem:[%s3 + $0x3dc] sm:$0xf]
        %v4069 = vld [vmem:[%s3 + $0x3e0] sm:$0xf]
        %v4070 = vld [vmem:[%s3 + $0x3e4] sm:$0xf]
        %v4071 = vld [vmem:[%s3 + $0x3e8] sm:$0xf]
        %v4072 = vld [vmem:[%s3 + $0x3ec] sm:$0xf]
        %v4073 = vld [vmem:[%s3 + $0x3f0] sm:$0xf]
        %v4074 = vld [vmem:[%s3 + $0x3f4] sm:$0xf]
        %v4075 = vld [vmem:[%s3 + $0x3f8] sm:$0xf]
        %v4076 = vld [vmem:[%s3 + $0x3fc] sm:$0xf]
        %v4077 = vld [vmem:[%s4] sm:$0x1]
        %v4079 = vperm.slane %v4077, 0
        %v4337 = vunpack.c.l.b16 %v3821
        %v4338 = vunpack.c.l.b16 %v3822
        %v4339 = vunpack.c.l.b16 %v3823
        %v4340 = vunpack.c.l.b16 %v3824
        %v4341 = vunpack.c.l.b16 %v3825
        %v4342 = vunpack.c.l.b16 %v3826
        %v4343 = vunpack.c.l.b16 %v3827
        %v4344 = vunpack.c.l.b16 %v3828
        %v4345 = vunpack.c.l.b16 %v3829
        %v4346 = vunpack.c.l.b16 %v3830
        %v4347 = vunpack.c.l.b16 %v3831
        %v4348 = vunpack.c.l.b16 %v3832
        %v4349 = vunpack.c.l.b16 %v3833
        %v4350 = vunpack.c.l.b16 %v3834
        %v4351 = vunpack.c.l.b16 %v3835
        %v4352 = vunpack.c.l.b16 %v3836
        %v4353 = vunpack.c.l.b16 %v3837
        %v4354 = vunpack.c.l.b16 %v3838
        %v4355 = vunpack.c.l.b16 %v3839
        %v4356 = vunpack.c.l.b16 %v3840
        %v4357 = vunpack.c.l.b16 %v3841
        %v4358 = vunpack.c.l.b16 %v3842
        %v4359 = vunpack.c.l.b16 %v3843
        %v4360 = vunpack.c.l.b16 %v3844
        %v4361 = vunpack.c.l.b16 %v3845
        %v4362 = vunpack.c.l.b16 %v3846
        %v4363 = vunpack.c.l.b16 %v3847
        %v4364 = vunpack.c.l.b16 %v3848
        %v4365 = vunpack.c.l.b16 %v3849
        %v4366 = vunpack.c.l.b16 %v3850
        %v4367 = vunpack.c.l.b16 %v3851
        %v4368 = vunpack.c.l.b16 %v3852
        %v4369 = vunpack.c.l.b16 %v3853
        %v4370 = vunpack.c.l.b16 %v3854
        %v4371 = vunpack.c.l.b16 %v3855
        %v4372 = vunpack.c.l.b16 %v3856
        %v4373 = vunpack.c.l.b16 %v3857
        %v4374 = vunpack.c.l.b16 %v3858
        %v4375 = vunpack.c.l.b16 %v3859
        %v4376 = vunpack.c.l.b16 %v3860
        %v4377 = vunpack.c.l.b16 %v3861
        %v4378 = vunpack.c.l.b16 %v3862
        %v4379 = vunpack.c.l.b16 %v3863
        %v4380 = vunpack.c.l.b16 %v3864
        %v4381 = vunpack.c.l.b16 %v3865
        %v4382 = vunpack.c.l.b16 %v3866
        %v4383 = vunpack.c.l.b16 %v3867
        %v4384 = vunpack.c.l.b16 %v3868
        %v4385 = vunpack.c.l.b16 %v3869
        %v4386 = vunpack.c.l.b16 %v3870
        %v4387 = vunpack.c.l.b16 %v3871
        %v4388 = vunpack.c.l.b16 %v3872
        %v4389 = vunpack.c.l.b16 %v3873
        %v4390 = vunpack.c.l.b16 %v3874
        %v4391 = vunpack.c.l.b16 %v3875
        %v4392 = vunpack.c.l.b16 %v3876
        %v4393 = vunpack.c.l.b16 %v3877
        %v4394 = vunpack.c.l.b16 %v3878
        %v4395 = vunpack.c.l.b16 %v3879
        %v4396 = vunpack.c.l.b16 %v3880
        %v4397 = vunpack.c.l.b16 %v3881
        %v4398 = vunpack.c.l.b16 %v3882
        %v4399 = vunpack.c.l.b16 %v3883
        %v4400 = vunpack.c.l.b16 %v3884
        %v4401 = vunpack.c.l.b16 %v3885
        %v4402 = vunpack.c.l.b16 %v3886
        %v4403 = vunpack.c.l.b16 %v3887
        %v4404 = vunpack.c.l.b16 %v3888
        %v4405 = vunpack.c.l.b16 %v3889
        %v4406 = vunpack.c.l.b16 %v3890
        %v4407 = vunpack.c.l.b16 %v3891
        %v4408 = vunpack.c.l.b16 %v3892
        %v4409 = vunpack.c.l.b16 %v3893
        %v4410 = vunpack.c.l.b16 %v3894
        %v4411 = vunpack.c.l.b16 %v3895
        %v4412 = vunpack.c.l.b16 %v3896
        %v4413 = vunpack.c.l.b16 %v3897
        %v4414 = vunpack.c.l.b16 %v3898
        %v4415 = vunpack.c.l.b16 %v3899
        %v4416 = vunpack.c.l.b16 %v3900
        %v4417 = vunpack.c.l.b16 %v3901
        %v4418 = vunpack.c.l.b16 %v3902
        %v4419 = vunpack.c.l.b16 %v3903
        %v4420 = vunpack.c.l.b16 %v3904
        %v4421 = vunpack.c.l.b16 %v3905
        %v4422 = vunpack.c.l.b16 %v3906
        %v4423 = vunpack.c.l.b16 %v3907
        %v4424 = vunpack.c.l.b16 %v3908
        %v4425 = vunpack.c.l.b16 %v3909
        %v4426 = vunpack.c.l.b16 %v3910
        %v4427 = vunpack.c.l.b16 %v3911
        %v4428 = vunpack.c.l.b16 %v3912
        %v4429 = vunpack.c.l.b16 %v3913
        %v4430 = vunpack.c.l.b16 %v3914
        %v4431 = vunpack.c.l.b16 %v3915
        %v4432 = vunpack.c.l.b16 %v3916
        %v4433 = vunpack.c.l.b16 %v3917
        %v4434 = vunpack.c.l.b16 %v3918
        %v4435 = vunpack.c.l.b16 %v3919
        %v4436 = vunpack.c.l.b16 %v3920
        %v4437 = vunpack.c.l.b16 %v3921
        %v4438 = vunpack.c.l.b16 %v3922
        %v4439 = vunpack.c.l.b16 %v3923
        %v4440 = vunpack.c.l.b16 %v3924
        %v4441 = vunpack.c.l.b16 %v3925
        %v4442 = vunpack.c.l.b16 %v3926
        %v4443 = vunpack.c.l.b16 %v3927
        %v4444 = vunpack.c.l.b16 %v3928
        %v4445 = vunpack.c.l.b16 %v3929
        %v4446 = vunpack.c.l.b16 %v3930
        %v4447 = vunpack.c.l.b16 %v3931
        %v4448 = vunpack.c.l.b16 %v3932
        %v4449 = vunpack.c.l.b16 %v3933
        %v4450 = vunpack.c.l.b16 %v3934
        %v4451 = vunpack.c.l.b16 %v3935
        %v4452 = vunpack.c.l.b16 %v3936
        %v4453 = vunpack.c.l.b16 %v3937
        %v4454 = vunpack.c.l.b16 %v3938
        %v4455 = vunpack.c.l.b16 %v3939
        %v4456 = vunpack.c.l.b16 %v3940
        %v4457 = vunpack.c.l.b16 %v3941
        %v4458 = vunpack.c.l.b16 %v3942
        %v4459 = vunpack.c.l.b16 %v3943
        %v4460 = vunpack.c.l.b16 %v3944
        %v4461 = vunpack.c.l.b16 %v3945
        %v4462 = vunpack.c.l.b16 %v3946
        %v4463 = vunpack.c.l.b16 %v3947
        %v4464 = vunpack.c.l.b16 %v3948
        %v4465 = vunpack.c.l.b16 %v3949
        %v4466 = vunpack.c.l.b16 %v3950
        %v4467 = vunpack.c.l.b16 %v3951
        %v4468 = vunpack.c.l.b16 %v3952
        %v4469 = vunpack.c.l.b16 %v3953
        %v4470 = vunpack.c.l.b16 %v3954
        %v4471 = vunpack.c.l.b16 %v3955
        %v4472 = vunpack.c.l.b16 %v3956
        %v4473 = vunpack.c.l.b16 %v3957
        %v4474 = vunpack.c.l.b16 %v3958
        %v4475 = vunpack.c.l.b16 %v3959
        %v4476 = vunpack.c.l.b16 %v3960
        %v4477 = vunpack.c.l.b16 %v3961
        %v4478 = vunpack.c.l.b16 %v3962
        %v4479 = vunpack.c.l.b16 %v3963
        %v4480 = vunpack.c.l.b16 %v3964
        %v4481 = vunpack.c.l.b16 %v3965
        %v4482 = vunpack.c.l.b16 %v3966
        %v4483 = vunpack.c.l.b16 %v3967
        %v4484 = vunpack.c.l.b16 %v3968
        %v4485 = vunpack.c.l.b16 %v3969
        %v4486 = vunpack.c.l.b16 %v3970
        %v4487 = vunpack.c.l.b16 %v3971
        %v4488 = vunpack.c.l.b16 %v3972
        %v4489 = vunpack.c.l.b16 %v3973
        %v4490 = vunpack.c.l.b16 %v3974
        %v4491 = vunpack.c.l.b16 %v3975
        %v4492 = vunpack.c.l.b16 %v3976
        %v4493 = vunpack.c.l.b16 %v3977
        %v4494 = vunpack.c.l.b16 %v3978
        %v4495 = vunpack.c.l.b16 %v3979
        %v4496 = vunpack.c.l.b16 %v3980
        %v4497 = vunpack.c.l.b16 %v3981
        %v4498 = vunpack.c.l.b16 %v3982
        %v4499 = vunpack.c.l.b16 %v3983
        %v4500 = vunpack.c.l.b16 %v3984
        %v4501 = vunpack.c.l.b16 %v3985
        %v4502 = vunpack.c.l.b16 %v3986
        %v4503 = vunpack.c.l.b16 %v3987
        %v4504 = vunpack.c.l.b16 %v3988
        %v4505 = vunpack.c.l.b16 %v3989
        %v4506 = vunpack.c.l.b16 %v3990
        %v4507 = vunpack.c.l.b16 %v3991
        %v4508 = vunpack.c.l.b16 %v3992
        %v4509 = vunpack.c.l.b16 %v3993
        %v4510 = vunpack.c.l.b16 %v3994
        %v4511 = vunpack.c.l.b16 %v3995
        %v4512 = vunpack.c.l.b16 %v3996
        %v4513 = vunpack.c.l.b16 %v3997
        %v4514 = vunpack.c.l.b16 %v3998
        %v4515 = vunpack.c.l.b16 %v3999
        %v4516 = vunpack.c.l.b16 %v4000
        %v4517 = vunpack.c.l.b16 %v4001
        %v4518 = vunpack.c.l.b16 %v4002
        %v4519 = vunpack.c.l.b16 %v4003
        %v4520 = vunpack.c.l.b16 %v4004
        %v4521 = vunpack.c.l.b16 %v4005
        %v4522 = vunpack.c.l.b16 %v4006
        %v4523 = vunpack.c.l.b16 %v4007
        %v4524 = vunpack.c.l.b16 %v4008
        %v4525 = vunpack.c.l.b16 %v4009
        %v4526 = vunpack.c.l.b16 %v4010
        %v4527 = vunpack.c.l.b16 %v4011
        %v4528 = vunpack.c.l.b16 %v4012
        %v4529 = vunpack.c.l.b16 %v4013
        %v4530 = vunpack.c.l.b16 %v4014
        %v4531 = vunpack.c.l.b16 %v4015
        %v4532 = vunpack.c.l.b16 %v4016
        %v4533 = vunpack.c.l.b16 %v4017
        %v4534 = vunpack.c.l.b16 %v4018
        %v4535 = vunpack.c.l.b16 %v4019
        %v4536 = vunpack.c.l.b16 %v4020
        %v4537 = vunpack.c.l.b16 %v4021
        %v4538 = vunpack.c.l.b16 %v4022
        %v4539 = vunpack.c.l.b16 %v4023
        %v4540 = vunpack.c.l.b16 %v4024
        %v4541 = vunpack.c.l.b16 %v4025
        %v4542 = vunpack.c.l.b16 %v4026
        %v4543 = vunpack.c.l.b16 %v4027
        %v4544 = vunpack.c.l.b16 %v4028
        %v4545 = vunpack.c.l.b16 %v4029
        %v4546 = vunpack.c.l.b16 %v4030
        %v4547 = vunpack.c.l.b16 %v4031
        %v4548 = vunpack.c.l.b16 %v4032
        %v4549 = vunpack.c.l.b16 %v4033
        %v4550 = vunpack.c.l.b16 %v4034
        %v4551 = vunpack.c.l.b16 %v4035
        %v4552 = vunpack.c.l.b16 %v4036
        %v4553 = vunpack.c.l.b16 %v4037
        %v4554 = vunpack.c.l.b16 %v4038
        %v4555 = vunpack.c.l.b16 %v4039
        %v4556 = vunpack.c.l.b16 %v4040
        %v4557 = vunpack.c.l.b16 %v4041
        %v4558 = vunpack.c.l.b16 %v4042
        %v4559 = vunpack.c.l.b16 %v4043
        %v4560 = vunpack.c.l.b16 %v4044
        %v4561 = vunpack.c.l.b16 %v4045
        %v4562 = vunpack.c.l.b16 %v4046
        %v4563 = vunpack.c.l.b16 %v4047
        %v4564 = vunpack.c.l.b16 %v4048
        %v4565 = vunpack.c.l.b16 %v4049
        %v4566 = vunpack.c.l.b16 %v4050
        %v4567 = vunpack.c.l.b16 %v4051
        %v4568 = vunpack.c.l.b16 %v4052
        %v4569 = vunpack.c.l.b16 %v4053
        %v4570 = vunpack.c.l.b16 %v4054
        %v4571 = vunpack.c.l.b16 %v4055
        %v4572 = vunpack.c.l.b16 %v4056
        %v4573 = vunpack.c.l.b16 %v4057
        %v4574 = vunpack.c.l.b16 %v4058
        %v4575 = vunpack.c.l.b16 %v4059
        %v4576 = vunpack.c.l.b16 %v4060
        %v4577 = vunpack.c.l.b16 %v4061
        %v4578 = vunpack.c.l.b16 %v4062
        %v4579 = vunpack.c.l.b16 %v4063
        %v4580 = vunpack.c.l.b16 %v4064
        %v4581 = vunpack.c.l.b16 %v4065
        %v4582 = vunpack.c.l.b16 %v4066
        %v4583 = vunpack.c.l.b16 %v4067
        %v4584 = vunpack.c.l.b16 %v4068
        %v4585 = vunpack.c.l.b16 %v4069
        %v4586 = vunpack.c.l.b16 %v4070
        %v4587 = vunpack.c.l.b16 %v4071
        %v4588 = vunpack.c.l.b16 %v4072
        %v4589 = vunpack.c.l.b16 %v4073
        %v4590 = vunpack.c.l.b16 %v4074
        %v4591 = vunpack.c.l.b16 %v4075
        %v4592 = vunpack.c.l.b16 %v4076
        %v4593 = vpack.c.b16 %v4338, %v4337
        %v4594 = vpack.c.b16 %v4340, %v4339
        %v4595 = vpack.c.b16 %v4342, %v4341
        %v4596 = vpack.c.b16 %v4344, %v4343
        %v4597 = vpack.c.b16 %v4346, %v4345
        %v4598 = vpack.c.b16 %v4348, %v4347
        %v4599 = vpack.c.b16 %v4350, %v4349
        %v4600 = vpack.c.b16 %v4352, %v4351
        %v4601 = vpack.c.b16 %v4354, %v4353
        %v4602 = vpack.c.b16 %v4356, %v4355
        %v4603 = vpack.c.b16 %v4358, %v4357
        %v4604 = vpack.c.b16 %v4360, %v4359
        %v4605 = vpack.c.b16 %v4362, %v4361
        %v4606 = vpack.c.b16 %v4364, %v4363
        %v4607 = vpack.c.b16 %v4366, %v4365
        %v4608 = vpack.c.b16 %v4368, %v4367
        %v4609 = vpack.c.b16 %v4370, %v4369
        %v4610 = vpack.c.b16 %v4372, %v4371
        %v4611 = vpack.c.b16 %v4374, %v4373
        %v4612 = vpack.c.b16 %v4376, %v4375
        %v4613 = vpack.c.b16 %v4378, %v4377
        %v4614 = vpack.c.b16 %v4380, %v4379
        %v4615 = vpack.c.b16 %v4382, %v4381
        %v4616 = vpack.c.b16 %v4384, %v4383
        %v4617 = vpack.c.b16 %v4386, %v4385
        %v4618 = vpack.c.b16 %v4388, %v4387
        %v4619 = vpack.c.b16 %v4390, %v4389
        %v4620 = vpack.c.b16 %v4392, %v4391
        %v4621 = vpack.c.b16 %v4394, %v4393
        %v4622 = vpack.c.b16 %v4396, %v4395
        %v4623 = vpack.c.b16 %v4398, %v4397
        %v4624 = vpack.c.b16 %v4400, %v4399
        %v4625 = vpack.c.b16 %v4402, %v4401
        %v4626 = vpack.c.b16 %v4404, %v4403
        %v4627 = vpack.c.b16 %v4406, %v4405
        %v4628 = vpack.c.b16 %v4408, %v4407
        %v4629 = vpack.c.b16 %v4410, %v4409
        %v4630 = vpack.c.b16 %v4412, %v4411
        %v4631 = vpack.c.b16 %v4414, %v4413
        %v4632 = vpack.c.b16 %v4416, %v4415
        %v4633 = vpack.c.b16 %v4418, %v4417
        %v4634 = vpack.c.b16 %v4420, %v4419
        %v4635 = vpack.c.b16 %v4422, %v4421
        %v4636 = vpack.c.b16 %v4424, %v4423
        %v4637 = vpack.c.b16 %v4426, %v4425
        %v4638 = vpack.c.b16 %v4428, %v4427
        %v4639 = vpack.c.b16 %v4430, %v4429
        %v4640 = vpack.c.b16 %v4432, %v4431
        %v4641 = vpack.c.b16 %v4434, %v4433
        %v4642 = vpack.c.b16 %v4436, %v4435
        %v4643 = vpack.c.b16 %v4438, %v4437
        %v4644 = vpack.c.b16 %v4440, %v4439
        %v4645 = vpack.c.b16 %v4442, %v4441
        %v4646 = vpack.c.b16 %v4444, %v4443
        %v4647 = vpack.c.b16 %v4446, %v4445
        %v4648 = vpack.c.b16 %v4448, %v4447
        %v4649 = vpack.c.b16 %v4450, %v4449
        %v4650 = vpack.c.b16 %v4452, %v4451
        %v4651 = vpack.c.b16 %v4454, %v4453
        %v4652 = vpack.c.b16 %v4456, %v4455
        %v4653 = vpack.c.b16 %v4458, %v4457
        %v4654 = vpack.c.b16 %v4460, %v4459
        %v4655 = vpack.c.b16 %v4462, %v4461
        %v4656 = vpack.c.b16 %v4464, %v4463
        %v4657 = vpack.c.b16 %v4466, %v4465
        %v4658 = vpack.c.b16 %v4468, %v4467
        %v4659 = vpack.c.b16 %v4470, %v4469
        %v4660 = vpack.c.b16 %v4472, %v4471
        %v4661 = vpack.c.b16 %v4474, %v4473
        %v4662 = vpack.c.b16 %v4476, %v4475
        %v4663 = vpack.c.b16 %v4478, %v4477
        %v4664 = vpack.c.b16 %v4480, %v4479
        %v4665 = vpack.c.b16 %v4482, %v4481
        %v4666 = vpack.c.b16 %v4484, %v4483
        %v4667 = vpack.c.b16 %v4486, %v4485
        %v4668 = vpack.c.b16 %v4488, %v4487
        %v4669 = vpack.c.b16 %v4490, %v4489
        %v4670 = vpack.c.b16 %v4492, %v4491
        %v4671 = vpack.c.b16 %v4494, %v4493
        %v4672 = vpack.c.b16 %v4496, %v4495
        %v4673 = vpack.c.b16 %v4498, %v4497
        %v4674 = vpack.c.b16 %v4500, %v4499
        %v4675 = vpack.c.b16 %v4502, %v4501
        %v4676 = vpack.c.b16 %v4504, %v4503
        %v4677 = vpack.c.b16 %v4506, %v4505
        %v4678 = vpack.c.b16 %v4508, %v4507
        %v4679 = vpack.c.b16 %v4510, %v4509
        %v4680 = vpack.c.b16 %v4512, %v4511
        %v4681 = vpack.c.b16 %v4514, %v4513
        %v4682 = vpack.c.b16 %v4516, %v4515
        %v4683 = vpack.c.b16 %v4518, %v4517
        %v4684 = vpack.c.b16 %v4520, %v4519
        %v4685 = vpack.c.b16 %v4522, %v4521
        %v4686 = vpack.c.b16 %v4524, %v4523
        %v4687 = vpack.c.b16 %v4526, %v4525
        %v4688 = vpack.c.b16 %v4528, %v4527
        %v4689 = vpack.c.b16 %v4530, %v4529
        %v4690 = vpack.c.b16 %v4532, %v4531
        %v4691 = vpack.c.b16 %v4534, %v4533
        %v4692 = vpack.c.b16 %v4536, %v4535
        %v4693 = vpack.c.b16 %v4538, %v4537
        %v4694 = vpack.c.b16 %v4540, %v4539
        %v4695 = vpack.c.b16 %v4542, %v4541
        %v4696 = vpack.c.b16 %v4544, %v4543
        %v4697 = vpack.c.b16 %v4546, %v4545
        %v4698 = vpack.c.b16 %v4548, %v4547
        %v4699 = vpack.c.b16 %v4550, %v4549
        %v4700 = vpack.c.b16 %v4552, %v4551
        %v4701 = vpack.c.b16 %v4554, %v4553
        %v4702 = vpack.c.b16 %v4556, %v4555
        %v4703 = vpack.c.b16 %v4558, %v4557
        %v4704 = vpack.c.b16 %v4560, %v4559
        %v4705 = vpack.c.b16 %v4562, %v4561
        %v4706 = vpack.c.b16 %v4564, %v4563
        %v4707 = vpack.c.b16 %v4566, %v4565
        %v4708 = vpack.c.b16 %v4568, %v4567
        %v4709 = vpack.c.b16 %v4570, %v4569
        %v4710 = vpack.c.b16 %v4572, %v4571
        %v4711 = vpack.c.b16 %v4574, %v4573
        %v4712 = vpack.c.b16 %v4576, %v4575
        %v4713 = vpack.c.b16 %v4578, %v4577
        %v4714 = vpack.c.b16 %v4580, %v4579
        %v4715 = vpack.c.b16 %v4582, %v4581
        %v4716 = vpack.c.b16 %v4584, %v4583
        %v4717 = vpack.c.b16 %v4586, %v4585
        %v4718 = vpack.c.b16 %v4588, %v4587
        %v4719 = vpack.c.b16 %v4590, %v4589
        %v4720 = vpack.c.b16 %v4592, %v4591
        %4849 = vmatpush.bf16.msra.mxu0 %v4600
        %4850 = vmatpush.bf16.msra.mxu0 %v4599
        %4851 = vmatpush.bf16.msra.mxu0 %v4598
        %4852 = vmatpush.bf16.msra.mxu0 %v4597
        %4853 = vmatpush.bf16.msra.mxu0 %v4596
        %4854 = vmatpush.bf16.msra.mxu0 %v4595
        %4855 = vmatpush.bf16.msra.mxu0 %v4594
        %4856 = vmatpush.bf16.msra.mxu0 %v4593
        %4857 = vmatmul.bf16.gmra.mxu0 %v3713
        %v4858 = vpop.f32.mrf.mxu0
        %v4859 = vadd.f32 %v4079, %v4858
        %v4860 = vpop.f32.mrf.mxu0
        %4861 = vdwg.mxu0
        %4862 = vmatpush.bf16.msra.mxu0 %v4608
        %4863 = vmatpush.bf16.msra.mxu0 %v4607
        %4864 = vmatpush.bf16.msra.mxu0 %v4606
        %4865 = vmatpush.bf16.msra.mxu0 %v4605
        %4866 = vmatpush.bf16.msra.mxu0 %v4604
        %4867 = vmatpush.bf16.msra.mxu0 %v4603
        %4868 = vmatpush.bf16.msra.mxu0 %v4602
        %4869 = vmatpush.bf16.msra.mxu0 %v4601
        %4870 = vmatmul.bf16.gmra.mxu0 %v3714
        %v4871 = vpop.f32.mrf.mxu0
        %v4872 = vadd.f32 %v4859, %v4871
        %v4873 = vpop.f32.mrf.mxu0
        %4874 = vdwg.mxu0
        %4875 = vmatpush.bf16.msra.mxu0 %v4616
        %4876 = vmatpush.bf16.msra.mxu0 %v4615
        %4877 = vmatpush.bf16.msra.mxu0 %v4614
        %4878 = vmatpush.bf16.msra.mxu0 %v4613
        %4879 = vmatpush.bf16.msra.mxu0 %v4612
        %4880 = vmatpush.bf16.msra.mxu0 %v4611
        %4881 = vmatpush.bf16.msra.mxu0 %v4610
        %4882 = vmatpush.bf16.msra.mxu0 %v4609
        %4883 = vmatmul.bf16.gmra.mxu0 %v3730
        %v4884 = vpop.f32.mrf.mxu0
        %v4885 = vadd.f32 %v4872, %v4884
        %v4886 = vpop.f32.mrf.mxu0
        %4887 = vdwg.mxu0
        %4888 = vmatpush.bf16.msra.mxu0 %v4624
        %4889 = vmatpush.bf16.msra.mxu0 %v4623
        %4890 = vmatpush.bf16.msra.mxu0 %v4622
        %4891 = vmatpush.bf16.msra.mxu0 %v4621
        %4892 = vmatpush.bf16.msra.mxu0 %v4620
        %4893 = vmatpush.bf16.msra.mxu0 %v4619
        %4894 = vmatpush.bf16.msra.mxu0 %v4618
        %4895 = vmatpush.bf16.msra.mxu0 %v4617
        %4896 = vmatmul.bf16.gmra.mxu0 %v3741
        %v4897 = vpop.f32.mrf.mxu0
        %v4898 = vadd.f32 %v4885, %v4897
        %v4899 = vpop.f32.mrf.mxu0
        %4900 = vdwg.mxu0
        %4901 = vmatpush.bf16.msra.mxu0 %v4632
        %4902 = vmatpush.bf16.msra.mxu0 %v4631
        %4903 = vmatpush.bf16.msra.mxu0 %v4630
        %4904 = vmatpush.bf16.msra.mxu0 %v4629
        %4905 = vmatpush.bf16.msra.mxu0 %v4628
        %4906 = vmatpush.bf16.msra.mxu0 %v4627
        %4907 = vmatpush.bf16.msra.mxu0 %v4626
        %4908 = vmatpush.bf16.msra.mxu0 %v4625
        %4909 = vmatmul.bf16.gmra.mxu0 %v3715
        %v4910 = vpop.f32.mrf.mxu0
        %v4911 = vadd.f32 %v4898, %v4910
        %v4912 = vpop.f32.mrf.mxu0
        %4913 = vdwg.mxu0
        %4914 = vmatpush.bf16.msra.mxu0 %v4640
        %4915 = vmatpush.bf16.msra.mxu0 %v4639
        %4916 = vmatpush.bf16.msra.mxu0 %v4638
        %4917 = vmatpush.bf16.msra.mxu0 %v4637
        %4918 = vmatpush.bf16.msra.mxu0 %v4636
        %4919 = vmatpush.bf16.msra.mxu0 %v4635
        %4920 = vmatpush.bf16.msra.mxu0 %v4634
        %4921 = vmatpush.bf16.msra.mxu0 %v4633
        %4922 = vmatmul.bf16.gmra.mxu0 %v3716
        %v4923 = vpop.f32.mrf.mxu0
        %v4924 = vadd.f32 %v4911, %v4923
        %v4925 = vpop.f32.mrf.mxu0
        %4926 = vdwg.mxu0
        %4927 = vmatpush.bf16.msra.mxu0 %v4648
        %4928 = vmatpush.bf16.msra.mxu0 %v4647
        %4929 = vmatpush.bf16.msra.mxu0 %v4646
        %4930 = vmatpush.bf16.msra.mxu0 %v4645
        %4931 = vmatpush.bf16.msra.mxu0 %v4644
        %4932 = vmatpush.bf16.msra.mxu0 %v4643
        %4933 = vmatpush.bf16.msra.mxu0 %v4642
        %4934 = vmatpush.bf16.msra.mxu0 %v4641
        %4935 = vmatmul.bf16.gmra.mxu0 %v3752
        %v4936 = vpop.f32.mrf.mxu0
        %v4937 = vadd.f32 %v4924, %v4936
        %v4938 = vpop.f32.mrf.mxu0
        %4939 = vdwg.mxu0
        %4940 = vmatpush.bf16.msra.mxu0 %v4656
        %4941 = vmatpush.bf16.msra.mxu0 %v4655
        %4942 = vmatpush.bf16.msra.mxu0 %v4654
        %4943 = vmatpush.bf16.msra.mxu0 %v4653
        %4944 = vmatpush.bf16.msra.mxu0 %v4652
        %4945 = vmatpush.bf16.msra.mxu0 %v4651
        %4946 = vmatpush.bf16.msra.mxu0 %v4650
        %4947 = vmatpush.bf16.msra.mxu0 %v4649
        %4948 = vmatmul.bf16.gmra.mxu0 %v3763
        %v4949 = vpop.f32.mrf.mxu0
        %v4950 = vadd.f32 %v4937, %v4949
        %v4951 = vpop.f32.mrf.mxu0
        %4952 = vdwg.mxu0
        %4953 = vmatpush.bf16.msra.mxu0 %v4664
        %4954 = vmatpush.bf16.msra.mxu0 %v4663
        %4955 = vmatpush.bf16.msra.mxu0 %v4662
        %4956 = vmatpush.bf16.msra.mxu0 %v4661
        %4957 = vmatpush.bf16.msra.mxu0 %v4660
        %4958 = vmatpush.bf16.msra.mxu0 %v4659
        %4959 = vmatpush.bf16.msra.mxu0 %v4658
        %4960 = vmatpush.bf16.msra.mxu0 %v4657
        %4961 = vmatmul.bf16.gmra.mxu0 %v3768
        %v4962 = vpop.f32.mrf.mxu0
        %v4963 = vadd.f32 %v4950, %v4962
        %v4964 = vpop.f32.mrf.mxu0
        %4965 = vdwg.mxu0
        %4966 = vmatpush.bf16.msra.mxu0 %v4672
        %4967 = vmatpush.bf16.msra.mxu0 %v4671
        %4968 = vmatpush.bf16.msra.mxu0 %v4670
        %4969 = vmatpush.bf16.msra.mxu0 %v4669
        %4970 = vmatpush.bf16.msra.mxu0 %v4668
        %4971 = vmatpush.bf16.msra.mxu0 %v4667
        %4972 = vmatpush.bf16.msra.mxu0 %v4666
        %4973 = vmatpush.bf16.msra.mxu0 %v4665
        %4974 = vmatmul.bf16.gmra.mxu0 %v3773
        %v4975 = vpop.f32.mrf.mxu0
        %v4976 = vadd.f32 %v4963, %v4975
        %v4977 = vpop.f32.mrf.mxu0
        %4978 = vdwg.mxu0
        %4979 = vmatpush.bf16.msra.mxu0 %v4680
        %4980 = vmatpush.bf16.msra.mxu0 %v4679
        %4981 = vmatpush.bf16.msra.mxu0 %v4678
        %4982 = vmatpush.bf16.msra.mxu0 %v4677
        %4983 = vmatpush.bf16.msra.mxu0 %v4676
        %4984 = vmatpush.bf16.msra.mxu0 %v4675
        %4985 = vmatpush.bf16.msra.mxu0 %v4674
        %4986 = vmatpush.bf16.msra.mxu0 %v4673
        %4987 = vmatmul.bf16.gmra.mxu0 %v3782
        %v4988 = vpop.f32.mrf.mxu0
        %v4989 = vadd.f32 %v4976, %v4988
        %v4990 = vpop.f32.mrf.mxu0
        %4991 = vdwg.mxu0
        %4992 = vmatpush.bf16.msra.mxu0 %v4688
        %4993 = vmatpush.bf16.msra.mxu0 %v4687
        %4994 = vmatpush.bf16.msra.mxu0 %v4686
        %4995 = vmatpush.bf16.msra.mxu0 %v4685
        %4996 = vmatpush.bf16.msra.mxu0 %v4684
        %4997 = vmatpush.bf16.msra.mxu0 %v4683
        %4998 = vmatpush.bf16.msra.mxu0 %v4682
        %4999 = vmatpush.bf16.msra.mxu0 %v4681
        %5000 = vmatmul.bf16.gmra.mxu0 %v3791
        %v5001 = vpop.f32.mrf.mxu0
        %v5002 = vadd.f32 %v4989, %v5001
        %v5003 = vpop.f32.mrf.mxu0
        %5004 = vdwg.mxu0
        %5005 = vmatpush.bf16.msra.mxu0 %v4696
        %5006 = vmatpush.bf16.msra.mxu0 %v4695
        %5007 = vmatpush.bf16.msra.mxu0 %v4694
        %5008 = vmatpush.bf16.msra.mxu0 %v4693
        %5009 = vmatpush.bf16.msra.mxu0 %v4692
        %5010 = vmatpush.bf16.msra.mxu0 %v4691
        %5011 = vmatpush.bf16.msra.mxu0 %v4690
        %5012 = vmatpush.bf16.msra.mxu0 %v4689
        %5013 = vmatmul.bf16.gmra.mxu0 %v3796
        %v5014 = vpop.f32.mrf.mxu0
        %v5015 = vadd.f32 %v5002, %v5014
        %v5016 = vpop.f32.mrf.mxu0
        %5017 = vdwg.mxu0
        %5018 = vmatpush.bf16.msra.mxu0 %v4704
        %5019 = vmatpush.bf16.msra.mxu0 %v4703
        %5020 = vmatpush.bf16.msra.mxu0 %v4702
        %5021 = vmatpush.bf16.msra.mxu0 %v4701
        %5022 = vmatpush.bf16.msra.mxu0 %v4700
        %5023 = vmatpush.bf16.msra.mxu0 %v4699
        %5024 = vmatpush.bf16.msra.mxu0 %v4698
        %5025 = vmatpush.bf16.msra.mxu0 %v4697
        %5026 = vmatmul.bf16.gmra.mxu0 %v3801
        %v5027 = vpop.f32.mrf.mxu0
        %v5028 = vadd.f32 %v5015, %v5027
        %v5029 = vpop.f32.mrf.mxu0
        %5030 = vdwg.mxu0
        %5031 = vmatpush.bf16.msra.mxu0 %v4712
        %5032 = vmatpush.bf16.msra.mxu0 %v4711
        %5033 = vmatpush.bf16.msra.mxu0 %v4710
        %5034 = vmatpush.bf16.msra.mxu0 %v4709
        %5035 = vmatpush.bf16.msra.mxu0 %v4708
        %5036 = vmatpush.bf16.msra.mxu0 %v4707
        %5037 = vmatpush.bf16.msra.mxu0 %v4706
        %5038 = vmatpush.bf16.msra.mxu0 %v4705
        %5039 = vmatmul.bf16.gmra.mxu0 %v3810
        %v5040 = vpop.f32.mrf.mxu0
        %v5041 = vadd.f32 %v5028, %v5040
        %v5042 = vpop.f32.mrf.mxu0
        %5043 = vdwg.mxu0
        %5044 = vmatpush.bf16.msra.mxu0 %v4720
        %5045 = vmatpush.bf16.msra.mxu0 %v4719
        %5046 = vmatpush.bf16.msra.mxu0 %v4718
        %5047 = vmatpush.bf16.msra.mxu0 %v4717
        %5048 = vmatpush.bf16.msra.mxu0 %v4716
        %5049 = vmatpush.bf16.msra.mxu0 %v4715
        %5050 = vmatpush.bf16.msra.mxu0 %v4714
        %5051 = vmatpush.bf16.msra.mxu0 %v4713
        %5052 = vmatmul.bf16.gmra.mxu0 %v3819
        %v5053 = vpop.f32.mrf.mxu0
        %v5054 = vadd.f32 %v5041, %v5053
        %v5055 = vpop.f32.mrf.mxu0
        %5056 = vdwg.mxu0
        %v5057 = vmax.f32 %v5054, 0.0
        %v5058 = vpack.c.bf16 %v5057, %v5057
        %s5059 = scalar_lea.vmem [#allocation3], 4
        %v5060 = vld [vmem:[%s5059] sm:$0x3]
        %v5061 = vsel %vm2339, %v5058, %v5060
        %5062 = vst [vmem:[%s5059] sm:$0x3] %v5061
        %v5063 = vld [vmem:[#allocation3] sm:$0x1]
        %v5064 = vld [vmem:[#allocation3] sm:$0x2]
        %v5065 = vld [vmem:[%s3709] sm:$0x1]
        %v5066 = vld [vmem:[%s3709] sm:$0x2]
        %v5067 = vld [vmem:[%s5059] sm:$0x1]
        %v5068 = vld [vmem:[%s5059] sm:$0x2]
        %5070 = vst [vmem:[#allocation1] ss:$4 sm:$0xff] %v5063
        %v5071 = vld.sshfl [vmem:[#allocation1] sm:$0xff pattern:$0x73625140]
        %v5072 = vshrl.u32 %v5071, 16
        %5076 = vst [vmem:[#allocation1] ss:$4 sm:$0xff] %v5064
        %v5077 = vld.sshfl [vmem:[#allocation1] sm:$0xff pattern:$0x73625140]
        %v5079 = vrot.slane %v5077, 1
        %5082 = vst [vmem:[#allocation1] ss:$4 sm:$0xff] %v5065
        %v5083 = vld.sshfl [vmem:[#allocation1] sm:$0xff pattern:$0x73625140]
        %v5084 = vshrl.u32 %v5083, 16
        %5088 = vst [vmem:[#allocation1] ss:$4 sm:$0xff] %v5066
        %v5089 = vld.sshfl [vmem:[#allocation1] sm:$0xff pattern:$0x73625140]
        %v5091 = vrot.slane %v5089, 1
        %5094 = vst [vmem:[#allocation1] ss:$4 sm:$0xff] %v5067
        %v5095 = vld.sshfl [vmem:[#allocation1] sm:$0xff pattern:$0x73625140]
        %v5096 = vshrl.u32 %v5095, 16
        %5100 = vst [vmem:[#allocation1] ss:$4 sm:$0xff] %v5068
        %v5101 = vld.sshfl [vmem:[#allocation1] sm:$0xff pattern:$0x73625140]
        %v5103 = vrot.slane %v5101, 1
        %v5105 = vld [vmem:[%s5] sm:$0xf]
        %v5106 = vld [vmem:[%s5 + $0x4] sm:$0xf]
        %v5107 = vld [vmem:[%s5 + $0x8] sm:$0xf]
        %v5108 = vld [vmem:[%s5 + $0xc] sm:$0xf]
        %v5109 = vld [vmem:[%s5 + $0x10] sm:$0xf]
        %v5110 = vld [vmem:[%s5 + $0x14] sm:$0xf]
        %v5111 = vld [vmem:[%s5 + $0x18] sm:$0xf]
        %v5112 = vld [vmem:[%s5 + $0x1c] sm:$0xf]
        %v5113 = vld [vmem:[%s5 + $0x20] sm:$0xf]
        %v5114 = vld [vmem:[%s5 + $0x24] sm:$0xf]
        %v5115 = vld [vmem:[%s5 + $0x28] sm:$0xf]
        %v5116 = vld [vmem:[%s5 + $0x2c] sm:$0xf]
        %v5117 = vld [vmem:[%s5 + $0x30] sm:$0xf]
        %v5118 = vld [vmem:[%s5 + $0x34] sm:$0xf]
        %v5119 = vld [vmem:[%s5 + $0x38] sm:$0xf]
        %v5120 = vld [vmem:[%s5 + $0x3c] sm:$0xf]
        %v5121 = vld [vmem:[%s5 + $0x40] sm:$0xf]
        %v5122 = vld [vmem:[%s5 + $0x44] sm:$0xf]
        %v5123 = vld [vmem:[%s5 + $0x48] sm:$0xf]
        %v5124 = vld [vmem:[%s5 + $0x4c] sm:$0xf]
        %v5125 = vld [vmem:[%s5 + $0x50] sm:$0xf]
        %v5126 = vld [vmem:[%s5 + $0x54] sm:$0xf]
        %v5127 = vld [vmem:[%s5 + $0x58] sm:$0xf]
        %v5128 = vld [vmem:[%s5 + $0x5c] sm:$0xf]
        %v5129 = vld [vmem:[%s5 + $0x60] sm:$0xf]
        %v5130 = vld [vmem:[%s5 + $0x64] sm:$0xf]
        %v5131 = vld [vmem:[%s5 + $0x68] sm:$0xf]
        %v5132 = vld [vmem:[%s5 + $0x6c] sm:$0xf]
        %v5133 = vld [vmem:[%s5 + $0x70] sm:$0xf]
        %v5134 = vld [vmem:[%s5 + $0x74] sm:$0xf]
        %v5135 = vld [vmem:[%s5 + $0x78] sm:$0xf]
        %v5136 = vld [vmem:[%s5 + $0x7c] sm:$0xf]
        %v5137 = vld [vmem:[%s5 + $0x80] sm:$0xf]
        %v5138 = vld [vmem:[%s5 + $0x84] sm:$0xf]
        %v5139 = vld [vmem:[%s5 + $0x88] sm:$0xf]
        %v5140 = vld [vmem:[%s5 + $0x8c] sm:$0xf]
        %v5141 = vld [vmem:[%s5 + $0x90] sm:$0xf]
        %v5142 = vld [vmem:[%s5 + $0x94] sm:$0xf]
        %v5143 = vld [vmem:[%s5 + $0x98] sm:$0xf]
        %v5144 = vld [vmem:[%s5 + $0x9c] sm:$0xf]
        %v5145 = vld [vmem:[%s5 + $0xa0] sm:$0xf]
        %v5146 = vld [vmem:[%s5 + $0xa4] sm:$0xf]
        %v5147 = vld [vmem:[%s5 + $0xa8] sm:$0xf]
        %v5148 = vld [vmem:[%s5 + $0xac] sm:$0xf]
        %v5149 = vld [vmem:[%s5 + $0xb0] sm:$0xf]
        %v5150 = vld [vmem:[%s5 + $0xb4] sm:$0xf]
        %v5151 = vld [vmem:[%s5 + $0xb8] sm:$0xf]
        %v5152 = vld [vmem:[%s5 + $0xbc] sm:$0xf]
        %v5153 = vld [vmem:[%s5 + $0xc0] sm:$0xf]
        %v5154 = vld [vmem:[%s5 + $0xc4] sm:$0xf]
        %v5155 = vld [vmem:[%s5 + $0xc8] sm:$0xf]
        %v5156 = vld [vmem:[%s5 + $0xcc] sm:$0xf]
        %v5157 = vld [vmem:[%s5 + $0xd0] sm:$0xf]
        %v5158 = vld [vmem:[%s5 + $0xd4] sm:$0xf]
        %v5159 = vld [vmem:[%s5 + $0xd8] sm:$0xf]
        %v5160 = vld [vmem:[%s5 + $0xdc] sm:$0xf]
        %v5161 = vld [vmem:[%s5 + $0xe0] sm:$0xf]
        %v5162 = vld [vmem:[%s5 + $0xe4] sm:$0xf]
        %v5163 = vld [vmem:[%s5 + $0xe8] sm:$0xf]
        %v5164 = vld [vmem:[%s5 + $0xec] sm:$0xf]
        %v5165 = vld [vmem:[%s5 + $0xf0] sm:$0xf]
        %v5166 = vld [vmem:[%s5 + $0xf4] sm:$0xf]
        %v5167 = vld [vmem:[%s5 + $0xf8] sm:$0xf]
        %v5168 = vld [vmem:[%s5 + $0xfc] sm:$0xf]
        %v5169 = vld [vmem:[%s5 + $0x100] sm:$0xf]
        %v5170 = vld [vmem:[%s5 + $0x104] sm:$0xf]
        %v5171 = vld [vmem:[%s5 + $0x108] sm:$0xf]
        %v5172 = vld [vmem:[%s5 + $0x10c] sm:$0xf]
        %v5173 = vld [vmem:[%s5 + $0x110] sm:$0xf]
        %v5174 = vld [vmem:[%s5 + $0x114] sm:$0xf]
        %v5175 = vld [vmem:[%s5 + $0x118] sm:$0xf]
        %v5176 = vld [vmem:[%s5 + $0x11c] sm:$0xf]
        %v5177 = vld [vmem:[%s5 + $0x120] sm:$0xf]
        %v5178 = vld [vmem:[%s5 + $0x124] sm:$0xf]
        %v5179 = vld [vmem:[%s5 + $0x128] sm:$0xf]
        %v5180 = vld [vmem:[%s5 + $0x12c] sm:$0xf]
        %v5181 = vld [vmem:[%s5 + $0x130] sm:$0xf]
        %v5182 = vld [vmem:[%s5 + $0x134] sm:$0xf]
        %v5183 = vld [vmem:[%s5 + $0x138] sm:$0xf]
        %v5184 = vld [vmem:[%s5 + $0x13c] sm:$0xf]
        %v5185 = vld [vmem:[%s5 + $0x140] sm:$0xf]
        %v5186 = vld [vmem:[%s5 + $0x144] sm:$0xf]
        %v5187 = vld [vmem:[%s5 + $0x148] sm:$0xf]
        %v5188 = vld [vmem:[%s5 + $0x14c] sm:$0xf]
        %v5189 = vld [vmem:[%s5 + $0x150] sm:$0xf]
        %v5190 = vld [vmem:[%s5 + $0x154] sm:$0xf]
        %v5191 = vld [vmem:[%s5 + $0x158] sm:$0xf]
        %v5192 = vld [vmem:[%s5 + $0x15c] sm:$0xf]
        %v5193 = vld [vmem:[%s5 + $0x160] sm:$0xf]
        %v5194 = vld [vmem:[%s5 + $0x164] sm:$0xf]
        %v5195 = vld [vmem:[%s5 + $0x168] sm:$0xf]
        %v5196 = vld [vmem:[%s5 + $0x16c] sm:$0xf]
        %v5197 = vld [vmem:[%s5 + $0x170] sm:$0xf]
        %v5198 = vld [vmem:[%s5 + $0x174] sm:$0xf]
        %v5199 = vld [vmem:[%s5 + $0x178] sm:$0xf]
        %v5200 = vld [vmem:[%s5 + $0x17c] sm:$0xf]
        %v5201 = vld [vmem:[%s5 + $0x180] sm:$0xf]
        %v5202 = vld [vmem:[%s5 + $0x184] sm:$0xf]
        %v5203 = vld [vmem:[%s5 + $0x188] sm:$0xf]
        %v5204 = vld [vmem:[%s5 + $0x18c] sm:$0xf]
        %v5205 = vld [vmem:[%s5 + $0x190] sm:$0xf]
        %v5206 = vld [vmem:[%s5 + $0x194] sm:$0xf]
        %v5207 = vld [vmem:[%s5 + $0x198] sm:$0xf]
        %v5208 = vld [vmem:[%s5 + $0x19c] sm:$0xf]
        %v5209 = vld [vmem:[%s5 + $0x1a0] sm:$0xf]
        %v5210 = vld [vmem:[%s5 + $0x1a4] sm:$0xf]
        %v5211 = vld [vmem:[%s5 + $0x1a8] sm:$0xf]
        %v5212 = vld [vmem:[%s5 + $0x1ac] sm:$0xf]
        %v5213 = vld [vmem:[%s5 + $0x1b0] sm:$0xf]
        %v5214 = vld [vmem:[%s5 + $0x1b4] sm:$0xf]
        %v5215 = vld [vmem:[%s5 + $0x1b8] sm:$0xf]
        %v5216 = vld [vmem:[%s5 + $0x1bc] sm:$0xf]
        %v5217 = vld [vmem:[%s5 + $0x1c0] sm:$0xf]
        %v5218 = vld [vmem:[%s5 + $0x1c4] sm:$0xf]
        %v5219 = vld [vmem:[%s5 + $0x1c8] sm:$0xf]
        %v5220 = vld [vmem:[%s5 + $0x1cc] sm:$0xf]
        %v5221 = vld [vmem:[%s5 + $0x1d0] sm:$0xf]
        %v5222 = vld [vmem:[%s5 + $0x1d4] sm:$0xf]
        %v5223 = vld [vmem:[%s5 + $0x1d8] sm:$0xf]
        %v5224 = vld [vmem:[%s5 + $0x1dc] sm:$0xf]
        %v5225 = vld [vmem:[%s5 + $0x1e0] sm:$0xf]
        %v5226 = vld [vmem:[%s5 + $0x1e4] sm:$0xf]
        %v5227 = vld [vmem:[%s5 + $0x1e8] sm:$0xf]
        %v5228 = vld [vmem:[%s5 + $0x1ec] sm:$0xf]
        %v5229 = vld [vmem:[%s5 + $0x1f0] sm:$0xf]
        %v5230 = vld [vmem:[%s5 + $0x1f4] sm:$0xf]
        %v5231 = vld [vmem:[%s5 + $0x1f8] sm:$0xf]
        %v5232 = vld [vmem:[%s5 + $0x1fc] sm:$0xf]
        %v5233 = vld [vmem:[%s5 + $0x200] sm:$0xf]
        %v5234 = vld [vmem:[%s5 + $0x204] sm:$0xf]
        %v5235 = vld [vmem:[%s5 + $0x208] sm:$0xf]
        %v5236 = vld [vmem:[%s5 + $0x20c] sm:$0xf]
        %v5237 = vld [vmem:[%s5 + $0x210] sm:$0xf]
        %v5238 = vld [vmem:[%s5 + $0x214] sm:$0xf]
        %v5239 = vld [vmem:[%s5 + $0x218] sm:$0xf]
        %v5240 = vld [vmem:[%s5 + $0x21c] sm:$0xf]
        %v5241 = vld [vmem:[%s5 + $0x220] sm:$0xf]
        %v5242 = vld [vmem:[%s5 + $0x224] sm:$0xf]
        %v5243 = vld [vmem:[%s5 + $0x228] sm:$0xf]
        %v5244 = vld [vmem:[%s5 + $0x22c] sm:$0xf]
        %v5245 = vld [vmem:[%s5 + $0x230] sm:$0xf]
        %v5246 = vld [vmem:[%s5 + $0x234] sm:$0xf]
        %v5247 = vld [vmem:[%s5 + $0x238] sm:$0xf]
        %v5248 = vld [vmem:[%s5 + $0x23c] sm:$0xf]
        %v5249 = vld [vmem:[%s6] sm:$0x1]
        %v5394 = vunpack.c.l.b16 %v5105
        %v5395 = vunpack.c.l.b16 %v5106
        %v5396 = vunpack.c.l.b16 %v5107
        %v5397 = vunpack.c.l.b16 %v5108
        %v5398 = vunpack.c.l.b16 %v5109
        %v5399 = vunpack.c.l.b16 %v5110
        %v5400 = vunpack.c.l.b16 %v5111
        %v5401 = vunpack.c.l.b16 %v5112
        %v5402 = vunpack.c.l.b16 %v5113
        %v5403 = vunpack.c.l.b16 %v5114
        %v5404 = vunpack.c.l.b16 %v5115
        %v5405 = vunpack.c.l.b16 %v5116
        %v5406 = vunpack.c.l.b16 %v5117
        %v5407 = vunpack.c.l.b16 %v5118
        %v5408 = vunpack.c.l.b16 %v5119
        %v5409 = vunpack.c.l.b16 %v5120
        %v5410 = vunpack.c.l.b16 %v5121
        %v5411 = vunpack.c.l.b16 %v5122
        %v5412 = vunpack.c.l.b16 %v5123
        %v5413 = vunpack.c.l.b16 %v5124
        %v5414 = vunpack.c.l.b16 %v5125
        %v5415 = vunpack.c.l.b16 %v5126
        %v5416 = vunpack.c.l.b16 %v5127
        %v5417 = vunpack.c.l.b16 %v5128
        %v5418 = vunpack.c.l.b16 %v5129
        %v5419 = vunpack.c.l.b16 %v5130
        %v5420 = vunpack.c.l.b16 %v5131
        %v5421 = vunpack.c.l.b16 %v5132
        %v5422 = vunpack.c.l.b16 %v5133
        %v5423 = vunpack.c.l.b16 %v5134
        %v5424 = vunpack.c.l.b16 %v5135
        %v5425 = vunpack.c.l.b16 %v5136
        %v5426 = vunpack.c.l.b16 %v5137
        %v5427 = vunpack.c.l.b16 %v5138
        %v5428 = vunpack.c.l.b16 %v5139
        %v5429 = vunpack.c.l.b16 %v5140
        %v5430 = vunpack.c.l.b16 %v5141
        %v5431 = vunpack.c.l.b16 %v5142
        %v5432 = vunpack.c.l.b16 %v5143
        %v5433 = vunpack.c.l.b16 %v5144
        %v5434 = vunpack.c.l.b16 %v5145
        %v5435 = vunpack.c.l.b16 %v5146
        %v5436 = vunpack.c.l.b16 %v5147
        %v5437 = vunpack.c.l.b16 %v5148
        %v5438 = vunpack.c.l.b16 %v5149
        %v5439 = vunpack.c.l.b16 %v5150
        %v5440 = vunpack.c.l.b16 %v5151
        %v5441 = vunpack.c.l.b16 %v5152
        %v5442 = vunpack.c.l.b16 %v5153
        %v5443 = vunpack.c.l.b16 %v5154
        %v5444 = vunpack.c.l.b16 %v5155
        %v5445 = vunpack.c.l.b16 %v5156
        %v5446 = vunpack.c.l.b16 %v5157
        %v5447 = vunpack.c.l.b16 %v5158
        %v5448 = vunpack.c.l.b16 %v5159
        %v5449 = vunpack.c.l.b16 %v5160
        %v5450 = vunpack.c.l.b16 %v5161
        %v5451 = vunpack.c.l.b16 %v5162
        %v5452 = vunpack.c.l.b16 %v5163
        %v5453 = vunpack.c.l.b16 %v5164
        %v5454 = vunpack.c.l.b16 %v5165
        %v5455 = vunpack.c.l.b16 %v5166
        %v5456 = vunpack.c.l.b16 %v5167
        %v5457 = vunpack.c.l.b16 %v5168
        %v5458 = vunpack.c.l.b16 %v5169
        %v5459 = vunpack.c.l.b16 %v5170
        %v5460 = vunpack.c.l.b16 %v5171
        %v5461 = vunpack.c.l.b16 %v5172
        %v5462 = vunpack.c.l.b16 %v5173
        %v5463 = vunpack.c.l.b16 %v5174
        %v5464 = vunpack.c.l.b16 %v5175
        %v5465 = vunpack.c.l.b16 %v5176
        %v5466 = vunpack.c.l.b16 %v5177
        %v5467 = vunpack.c.l.b16 %v5178
        %v5468 = vunpack.c.l.b16 %v5179
        %v5469 = vunpack.c.l.b16 %v5180
        %v5470 = vunpack.c.l.b16 %v5181
        %v5471 = vunpack.c.l.b16 %v5182
        %v5472 = vunpack.c.l.b16 %v5183
        %v5473 = vunpack.c.l.b16 %v5184
        %v5474 = vunpack.c.l.b16 %v5185
        %v5475 = vunpack.c.l.b16 %v5186
        %v5476 = vunpack.c.l.b16 %v5187
        %v5477 = vunpack.c.l.b16 %v5188
        %v5478 = vunpack.c.l.b16 %v5189
        %v5479 = vunpack.c.l.b16 %v5190
        %v5480 = vunpack.c.l.b16 %v5191
        %v5481 = vunpack.c.l.b16 %v5192
        %v5482 = vunpack.c.l.b16 %v5193
        %v5483 = vunpack.c.l.b16 %v5194
        %v5484 = vunpack.c.l.b16 %v5195
        %v5485 = vunpack.c.l.b16 %v5196
        %v5486 = vunpack.c.l.b16 %v5197
        %v5487 = vunpack.c.l.b16 %v5198
        %v5488 = vunpack.c.l.b16 %v5199
        %v5489 = vunpack.c.l.b16 %v5200
        %v5490 = vunpack.c.l.b16 %v5201
        %v5491 = vunpack.c.l.b16 %v5202
        %v5492 = vunpack.c.l.b16 %v5203
        %v5493 = vunpack.c.l.b16 %v5204
        %v5494 = vunpack.c.l.b16 %v5205
        %v5495 = vunpack.c.l.b16 %v5206
        %v5496 = vunpack.c.l.b16 %v5207
        %v5497 = vunpack.c.l.b16 %v5208
        %v5498 = vunpack.c.l.b16 %v5209
        %v5499 = vunpack.c.l.b16 %v5210
        %v5500 = vunpack.c.l.b16 %v5211
        %v5501 = vunpack.c.l.b16 %v5212
        %v5502 = vunpack.c.l.b16 %v5213
        %v5503 = vunpack.c.l.b16 %v5214
        %v5504 = vunpack.c.l.b16 %v5215
        %v5505 = vunpack.c.l.b16 %v5216
        %v5506 = vunpack.c.l.b16 %v5217
        %v5507 = vunpack.c.l.b16 %v5218
        %v5508 = vunpack.c.l.b16 %v5219
        %v5509 = vunpack.c.l.b16 %v5220
        %v5510 = vunpack.c.l.b16 %v5221
        %v5511 = vunpack.c.l.b16 %v5222
        %v5512 = vunpack.c.l.b16 %v5223
        %v5513 = vunpack.c.l.b16 %v5224
        %v5514 = vunpack.c.l.b16 %v5225
        %v5515 = vunpack.c.l.b16 %v5226
        %v5516 = vunpack.c.l.b16 %v5227
        %v5517 = vunpack.c.l.b16 %v5228
        %v5518 = vunpack.c.l.b16 %v5229
        %v5519 = vunpack.c.l.b16 %v5230
        %v5520 = vunpack.c.l.b16 %v5231
        %v5521 = vunpack.c.l.b16 %v5232
        %v5522 = vunpack.c.l.b16 %v5233
        %v5523 = vunpack.c.l.b16 %v5234
        %v5524 = vunpack.c.l.b16 %v5235
        %v5525 = vunpack.c.l.b16 %v5236
        %v5526 = vunpack.c.l.b16 %v5237
        %v5527 = vunpack.c.l.b16 %v5238
        %v5528 = vunpack.c.l.b16 %v5239
        %v5529 = vunpack.c.l.b16 %v5240
        %v5530 = vunpack.c.l.b16 %v5241
        %v5531 = vunpack.c.l.b16 %v5242
        %v5532 = vunpack.c.l.b16 %v5243
        %v5533 = vunpack.c.l.b16 %v5244
        %v5534 = vunpack.c.l.b16 %v5245
        %v5535 = vunpack.c.l.b16 %v5246
        %v5536 = vunpack.c.l.b16 %v5247
        %v5537 = vunpack.c.l.b16 %v5248
        %v5538 = vpack.c.b16 %v5395, %v5394
        %v5539 = vpack.c.b16 %v5397, %v5396
        %v5540 = vpack.c.b16 %v5399, %v5398
        %v5541 = vpack.c.b16 %v5401, %v5400
        %v5542 = vpack.c.b16 %v5403, %v5402
        %v5543 = vpack.c.b16 %v5405, %v5404
        %v5544 = vpack.c.b16 %v5407, %v5406
        %v5545 = vpack.c.b16 %v5409, %v5408
        %v5546 = vpack.c.b16 %v5411, %v5410
        %v5547 = vpack.c.b16 %v5413, %v5412
        %v5548 = vpack.c.b16 %v5415, %v5414
        %v5549 = vpack.c.b16 %v5417, %v5416
        %v5550 = vpack.c.b16 %v5419, %v5418
        %v5551 = vpack.c.b16 %v5421, %v5420
        %v5552 = vpack.c.b16 %v5423, %v5422
        %v5553 = vpack.c.b16 %v5425, %v5424
        %v5554 = vpack.c.b16 %v5427, %v5426
        %v5555 = vpack.c.b16 %v5429, %v5428
        %v5556 = vpack.c.b16 %v5431, %v5430
        %v5557 = vpack.c.b16 %v5433, %v5432
        %v5558 = vpack.c.b16 %v5435, %v5434
        %v5559 = vpack.c.b16 %v5437, %v5436
        %v5560 = vpack.c.b16 %v5439, %v5438
        %v5561 = vpack.c.b16 %v5441, %v5440
        %v5562 = vpack.c.b16 %v5443, %v5442
        %v5563 = vpack.c.b16 %v5445, %v5444
        %v5564 = vpack.c.b16 %v5447, %v5446
        %v5565 = vpack.c.b16 %v5449, %v5448
        %v5566 = vpack.c.b16 %v5451, %v5450
        %v5567 = vpack.c.b16 %v5453, %v5452
        %v5568 = vpack.c.b16 %v5455, %v5454
        %v5569 = vpack.c.b16 %v5457, %v5456
        %v5570 = vpack.c.b16 %v5459, %v5458
        %v5571 = vpack.c.b16 %v5461, %v5460
        %v5572 = vpack.c.b16 %v5463, %v5462
        %v5573 = vpack.c.b16 %v5465, %v5464
        %v5574 = vpack.c.b16 %v5467, %v5466
        %v5575 = vpack.c.b16 %v5469, %v5468
        %v5576 = vpack.c.b16 %v5471, %v5470
        %v5577 = vpack.c.b16 %v5473, %v5472
        %v5578 = vpack.c.b16 %v5475, %v5474
        %v5579 = vpack.c.b16 %v5477, %v5476
        %v5580 = vpack.c.b16 %v5479, %v5478
        %v5581 = vpack.c.b16 %v5481, %v5480
        %v5582 = vpack.c.b16 %v5483, %v5482
        %v5583 = vpack.c.b16 %v5485, %v5484
        %v5584 = vpack.c.b16 %v5487, %v5486
        %v5585 = vpack.c.b16 %v5489, %v5488
        %v5586 = vpack.c.b16 %v5491, %v5490
        %v5587 = vpack.c.b16 %v5493, %v5492
        %v5588 = vpack.c.b16 %v5495, %v5494
        %v5589 = vpack.c.b16 %v5497, %v5496
        %v5590 = vpack.c.b16 %v5499, %v5498
        %v5591 = vpack.c.b16 %v5501, %v5500
        %v5592 = vpack.c.b16 %v5503, %v5502
        %v5593 = vpack.c.b16 %v5505, %v5504
        %v5594 = vpack.c.b16 %v5507, %v5506
        %v5595 = vpack.c.b16 %v5509, %v5508
        %v5596 = vpack.c.b16 %v5511, %v5510
        %v5597 = vpack.c.b16 %v5513, %v5512
        %v5598 = vpack.c.b16 %v5515, %v5514
        %v5599 = vpack.c.b16 %v5517, %v5516
        %v5600 = vpack.c.b16 %v5519, %v5518
        %v5601 = vpack.c.b16 %v5521, %v5520
        %v5602 = vpack.c.b16 %v5523, %v5522
        %v5603 = vpack.c.b16 %v5525, %v5524
        %v5604 = vpack.c.b16 %v5527, %v5526
        %v5605 = vpack.c.b16 %v5529, %v5528
        %v5606 = vpack.c.b16 %v5531, %v5530
        %v5607 = vpack.c.b16 %v5533, %v5532
        %v5608 = vpack.c.b16 %v5535, %v5534
        %v5609 = vpack.c.b16 %v5537, %v5536
        %5682 = vmatpush.bf16.msra.mxu0 %v5545
        %5683 = vmatpush.bf16.msra.mxu0 %v5544
        %5684 = vmatpush.bf16.msra.mxu0 %v5543
        %5685 = vmatpush.bf16.msra.mxu0 %v5542
        %5686 = vmatpush.bf16.msra.mxu0 %v5541
        %5687 = vmatpush.bf16.msra.mxu0 %v5540
        %5688 = vmatpush.bf16.msra.mxu0 %v5539
        %5689 = vmatpush.bf16.msra.mxu0 %v5538
        %5690 = vmatmul.bf16.gmra.mxu0 %v5063
        %v5691 = vpop.f32.mrf.mxu0
        %v5692 = vadd.f32 %v5249, %v5691
        %v5693 = vpop.f32.mrf.mxu0
        %5694 = vdwg.mxu0
        %5695 = vmatpush.bf16.msra.mxu0 %v5553
        %5696 = vmatpush.bf16.msra.mxu0 %v5552
        %5697 = vmatpush.bf16.msra.mxu0 %v5551
        %5698 = vmatpush.bf16.msra.mxu0 %v5550
        %5699 = vmatpush.bf16.msra.mxu0 %v5549
        %5700 = vmatpush.bf16.msra.mxu0 %v5548
        %5701 = vmatpush.bf16.msra.mxu0 %v5547
        %5702 = vmatpush.bf16.msra.mxu0 %v5546
        %5703 = vmatmul.bf16.gmra.mxu0 %v5072
        %v5704 = vpop.f32.mrf.mxu0
        %v5705 = vadd.f32 %v5692, %v5704
        %v5706 = vpop.f32.mrf.mxu0
        %5707 = vdwg.mxu0
        %5708 = vmatpush.bf16.msra.mxu0 %v5561
        %5709 = vmatpush.bf16.msra.mxu0 %v5560
        %5710 = vmatpush.bf16.msra.mxu0 %v5559
        %5711 = vmatpush.bf16.msra.mxu0 %v5558
        %5712 = vmatpush.bf16.msra.mxu0 %v5557
        %5713 = vmatpush.bf16.msra.mxu0 %v5556
        %5714 = vmatpush.bf16.msra.mxu0 %v5555
        %5715 = vmatpush.bf16.msra.mxu0 %v5554
        %5716 = vmatmul.bf16.gmra.mxu0 %v5079
        %v5717 = vpop.f32.mrf.mxu0
        %v5718 = vadd.f32 %v5705, %v5717
        %v5719 = vpop.f32.mrf.mxu0
        %5720 = vdwg.mxu0
        %5721 = vmatpush.bf16.msra.mxu0 %v5569
        %5722 = vmatpush.bf16.msra.mxu0 %v5568
        %5723 = vmatpush.bf16.msra.mxu0 %v5567
        %5724 = vmatpush.bf16.msra.mxu0 %v5566
        %5725 = vmatpush.bf16.msra.mxu0 %v5565
        %5726 = vmatpush.bf16.msra.mxu0 %v5564
        %5727 = vmatpush.bf16.msra.mxu0 %v5563
        %5728 = vmatpush.bf16.msra.mxu0 %v5562
        %5729 = vmatmul.bf16.gmra.mxu0 %v5065
        %v5730 = vpop.f32.mrf.mxu0
        %v5731 = vadd.f32 %v5718, %v5730
        %v5732 = vpop.f32.mrf.mxu0
        %5733 = vdwg.mxu0
        %5734 = vmatpush.bf16.msra.mxu0 %v5577
        %5735 = vmatpush.bf16.msra.mxu0 %v5576
        %5736 = vmatpush.bf16.msra.mxu0 %v5575
        %5737 = vmatpush.bf16.msra.mxu0 %v5574
        %5738 = vmatpush.bf16.msra.mxu0 %v5573
        %5739 = vmatpush.bf16.msra.mxu0 %v5572
        %5740 = vmatpush.bf16.msra.mxu0 %v5571
        %5741 = vmatpush.bf16.msra.mxu0 %v5570
        %5742 = vmatmul.bf16.gmra.mxu0 %v5084
        %v5743 = vpop.f32.mrf.mxu0
        %v5744 = vadd.f32 %v5731, %v5743
        %v5745 = vpop.f32.mrf.mxu0
        %5746 = vdwg.mxu0
        %5747 = vmatpush.bf16.msra.mxu0 %v5585
        %5748 = vmatpush.bf16.msra.mxu0 %v5584
        %5749 = vmatpush.bf16.msra.mxu0 %v5583
        %5750 = vmatpush.bf16.msra.mxu0 %v5582
        %5751 = vmatpush.bf16.msra.mxu0 %v5581
        %5752 = vmatpush.bf16.msra.mxu0 %v5580
        %5753 = vmatpush.bf16.msra.mxu0 %v5579
        %5754 = vmatpush.bf16.msra.mxu0 %v5578
        %5755 = vmatmul.bf16.gmra.mxu0 %v5091
        %v5756 = vpop.f32.mrf.mxu0
        %v5757 = vadd.f32 %v5744, %v5756
        %v5758 = vpop.f32.mrf.mxu0
        %5759 = vdwg.mxu0
        %5760 = vmatpush.bf16.msra.mxu0 %v5593
        %5761 = vmatpush.bf16.msra.mxu0 %v5592
        %5762 = vmatpush.bf16.msra.mxu0 %v5591
        %5763 = vmatpush.bf16.msra.mxu0 %v5590
        %5764 = vmatpush.bf16.msra.mxu0 %v5589
        %5765 = vmatpush.bf16.msra.mxu0 %v5588
        %5766 = vmatpush.bf16.msra.mxu0 %v5587
        %5767 = vmatpush.bf16.msra.mxu0 %v5586
        %5768 = vmatmul.bf16.gmra.mxu0 %v5067
        %v5769 = vpop.f32.mrf.mxu0
        %v5770 = vadd.f32 %v5757, %v5769
        %v5771 = vpop.f32.mrf.mxu0
        %5772 = vdwg.mxu0
        %5773 = vmatpush.bf16.msra.mxu0 %v5601
        %5774 = vmatpush.bf16.msra.mxu0 %v5600
        %5775 = vmatpush.bf16.msra.mxu0 %v5599
        %5776 = vmatpush.bf16.msra.mxu0 %v5598
        %5777 = vmatpush.bf16.msra.mxu0 %v5597
        %5778 = vmatpush.bf16.msra.mxu0 %v5596
        %5779 = vmatpush.bf16.msra.mxu0 %v5595
        %5780 = vmatpush.bf16.msra.mxu0 %v5594
        %5781 = vmatmul.bf16.gmra.mxu0 %v5096
        %v5782 = vpop.f32.mrf.mxu0
        %v5783 = vadd.f32 %v5770, %v5782
        %v5784 = vpop.f32.mrf.mxu0
        %5785 = vdwg.mxu0
        %5786 = vmatpush.bf16.msra.mxu0 %v5609
        %5787 = vmatpush.bf16.msra.mxu0 %v5608
        %5788 = vmatpush.bf16.msra.mxu0 %v5607
        %5789 = vmatpush.bf16.msra.mxu0 %v5606
        %5790 = vmatpush.bf16.msra.mxu0 %v5605
        %5791 = vmatpush.bf16.msra.mxu0 %v5604
        %5792 = vmatpush.bf16.msra.mxu0 %v5603
        %5793 = vmatpush.bf16.msra.mxu0 %v5602
        %5794 = vmatmul.bf16.gmra.mxu0 %v5103
        %v5795 = vpop.f32.mrf.mxu0
        %v5796 = vadd.f32 %v5783, %v5795
        %v5797 = vpop.f32.mrf.mxu0
        %5798 = vdwg.mxu0
        %v5799 = vmax.f32 %v5796, 0.0
        %5800 = vst [vmem:[%s270] sm:$0x1] %v5799
        %s5801 = sand.u32 %s181, 1
        %s5802 = scalar_lea.sflag [#allocation5], %s5801
        %s5803 = sand.u32 %s181, 1
        %s5804 = scalar_lea.vmem [#allocation4], %s5803
        // Predicated region
        $region49: #{atari_base_forward.1} parent=47 // pred_check
          %p5805 = pneg %p191
        $region50: #{atari_base_forward.1} parent=47 // pred_check_branch
          %5807 = sbr.rel (%p5805) target = $region52
        $region51: #{atari_base_forward.1} parent=47 // pred_region
          %5809 = vsyncadd %s5802, 0
          %s5810 = scalar_lea.hbm %s7, %s21
          %s5812 = sshll.u32 %s5804, 4
          %s5813 = int_to_ptr.vmem [resolvable:$true] %s5812
          %s5814 = sshll.u32 %s5810, 4
          %s5815 = int_to_ptr.hbm [resolvable:$true] %s5814
          %5817 = dma.vmem_to_hbm [thread:$0]  %s5813, 16, %s5815, %s5802
        $region52: #{atari_base_forward.1} parent=47 // pred_fallthru
          _
      $region48: #{atari_base_forward.1} parent=5 // pred_fallthru
        _
      %p5818 = scmp.le.s32.totalorder 2, %s16
      // Predicated region
      $region53: #{atari_base_forward.1} parent=5 // pred_check
        %p5819 = pneg %p5818
      $region54: #{atari_base_forward.1} parent=5 // pred_check_branch
        %5821 = sbr.rel (%p5819) target = $region56
      $region55: #{atari_base_forward.1} parent=5 // pred_region
        %s5822 = ssub.s32 %s16, 2
        // Predicated region
        $region57: #{atari_base_forward.1} parent=55 // pred_check
          %p5823 = pneg %p197
        $region58: #{atari_base_forward.1} parent=55 // pred_check_branch
          %5825 = sbr.rel (%p5823) target = $region60
        $region59: #{atari_base_forward.1} parent=55 // pred_region
          %s5826 = sand.u32 %s182, 1
          %s5827 = scalar_lea.sflag [#allocation5], %s5826
          %s5828 = sand.u32 %s182, 1
          %s5829 = scalar_lea.vmem [#allocation4], %s5828
          %5831 = dma.done %s5827, 16
        $region60: #{atari_base_forward.1} parent=55 // pred_fallthru
          _
      $region56: #{atari_base_forward.1} parent=5 // pred_fallthru
        _
    $region6: #{atari_base_forward.1} parent=1 // loop_footer
      %s20 = sadd.s32 1, %s16
    $region7: #{atari_base_forward.1} parent=1 // loop_footer_branch
      %15 = sbr.rel target = $region3
    $region8: #{atari_base_forward.1} parent=1 // loop_exit
      _
    %5832 = vsyncpa [#allocation5], 1
    %s5833 = scalar_lea.sflag [#allocation5], 1
    %5834 = vsyncpa %s5833, 1

</llo_original>
